<compile_context>
chip_gen: v5e
topology: v5e:2x2
jax: 0.10.0
libtpu: 0.0.40
codegen_flags: <defaults>
</compile_context>

<pallas_src>
import functools

import jax
import jax.numpy as jnp
from jax import lax
from jax.experimental import pallas as pl
from jax.experimental.pallas import tpu as pltpu


# -----------------------------------------------------------------------------
# Pallas kernel: hoisted input gates + unrolled GRU + MLP head + tile readout
# -----------------------------------------------------------------------------
def _rum_kernel(inv_num_samples,
                x_ref,              # (L, TB, LIN) one-hot walks, seq-major
                wi_ref,             # (LIN, 3*HP)  [W_ir.T | W_iz.T | W_in.T], lane-padded
                wh_ref,             # (HP, 3*HP)   [W_hr.T | W_hz.T | W_hn.T], lane-padded
                bgi_ref,            # (1, 3*HP)    [b_ir+b_hr | b_iz+b_hz | b_in]
                bhn_ref,            # (1, HP)
                w1_ref, b1_ref,     # (HP, HP), (1, HP)
                w2_ref, b2_ref,     # (HP, OP), (1, OP)
                o_ref):             # (1, 1, OP) per-tile partial readout
    L, TB, LIN = x_ref.shape
    HP = wh_ref.shape[0]

    # Hoisted input-gate contribution: one big matmul, biases pre-folded.
    x2 = x_ref[...].reshape(L * TB, LIN)
    gi = (jnp.dot(x2, wi_ref[...], preferred_element_type=jnp.float32)
          + bgi_ref[...]).reshape(L, TB, 3 * HP)

    wh = wh_ref[...]
    bhn = bhn_ref[...]

    h = jnp.zeros((TB, HP), jnp.float32)
    # Fully unrolled recurrence (L is a compile-time constant).
    for t in range(L):
        gi_t = gi[t]                                              # (TB, 3*HP)
        gh = jnp.dot(h, wh, preferred_element_type=jnp.float32)   # (TB, 3*HP)
        r = jax.nn.sigmoid(gi_t[:, :HP] + gh[:, :HP])
        z = jax.nn.sigmoid(gi_t[:, HP:2 * HP] + gh[:, HP:2 * HP])
        n = jnp.tanh(gi_t[:, 2 * HP:] + r * (gh[:, 2 * HP:] + bhn))
        h = (1.0 - z) * n + z * h                                  # PyTorch GRU update

    # fc: SiLU -> Linear(H,H) -> SiLU -> Linear(H,out)   (lane-padded to 128)
    y = jnp.dot(jax.nn.silu(h), w1_ref[...], preferred_element_type=jnp.float32) + b1_ref[...]
    y = jnp.dot(jax.nn.silu(y), w2_ref[...], preferred_element_type=jnp.float32) + b2_ref[...]

    # mean over samples then sum over nodes == sum over all walks / num_samples
    o_ref[...] = (jnp.sum(y, axis=0, keepdims=True) * inv_num_samples)[None]


def rum_forward_pallas(x_blL, kparams, num_samples, out_features, tb=None):
    """x_blL: (B, L, L) one-hot uniqueness walks (already flipped). -> (1, out)."""
    B, L, LIN = x_blL.shape
    if tb is None:
        tb = B                      # demo sizes: one tile covers the whole batch
    assert B % tb == 0
    nb = B // tb
    OP = kparams["w2"].shape[1]     # lane-padded output width (128)

    x = jnp.transpose(x_blL, (1, 0, 2))  # (L, B, LIN) seq-major

    weight_order = ("w_i", "w_h", "b_gi", "b_hn", "w1", "b1", "w2", "b2")
    weights = [kparams[k] for k in weight_order]

    in_specs = [pl.BlockSpec((L, tb, LIN), lambda i: (0, i, 0))]
    in_specs += [pl.BlockSpec(w.shape, lambda i: (0, 0)) for w in weights]

    fn = pl.pallas_call(
        functools.partial(_rum_kernel, 1.0 / float(num_samples)),
        out_shape=jax.ShapeDtypeStruct((nb, 1, OP), jnp.float32),
        grid=(nb,),
        in_specs=in_specs,
        out_specs=pl.BlockSpec((1, 1, OP), lambda i: (i, 0, 0)),
        compiler_params=pltpu.CompilerParams(
            dimension_semantics=("parallel",)),   # independent partials per tile
    )
    partials = fn(x, *weights)                    # (nb, 1, OP)
    return jnp.sum(partials, axis=0)[:, :out_features]


# -----------------------------------------------------------------------------
# Plain-JAX glue: synthetic graph, random walk, uniqueness, parameters
# -----------------------------------------------------------------------------
def ring_neighbors(n):
    idx = jnp.arange(n)
    return jnp.stack([(idx - 1) % n, (idx + 1) % n], axis=1)  # (N, 2)


def uniform_random_walk(key, neighbors, num_samples, length):
    """Uniform random walks of `length` nodes, num_samples per start node. -> (S, N, L)"""
    N, deg = neighbors.shape
    start = jnp.tile(jnp.arange(N)[None, :], (num_samples, 1))  # (S, N)

    def step(cur, k):
        choice = jax.random.randint(k, cur.shape, 0, deg)
        nxt = neighbors[cur, choice]
        return nxt, nxt

    keys = jax.random.split(key, length - 1)
    _, rest = lax.scan(step, start, keys)                 # (L-1, S, N)
    walks = jnp.concatenate([start[None], rest], axis=0)  # (L, S, N)
    return jnp.transpose(walks, (1, 2, 0))                # (S, N, L)


def uniqueness(walks):
    """Anonymous-walk relabeling: each step -> first-occurrence rank in [0, L)."""
    # TODO(synk): exact `uniqueness` semantics come from the external RUM package;
    # anonymous-walk relabeling is used here as the deterministic stand-in.
    def one(w):
        L = w.shape[0]
        eq = w[:, None] == w[None, :]
        mask = jnp.tril(jnp.ones((L, L), dtype=bool))
        first = jnp.argmax(eq & mask, axis=1)
        is_new = first == jnp.arange(L)
        rank = jnp.cumsum(is_new) - 1
        return rank[first]

    flat = walks.reshape(-1, walks.shape[-1])
    return jax.vmap(one)(flat).reshape(walks.shape)


def init_params(key, L, H, out):
    """Raw PyTorch-layout GRU + MLP parameters (used by the reference)."""
    ks = jax.random.split(key, 8)
    kg = 1.0 / jnp.sqrt(H)
    u = lambda k, shape, bound: jax.random.uniform(
        k, shape, jnp.float32, minval=-bound, maxval=bound)
    return {
        "w_ih": u(ks[0], (3 * H, L), kg),   # [W_ir; W_iz; W_in]
        "w_hh": u(ks[1], (3 * H, H), kg),   # [W_hr; W_hz; W_hn]
        "b_ih": u(ks[2], (3 * H,), kg),
        "b_hh": u(ks[3], (3 * H,), kg),
        "w1": u(ks[4], (H, H), kg), "b1": u(ks[5], (H,), kg),
        "w2": u(ks[6], (out, H), kg), "b2": u(ks[7], (out,), kg),
    }


def _pad_to(a, shape):
    return jnp.pad(a, [(0, s - d) for s, d in zip(shape, a.shape)])


def prep_kernel_params(raw, L, H, out, lane=128):
    """Fuse gates, pre-transpose, fold biases, and pad every lane dim to 128."""
    HP = -(-H // lane) * lane
    OP = -(-out // lane) * lane
    w_ih, w_hh = raw["w_ih"], raw["w_hh"]
    b_ih, b_hh = raw["b_ih"], raw["b_hh"]
    wir, wiz, win = w_ih[:H], w_ih[H:2 * H], w_ih[2 * H:]
    whr, whz, whn = w_hh[:H], w_hh[H:2 * H], w_hh[2 * H:]
    bir, biz, bin_ = b_ih[:H], b_ih[H:2 * H], b_ih[2 * H:]
    bhr, bhz, bhn = b_hh[:H], b_hh[H:2 * H], b_hh[2 * H:]

    w_i = jnp.concatenate([_pad_to(wir.T, (L, HP)),
                           _pad_to(wiz.T, (L, HP)),
                           _pad_to(win.T, (L, HP))], axis=1)          # (L, 3*HP)
    w_h = jnp.concatenate([_pad_to(whr.T, (HP, HP)),
                           _pad_to(whz.T, (HP, HP)),
                           _pad_to(whn.T, (HP, HP))], axis=1)         # (HP, 3*HP)
    b_gi = jnp.concatenate([_pad_to(bir + bhr, (HP,)),
                            _pad_to(biz + bhz, (HP,)),
                            _pad_to(bin_, (HP,))])[None, :]           # (1, 3*HP)
    b_hn = _pad_to(bhn, (HP,))[None, :]                               # (1, HP)

    return {
        "w_i": w_i, "w_h": w_h, "b_gi": b_gi, "b_hn": b_hn,
        "w1": _pad_to(raw["w1"].T, (HP, HP)), "b1": _pad_to(raw["b1"], (HP,))[None, :],
        "w2": _pad_to(raw["w2"].T, (HP, OP)), "b2": _pad_to(raw["b2"], (OP,))[None, :],
    }


def rum_reference(x_blL, raw, num_samples):
    """Pure-JAX reference of GRU + MLP + reductions (matches the PyTorch math)."""
    B, L, _ = x_blL.shape
    H = raw["w_hh"].shape[1]
    w_ih, w_hh = raw["w_ih"], raw["w_hh"]
    b_ih, b_hh = raw["b_ih"], raw["b_hh"]
    hp = lax.Precision.HIGHEST

    def cell(h, x_t):
        gi = jnp.dot(x_t, w_ih.T, precision=hp) + b_ih
        gh = jnp.dot(h, w_hh.T, precision=hp) + b_hh
        r = jax.nn.sigmoid(gi[:, :H] + gh[:, :H])
        z = jax.nn.sigmoid(gi[:, H:2 * H] + gh[:, H:2 * H])
        n = jnp.tanh(gi[:, 2 * H:] + r * gh[:, 2 * H:])   # reset gate applied (PyTorch GRU)
        return (1.0 - z) * n + z * h, None

    h0 = jnp.zeros((B, H), jnp.float32)
    h, _ = lax.scan(cell, h0, jnp.transpose(x_blL, (1, 0, 2)))
    y = jnp.dot(jax.nn.silu(h), raw["w1"].T, precision=hp) + raw["b1"]
    y = jnp.dot(jax.nn.silu(y), raw["w2"].T, precision=hp) + raw["b2"]
    return jnp.sum(y, axis=0, keepdims=True) / float(num_samples)


# -----------------------------------------------------------------------------
if __name__ == "__main__":
    # Small shapes: in_features (= walk length) L=8, hidden=32, out=8,
    # num_samples=4, graph = ring with N=16 nodes -> batch B = 64 walks.
    N_NODES, NUM_SAMPLES = 16, 4
    IN_FEATURES, HIDDEN, OUT_FEATURES = 8, 32, 8

    key = jax.random.PRNGKey(0)
    k_walk, k_param = jax.random.split(key)

    neighbors = ring_neighbors(N_NODES)
    walks = uniform_random_walk(k_walk, neighbors, NUM_SAMPLES, IN_FEATURES)  # (S, N, L)
    uniq = uniqueness(walks)
    # walks.flip(-1) is applied in the original forward but only the uniqueness
    # walk feeds the GRU (eids are unused as well).
    uniq = jnp.flip(uniq, axis=-1)
    x = jax.nn.one_hot(uniq, IN_FEATURES, dtype=jnp.float32)        # (S, N, L, L)
    x = x.reshape(NUM_SAMPLES * N_NODES, IN_FEATURES, IN_FEATURES)  # (B, L, L)

    raw = init_params(k_param, IN_FEATURES, HIDDEN, OUT_FEATURES)
    kparams = prep_kernel_params(raw, IN_FEATURES, HIDDEN, OUT_FEATURES)

    # Single tile (tb = B, grid=(1,)) — the recommended configuration at demo sizes.
    out = rum_forward_pallas(x, kparams, NUM_SAMPLES, OUT_FEATURES)
    out = jax.block_until_ready(out)

    # Multi-tile parallel path (tb=32, grid=(2,)) — exercises per-tile partial sums.
    out_tiled = rum_forward_pallas(x, kparams, NUM_SAMPLES, OUT_FEATURES, tb=32)
    out_tiled = jax.block_until_ready(out_tiled)

    ref = rum_reference(x, raw, NUM_SAMPLES)
    assert out.shape == (1, OUT_FEATURES)
    assert jnp.allclose(out, ref, atol=5e-3, rtol=5e-3), (out, ref)
    assert jnp.allclose(out_tiled, ref, atol=5e-3, rtol=5e-3), (out_tiled, ref)

    print("KERNEL_OK")
</pallas_src>

<mosaic_0001>
module attributes {stable_mosaic.version = 11 : i64} {
  func.func @_rum_kernel(%arg0: i32, %arg1: memref<8x64x8xf32, #tpu.memory_space<vmem>>, %arg2: memref<8x384xf32, #tpu.memory_space<vmem>>, %arg3: memref<128x384xf32, #tpu.memory_space<vmem>>, %arg4: memref<1x384xf32, #tpu.memory_space<vmem>>, %arg5: memref<1x128xf32, #tpu.memory_space<vmem>>, %arg6: memref<128x128xf32, #tpu.memory_space<vmem>>, %arg7: memref<1x128xf32, #tpu.memory_space<vmem>>, %arg8: memref<128x128xf32, #tpu.memory_space<vmem>>, %arg9: memref<1x128xf32, #tpu.memory_space<vmem>>, %arg10: memref<1x1x128xf32, #tpu.memory_space<vmem>>) attributes {dimension_semantics = [#tpu.dimension_semantics<parallel>], iteration_bounds = array<i64: 1>, scalar_prefetch = 0 : i64, scratch_operands = 0 : i64, tpu.core_type = #tpu.core_type<tc>, window_params = [{transform_indices = @transform_0, window_bounds = array<i64: 8, 64, 8>}, {pipeline_mode = #tpu.pipeline_mode<synchronous>, transform_indices = @transform_1, window_bounds = array<i64: 8, 384>}, {pipeline_mode = #tpu.pipeline_mode<synchronous>, transform_indices = @transform_2, window_bounds = array<i64: 128, 384>}, {pipeline_mode = #tpu.pipeline_mode<synchronous>, transform_indices = @transform_3, window_bounds = array<i64: 1, 384>}, {pipeline_mode = #tpu.pipeline_mode<synchronous>, transform_indices = @transform_4, window_bounds = array<i64: 1, 128>}, {pipeline_mode = #tpu.pipeline_mode<synchronous>, transform_indices = @transform_5, window_bounds = array<i64: 128, 128>}, {pipeline_mode = #tpu.pipeline_mode<synchronous>, transform_indices = @transform_6, window_bounds = array<i64: 1, 128>}, {pipeline_mode = #tpu.pipeline_mode<synchronous>, transform_indices = @transform_7, window_bounds = array<i64: 128, 128>}, {pipeline_mode = #tpu.pipeline_mode<synchronous>, transform_indices = @transform_8, window_bounds = array<i64: 1, 128>}, {transform_indices = @transform_9, window_bounds = array<i64: 1, 1, 128>}]} {
    %c0 = arith.constant 0 : index
    %c0_0 = arith.constant 0 : index
    %c0_1 = arith.constant 0 : index
    %0 = vector.load %arg1[%c0, %c0_0, %c0_1] : memref<8x64x8xf32, #tpu.memory_space<vmem>>, vector<8x64x8xf32>
    %1 = vector.shape_cast %0 : vector<8x64x8xf32> to vector<512x8xf32>
    %c0_2 = arith.constant 0 : index
    %c0_3 = arith.constant 0 : index
    %2 = vector.load %arg2[%c0_2, %c0_3] : memref<8x384xf32, #tpu.memory_space<vmem>>, vector<8x384xf32>
    %cst = arith.constant dense<0.000000e+00> : vector<512x384xf32>
    %3 = tpu.matmul %1, %2, %cst {dimension_numbers = #tpu.dot_dimension_numbers<[1], [0], [0], [1], [0, 0, 1, 1], [], []>} : vector<512x8xf32>, vector<8x384xf32>, vector<512x384xf32> -> vector<512x384xf32>
    %c0_4 = arith.constant 0 : index
    %c0_5 = arith.constant 0 : index
    %4 = vector.load %arg4[%c0_4, %c0_5] : memref<1x384xf32, #tpu.memory_space<vmem>>, vector<1x384xf32>
    %5 = vector.broadcast %4 : vector<1x384xf32> to vector<512x384xf32>
    %6 = arith.addf %3, %5 : vector<512x384xf32>
    %7 = vector.shape_cast %6 : vector<512x384xf32> to vector<8x64x384xf32>
    %c0_6 = arith.constant 0 : index
    %c0_7 = arith.constant 0 : index
    %8 = vector.load %arg3[%c0_6, %c0_7] : memref<128x384xf32, #tpu.memory_space<vmem>>, vector<128x384xf32>
    %c0_8 = arith.constant 0 : index
    %c0_9 = arith.constant 0 : index
    %9 = vector.load %arg5[%c0_8, %c0_9] : memref<1x128xf32, #tpu.memory_space<vmem>>, vector<1x128xf32>
    %cst_10 = arith.constant 0.000000e+00 : f32
    %10 = vector.broadcast %cst_10 : f32 to vector<64x128xf32>
    %11 = vector.extract_strided_slice %7 {offsets = [0, 0, 0], sizes = [1, 64, 384], strides = [1, 1, 1]} : vector<8x64x384xf32> to vector<1x64x384xf32>
    %12 = vector.shape_cast %11 : vector<1x64x384xf32> to vector<64x384xf32>
    %cst_11 = arith.constant dense<0.000000e+00> : vector<64x384xf32>
    %13 = tpu.matmul %10, %8, %cst_11 {dimension_numbers = #tpu.dot_dimension_numbers<[1], [0], [0], [1], [0, 0, 1, 1], [], []>} : vector<64x128xf32>, vector<128x384xf32>, vector<64x384xf32> -> vector<64x384xf32>
    %14 = vector.extract_strided_slice %12 {offsets = [0, 0], sizes = [64, 128], strides = [1, 1]} : vector<64x384xf32> to vector<64x128xf32>
    %15 = vector.extract_strided_slice %13 {offsets = [0, 0], sizes = [64, 128], strides = [1, 1]} : vector<64x384xf32> to vector<64x128xf32>
    %16 = arith.addf %14, %15 : vector<64x128xf32>
    %17 = arith.negf %16 : vector<64x128xf32>
    %18 = math.exp %17 : vector<64x128xf32>
    %cst_12 = arith.constant 1.000000e+00 : f32
    %19 = vector.broadcast %cst_12 : f32 to vector<64x128xf32>
    %20 = arith.addf %19, %18 : vector<64x128xf32>
    %21 = arith.divf %19, %20 : vector<64x128xf32>
    %22 = vector.extract_strided_slice %12 {offsets = [0, 128], sizes = [64, 128], strides = [1, 1]} : vector<64x384xf32> to vector<64x128xf32>
    %23 = vector.extract_strided_slice %13 {offsets = [0, 128], sizes = [64, 128], strides = [1, 1]} : vector<64x384xf32> to vector<64x128xf32>
    %24 = arith.addf %22, %23 : vector<64x128xf32>
    %25 = arith.negf %24 : vector<64x128xf32>
    %26 = math.exp %25 : vector<64x128xf32>
    %cst_13 = arith.constant 1.000000e+00 : f32
    %27 = vector.broadcast %cst_13 : f32 to vector<64x128xf32>
    %28 = arith.addf %27, %26 : vector<64x128xf32>
    %29 = arith.divf %27, %28 : vector<64x128xf32>
    %30 = vector.extract_strided_slice %12 {offsets = [0, 256], sizes = [64, 128], strides = [1, 1]} : vector<64x384xf32> to vector<64x128xf32>
    %31 = vector.extract_strided_slice %13 {offsets = [0, 256], sizes = [64, 128], strides = [1, 1]} : vector<64x384xf32> to vector<64x128xf32>
    %32 = vector.broadcast %9 : vector<1x128xf32> to vector<64x128xf32>
    %33 = arith.addf %31, %32 : vector<64x128xf32>
    %34 = arith.mulf %21, %33 : vector<64x128xf32>
    %35 = arith.addf %30, %34 : vector<64x128xf32>
    %36 = math.tanh %35 : vector<64x128xf32>
    %cst_14 = arith.constant 1.000000e+00 : f32
    %37 = vector.broadcast %cst_14 : f32 to vector<64x128xf32>
    %38 = arith.subf %37, %29 : vector<64x128xf32>
    %39 = arith.mulf %38, %36 : vector<64x128xf32>
    %40 = arith.mulf %29, %10 : vector<64x128xf32>
    %41 = arith.addf %39, %40 : vector<64x128xf32>
    %42 = vector.extract_strided_slice %7 {offsets = [1, 0, 0], sizes = [1, 64, 384], strides = [1, 1, 1]} : vector<8x64x384xf32> to vector<1x64x384xf32>
    %43 = vector.shape_cast %42 : vector<1x64x384xf32> to vector<64x384xf32>
    %cst_15 = arith.constant dense<0.000000e+00> : vector<64x384xf32>
    %44 = tpu.matmul %41, %8, %cst_15 {dimension_numbers = #tpu.dot_dimension_numbers<[1], [0], [0], [1], [0, 0, 1, 1], [], []>} : vector<64x128xf32>, vector<128x384xf32>, vector<64x384xf32> -> vector<64x384xf32>
    %45 = vector.extract_strided_slice %43 {offsets = [0, 0], sizes = [64, 128], strides = [1, 1]} : vector<64x384xf32> to vector<64x128xf32>
    %46 = vector.extract_strided_slice %44 {offsets = [0, 0], sizes = [64, 128], strides = [1, 1]} : vector<64x384xf32> to vector<64x128xf32>
    %47 = arith.addf %45, %46 : vector<64x128xf32>
    %48 = arith.negf %47 : vector<64x128xf32>
    %49 = math.exp %48 : vector<64x128xf32>
    %cst_16 = arith.constant 1.000000e+00 : f32
    %50 = vector.broadcast %cst_16 : f32 to vector<64x128xf32>
    %51 = arith.addf %50, %49 : vector<64x128xf32>
    %52 = arith.divf %50, %51 : vector<64x128xf32>
    %53 = vector.extract_strided_slice %43 {offsets = [0, 128], sizes = [64, 128], strides = [1, 1]} : vector<64x384xf32> to vector<64x128xf32>
    %54 = vector.extract_strided_slice %44 {offsets = [0, 128], sizes = [64, 128], strides = [1, 1]} : vector<64x384xf32> to vector<64x128xf32>
    %55 = arith.addf %53, %54 : vector<64x128xf32>
    %56 = arith.negf %55 : vector<64x128xf32>
    %57 = math.exp %56 : vector<64x128xf32>
    %cst_17 = arith.constant 1.000000e+00 : f32
    %58 = vector.broadcast %cst_17 : f32 to vector<64x128xf32>
    %59 = arith.addf %58, %57 : vector<64x128xf32>
    %60 = arith.divf %58, %59 : vector<64x128xf32>
    %61 = vector.extract_strided_slice %43 {offsets = [0, 256], sizes = [64, 128], strides = [1, 1]} : vector<64x384xf32> to vector<64x128xf32>
    %62 = vector.extract_strided_slice %44 {offsets = [0, 256], sizes = [64, 128], strides = [1, 1]} : vector<64x384xf32> to vector<64x128xf32>
    %63 = vector.broadcast %9 : vector<1x128xf32> to vector<64x128xf32>
    %64 = arith.addf %62, %63 : vector<64x128xf32>
    %65 = arith.mulf %52, %64 : vector<64x128xf32>
    %66 = arith.addf %61, %65 : vector<64x128xf32>
    %67 = math.tanh %66 : vector<64x128xf32>
    %cst_18 = arith.constant 1.000000e+00 : f32
    %68 = vector.broadcast %cst_18 : f32 to vector<64x128xf32>
    %69 = arith.subf %68, %60 : vector<64x128xf32>
    %70 = arith.mulf %69, %67 : vector<64x128xf32>
    %71 = arith.mulf %60, %41 : vector<64x128xf32>
    %72 = arith.addf %70, %71 : vector<64x128xf32>
    %73 = vector.extract_strided_slice %7 {offsets = [2, 0, 0], sizes = [1, 64, 384], strides = [1, 1, 1]} : vector<8x64x384xf32> to vector<1x64x384xf32>
    %74 = vector.shape_cast %73 : vector<1x64x384xf32> to vector<64x384xf32>
    %cst_19 = arith.constant dense<0.000000e+00> : vector<64x384xf32>
    %75 = tpu.matmul %72, %8, %cst_19 {dimension_numbers = #tpu.dot_dimension_numbers<[1], [0], [0], [1], [0, 0, 1, 1], [], []>} : vector<64x128xf32>, vector<128x384xf32>, vector<64x384xf32> -> vector<64x384xf32>
    %76 = vector.extract_strided_slice %74 {offsets = [0, 0], sizes = [64, 128], strides = [1, 1]} : vector<64x384xf32> to vector<64x128xf32>
    %77 = vector.extract_strided_slice %75 {offsets = [0, 0], sizes = [64, 128], strides = [1, 1]} : vector<64x384xf32> to vector<64x128xf32>
    %78 = arith.addf %76, %77 : vector<64x128xf32>
    %79 = arith.negf %78 : vector<64x128xf32>
    %80 = math.exp %79 : vector<64x128xf32>
    %cst_20 = arith.constant 1.000000e+00 : f32
    %81 = vector.broadcast %cst_20 : f32 to vector<64x128xf32>
    %82 = arith.addf %81, %80 : vector<64x128xf32>
    %83 = arith.divf %81, %82 : vector<64x128xf32>
    %84 = vector.extract_strided_slice %74 {offsets = [0, 128], sizes = [64, 128], strides = [1, 1]} : vector<64x384xf32> to vector<64x128xf32>
    %85 = vector.extract_strided_slice %75 {offsets = [0, 128], sizes = [64, 128], strides = [1, 1]} : vector<64x384xf32> to vector<64x128xf32>
    %86 = arith.addf %84, %85 : vector<64x128xf32>
    %87 = arith.negf %86 : vector<64x128xf32>
    %88 = math.exp %87 : vector<64x128xf32>
    %cst_21 = arith.constant 1.000000e+00 : f32
    %89 = vector.broadcast %cst_21 : f32 to vector<64x128xf32>
    %90 = arith.addf %89, %88 : vector<64x128xf32>
    %91 = arith.divf %89, %90 : vector<64x128xf32>
    %92 = vector.extract_strided_slice %74 {offsets = [0, 256], sizes = [64, 128], strides = [1, 1]} : vector<64x384xf32> to vector<64x128xf32>
    %93 = vector.extract_strided_slice %75 {offsets = [0, 256], sizes = [64, 128], strides = [1, 1]} : vector<64x384xf32> to vector<64x128xf32>
    %94 = vector.broadcast %9 : vector<1x128xf32> to vector<64x128xf32>
    %95 = arith.addf %93, %94 : vector<64x128xf32>
    %96 = arith.mulf %83, %95 : vector<64x128xf32>
    %97 = arith.addf %92, %96 : vector<64x128xf32>
    %98 = math.tanh %97 : vector<64x128xf32>
    %cst_22 = arith.constant 1.000000e+00 : f32
    %99 = vector.broadcast %cst_22 : f32 to vector<64x128xf32>
    %100 = arith.subf %99, %91 : vector<64x128xf32>
    %101 = arith.mulf %100, %98 : vector<64x128xf32>
    %102 = arith.mulf %91, %72 : vector<64x128xf32>
    %103 = arith.addf %101, %102 : vector<64x128xf32>
    %104 = vector.extract_strided_slice %7 {offsets = [3, 0, 0], sizes = [1, 64, 384], strides = [1, 1, 1]} : vector<8x64x384xf32> to vector<1x64x384xf32>
    %105 = vector.shape_cast %104 : vector<1x64x384xf32> to vector<64x384xf32>
    %cst_23 = arith.constant dense<0.000000e+00> : vector<64x384xf32>
    %106 = tpu.matmul %103, %8, %cst_23 {dimension_numbers = #tpu.dot_dimension_numbers<[1], [0], [0], [1], [0, 0, 1, 1], [], []>} : vector<64x128xf32>, vector<128x384xf32>, vector<64x384xf32> -> vector<64x384xf32>
    %107 = vector.extract_strided_slice %105 {offsets = [0, 0], sizes = [64, 128], strides = [1, 1]} : vector<64x384xf32> to vector<64x128xf32>
    %108 = vector.extract_strided_slice %106 {offsets = [0, 0], sizes = [64, 128], strides = [1, 1]} : vector<64x384xf32> to vector<64x128xf32>
    %109 = arith.addf %107, %108 : vector<64x128xf32>
    %110 = arith.negf %109 : vector<64x128xf32>
    %111 = math.exp %110 : vector<64x128xf32>
    %cst_24 = arith.constant 1.000000e+00 : f32
    %112 = vector.broadcast %cst_24 : f32 to vector<64x128xf32>
    %113 = arith.addf %112, %111 : vector<64x128xf32>
    %114 = arith.divf %112, %113 : vector<64x128xf32>
    %115 = vector.extract_strided_slice %105 {offsets = [0, 128], sizes = [64, 128], strides = [1, 1]} : vector<64x384xf32> to vector<64x128xf32>
    %116 = vector.extract_strided_slice %106 {offsets = [0, 128], sizes = [64, 128], strides = [1, 1]} : vector<64x384xf32> to vector<64x128xf32>
    %117 = arith.addf %115, %116 : vector<64x128xf32>
    %118 = arith.negf %117 : vector<64x128xf32>
    %119 = math.exp %118 : vector<64x128xf32>
    %cst_25 = arith.constant 1.000000e+00 : f32
    %120 = vector.broadcast %cst_25 : f32 to vector<64x128xf32>
    %121 = arith.addf %120, %119 : vector<64x128xf32>
    %122 = arith.divf %120, %121 : vector<64x128xf32>
    %123 = vector.extract_strided_slice %105 {offsets = [0, 256], sizes = [64, 128], strides = [1, 1]} : vector<64x384xf32> to vector<64x128xf32>
    %124 = vector.extract_strided_slice %106 {offsets = [0, 256], sizes = [64, 128], strides = [1, 1]} : vector<64x384xf32> to vector<64x128xf32>
    %125 = vector.broadcast %9 : vector<1x128xf32> to vector<64x128xf32>
    %126 = arith.addf %124, %125 : vector<64x128xf32>
    %127 = arith.mulf %114, %126 : vector<64x128xf32>
    %128 = arith.addf %123, %127 : vector<64x128xf32>
    %129 = math.tanh %128 : vector<64x128xf32>
    %cst_26 = arith.constant 1.000000e+00 : f32
    %130 = vector.broadcast %cst_26 : f32 to vector<64x128xf32>
    %131 = arith.subf %130, %122 : vector<64x128xf32>
    %132 = arith.mulf %131, %129 : vector<64x128xf32>
    %133 = arith.mulf %122, %103 : vector<64x128xf32>
    %134 = arith.addf %132, %133 : vector<64x128xf32>
    %135 = vector.extract_strided_slice %7 {offsets = [4, 0, 0], sizes = [1, 64, 384], strides = [1, 1, 1]} : vector<8x64x384xf32> to vector<1x64x384xf32>
    %136 = vector.shape_cast %135 : vector<1x64x384xf32> to vector<64x384xf32>
    %cst_27 = arith.constant dense<0.000000e+00> : vector<64x384xf32>
    %137 = tpu.matmul %134, %8, %cst_27 {dimension_numbers = #tpu.dot_dimension_numbers<[1], [0], [0], [1], [0, 0, 1, 1], [], []>} : vector<64x128xf32>, vector<128x384xf32>, vector<64x384xf32> -> vector<64x384xf32>
    %138 = vector.extract_strided_slice %136 {offsets = [0, 0], sizes = [64, 128], strides = [1, 1]} : vector<64x384xf32> to vector<64x128xf32>
    %139 = vector.extract_strided_slice %137 {offsets = [0, 0], sizes = [64, 128], strides = [1, 1]} : vector<64x384xf32> to vector<64x128xf32>
    %140 = arith.addf %138, %139 : vector<64x128xf32>
    %141 = arith.negf %140 : vector<64x128xf32>
    %142 = math.exp %141 : vector<64x128xf32>
    %cst_28 = arith.constant 1.000000e+00 : f32
    %143 = vector.broadcast %cst_28 : f32 to vector<64x128xf32>
    %144 = arith.addf %143, %142 : vector<64x128xf32>
    %145 = arith.divf %143, %144 : vector<64x128xf32>
    %146 = vector.extract_strided_slice %136 {offsets = [0, 128], sizes = [64, 128], strides = [1, 1]} : vector<64x384xf32> to vector<64x128xf32>
    %147 = vector.extract_strided_slice %137 {offsets = [0, 128], sizes = [64, 128], strides = [1, 1]} : vector<64x384xf32> to vector<64x128xf32>
    %148 = arith.addf %146, %147 : vector<64x128xf32>
    %149 = arith.negf %148 : vector<64x128xf32>
    %150 = math.exp %149 : vector<64x128xf32>
    %cst_29 = arith.constant 1.000000e+00 : f32
    %151 = vector.broadcast %cst_29 : f32 to vector<64x128xf32>
    %152 = arith.addf %151, %150 : vector<64x128xf32>
    %153 = arith.divf %151, %152 : vector<64x128xf32>
    %154 = vector.extract_strided_slice %136 {offsets = [0, 256], sizes = [64, 128], strides = [1, 1]} : vector<64x384xf32> to vector<64x128xf32>
    %155 = vector.extract_strided_slice %137 {offsets = [0, 256], sizes = [64, 128], strides = [1, 1]} : vector<64x384xf32> to vector<64x128xf32>
    %156 = vector.broadcast %9 : vector<1x128xf32> to vector<64x128xf32>
    %157 = arith.addf %155, %156 : vector<64x128xf32>
    %158 = arith.mulf %145, %157 : vector<64x128xf32>
    %159 = arith.addf %154, %158 : vector<64x128xf32>
    %160 = math.tanh %159 : vector<64x128xf32>
    %cst_30 = arith.constant 1.000000e+00 : f32
    %161 = vector.broadcast %cst_30 : f32 to vector<64x128xf32>
    %162 = arith.subf %161, %153 : vector<64x128xf32>
    %163 = arith.mulf %162, %160 : vector<64x128xf32>
    %164 = arith.mulf %153, %134 : vector<64x128xf32>
    %165 = arith.addf %163, %164 : vector<64x128xf32>
    %166 = vector.extract_strided_slice %7 {offsets = [5, 0, 0], sizes = [1, 64, 384], strides = [1, 1, 1]} : vector<8x64x384xf32> to vector<1x64x384xf32>
    %167 = vector.shape_cast %166 : vector<1x64x384xf32> to vector<64x384xf32>
    %cst_31 = arith.constant dense<0.000000e+00> : vector<64x384xf32>
    %168 = tpu.matmul %165, %8, %cst_31 {dimension_numbers = #tpu.dot_dimension_numbers<[1], [0], [0], [1], [0, 0, 1, 1], [], []>} : vector<64x128xf32>, vector<128x384xf32>, vector<64x384xf32> -> vector<64x384xf32>
    %169 = vector.extract_strided_slice %167 {offsets = [0, 0], sizes = [64, 128], strides = [1, 1]} : vector<64x384xf32> to vector<64x128xf32>
    %170 = vector.extract_strided_slice %168 {offsets = [0, 0], sizes = [64, 128], strides = [1, 1]} : vector<64x384xf32> to vector<64x128xf32>
    %171 = arith.addf %169, %170 : vector<64x128xf32>
    %172 = arith.negf %171 : vector<64x128xf32>
    %173 = math.exp %172 : vector<64x128xf32>
    %cst_32 = arith.constant 1.000000e+00 : f32
    %174 = vector.broadcast %cst_32 : f32 to vector<64x128xf32>
    %175 = arith.addf %174, %173 : vector<64x128xf32>
    %176 = arith.divf %174, %175 : vector<64x128xf32>
    %177 = vector.extract_strided_slice %167 {offsets = [0, 128], sizes = [64, 128], strides = [1, 1]} : vector<64x384xf32> to vector<64x128xf32>
    %178 = vector.extract_strided_slice %168 {offsets = [0, 128], sizes = [64, 128], strides = [1, 1]} : vector<64x384xf32> to vector<64x128xf32>
    %179 = arith.addf %177, %178 : vector<64x128xf32>
    %180 = arith.negf %179 : vector<64x128xf32>
    %181 = math.exp %180 : vector<64x128xf32>
    %cst_33 = arith.constant 1.000000e+00 : f32
    %182 = vector.broadcast %cst_33 : f32 to vector<64x128xf32>
    %183 = arith.addf %182, %181 : vector<64x128xf32>
    %184 = arith.divf %182, %183 : vector<64x128xf32>
    %185 = vector.extract_strided_slice %167 {offsets = [0, 256], sizes = [64, 128], strides = [1, 1]} : vector<64x384xf32> to vector<64x128xf32>
    %186 = vector.extract_strided_slice %168 {offsets = [0, 256], sizes = [64, 128], strides = [1, 1]} : vector<64x384xf32> to vector<64x128xf32>
    %187 = vector.broadcast %9 : vector<1x128xf32> to vector<64x128xf32>
    %188 = arith.addf %186, %187 : vector<64x128xf32>
    %189 = arith.mulf %176, %188 : vector<64x128xf32>
    %190 = arith.addf %185, %189 : vector<64x128xf32>
    %191 = math.tanh %190 : vector<64x128xf32>
    %cst_34 = arith.constant 1.000000e+00 : f32
    %192 = vector.broadcast %cst_34 : f32 to vector<64x128xf32>
    %193 = arith.subf %192, %184 : vector<64x128xf32>
    %194 = arith.mulf %193, %191 : vector<64x128xf32>
    %195 = arith.mulf %184, %165 : vector<64x128xf32>
    %196 = arith.addf %194, %195 : vector<64x128xf32>
    %197 = vector.extract_strided_slice %7 {offsets = [6, 0, 0], sizes = [1, 64, 384], strides = [1, 1, 1]} : vector<8x64x384xf32> to vector<1x64x384xf32>
    %198 = vector.shape_cast %197 : vector<1x64x384xf32> to vector<64x384xf32>
    %cst_35 = arith.constant dense<0.000000e+00> : vector<64x384xf32>
    %199 = tpu.matmul %196, %8, %cst_35 {dimension_numbers = #tpu.dot_dimension_numbers<[1], [0], [0], [1], [0, 0, 1, 1], [], []>} : vector<64x128xf32>, vector<128x384xf32>, vector<64x384xf32> -> vector<64x384xf32>
    %200 = vector.extract_strided_slice %198 {offsets = [0, 0], sizes = [64, 128], strides = [1, 1]} : vector<64x384xf32> to vector<64x128xf32>
    %201 = vector.extract_strided_slice %199 {offsets = [0, 0], sizes = [64, 128], strides = [1, 1]} : vector<64x384xf32> to vector<64x128xf32>
    %202 = arith.addf %200, %201 : vector<64x128xf32>
    %203 = arith.negf %202 : vector<64x128xf32>
    %204 = math.exp %203 : vector<64x128xf32>
    %cst_36 = arith.constant 1.000000e+00 : f32
    %205 = vector.broadcast %cst_36 : f32 to vector<64x128xf32>
    %206 = arith.addf %205, %204 : vector<64x128xf32>
    %207 = arith.divf %205, %206 : vector<64x128xf32>
    %208 = vector.extract_strided_slice %198 {offsets = [0, 128], sizes = [64, 128], strides = [1, 1]} : vector<64x384xf32> to vector<64x128xf32>
    %209 = vector.extract_strided_slice %199 {offsets = [0, 128], sizes = [64, 128], strides = [1, 1]} : vector<64x384xf32> to vector<64x128xf32>
    %210 = arith.addf %208, %209 : vector<64x128xf32>
    %211 = arith.negf %210 : vector<64x128xf32>
    %212 = math.exp %211 : vector<64x128xf32>
    %cst_37 = arith.constant 1.000000e+00 : f32
    %213 = vector.broadcast %cst_37 : f32 to vector<64x128xf32>
    %214 = arith.addf %213, %212 : vector<64x128xf32>
    %215 = arith.divf %213, %214 : vector<64x128xf32>
    %216 = vector.extract_strided_slice %198 {offsets = [0, 256], sizes = [64, 128], strides = [1, 1]} : vector<64x384xf32> to vector<64x128xf32>
    %217 = vector.extract_strided_slice %199 {offsets = [0, 256], sizes = [64, 128], strides = [1, 1]} : vector<64x384xf32> to vector<64x128xf32>
    %218 = vector.broadcast %9 : vector<1x128xf32> to vector<64x128xf32>
    %219 = arith.addf %217, %218 : vector<64x128xf32>
    %220 = arith.mulf %207, %219 : vector<64x128xf32>
    %221 = arith.addf %216, %220 : vector<64x128xf32>
    %222 = math.tanh %221 : vector<64x128xf32>
    %cst_38 = arith.constant 1.000000e+00 : f32
    %223 = vector.broadcast %cst_38 : f32 to vector<64x128xf32>
    %224 = arith.subf %223, %215 : vector<64x128xf32>
    %225 = arith.mulf %224, %222 : vector<64x128xf32>
    %226 = arith.mulf %215, %196 : vector<64x128xf32>
    %227 = arith.addf %225, %226 : vector<64x128xf32>
    %228 = vector.extract_strided_slice %7 {offsets = [7, 0, 0], sizes = [1, 64, 384], strides = [1, 1, 1]} : vector<8x64x384xf32> to vector<1x64x384xf32>
    %229 = vector.shape_cast %228 : vector<1x64x384xf32> to vector<64x384xf32>
    %cst_39 = arith.constant dense<0.000000e+00> : vector<64x384xf32>
    %230 = tpu.matmul %227, %8, %cst_39 {dimension_numbers = #tpu.dot_dimension_numbers<[1], [0], [0], [1], [0, 0, 1, 1], [], []>} : vector<64x128xf32>, vector<128x384xf32>, vector<64x384xf32> -> vector<64x384xf32>
    %231 = vector.extract_strided_slice %229 {offsets = [0, 0], sizes = [64, 128], strides = [1, 1]} : vector<64x384xf32> to vector<64x128xf32>
    %232 = vector.extract_strided_slice %230 {offsets = [0, 0], sizes = [64, 128], strides = [1, 1]} : vector<64x384xf32> to vector<64x128xf32>
    %233 = arith.addf %231, %232 : vector<64x128xf32>
    %234 = arith.negf %233 : vector<64x128xf32>
    %235 = math.exp %234 : vector<64x128xf32>
    %cst_40 = arith.constant 1.000000e+00 : f32
    %236 = vector.broadcast %cst_40 : f32 to vector<64x128xf32>
    %237 = arith.addf %236, %235 : vector<64x128xf32>
    %238 = arith.divf %236, %237 : vector<64x128xf32>
    %239 = vector.extract_strided_slice %229 {offsets = [0, 128], sizes = [64, 128], strides = [1, 1]} : vector<64x384xf32> to vector<64x128xf32>
    %240 = vector.extract_strided_slice %230 {offsets = [0, 128], sizes = [64, 128], strides = [1, 1]} : vector<64x384xf32> to vector<64x128xf32>
    %241 = arith.addf %239, %240 : vector<64x128xf32>
    %242 = arith.negf %241 : vector<64x128xf32>
    %243 = math.exp %242 : vector<64x128xf32>
    %cst_41 = arith.constant 1.000000e+00 : f32
    %244 = vector.broadcast %cst_41 : f32 to vector<64x128xf32>
    %245 = arith.addf %244, %243 : vector<64x128xf32>
    %246 = arith.divf %244, %245 : vector<64x128xf32>
    %247 = vector.extract_strided_slice %229 {offsets = [0, 256], sizes = [64, 128], strides = [1, 1]} : vector<64x384xf32> to vector<64x128xf32>
    %248 = vector.extract_strided_slice %230 {offsets = [0, 256], sizes = [64, 128], strides = [1, 1]} : vector<64x384xf32> to vector<64x128xf32>
    %249 = vector.broadcast %9 : vector<1x128xf32> to vector<64x128xf32>
    %250 = arith.addf %248, %249 : vector<64x128xf32>
    %251 = arith.mulf %238, %250 : vector<64x128xf32>
    %252 = arith.addf %247, %251 : vector<64x128xf32>
    %253 = math.tanh %252 : vector<64x128xf32>
    %cst_42 = arith.constant 1.000000e+00 : f32
    %254 = vector.broadcast %cst_42 : f32 to vector<64x128xf32>
    %255 = arith.subf %254, %246 : vector<64x128xf32>
    %256 = arith.mulf %255, %253 : vector<64x128xf32>
    %257 = arith.mulf %246, %227 : vector<64x128xf32>
    %258 = arith.addf %256, %257 : vector<64x128xf32>
    %259 = arith.negf %258 : vector<64x128xf32>
    %260 = math.exp %259 : vector<64x128xf32>
    %cst_43 = arith.constant 1.000000e+00 : f32
    %261 = vector.broadcast %cst_43 : f32 to vector<64x128xf32>
    %262 = arith.addf %261, %260 : vector<64x128xf32>
    %263 = arith.divf %261, %262 : vector<64x128xf32>
    %264 = arith.mulf %258, %263 : vector<64x128xf32>
    %c0_44 = arith.constant 0 : index
    %c0_45 = arith.constant 0 : index
    %265 = vector.load %arg6[%c0_44, %c0_45] : memref<128x128xf32, #tpu.memory_space<vmem>>, vector<128x128xf32>
    %cst_46 = arith.constant dense<0.000000e+00> : vector<64x128xf32>
    %266 = tpu.matmul %264, %265, %cst_46 {dimension_numbers = #tpu.dot_dimension_numbers<[1], [0], [0], [1], [0, 0, 1, 1], [], []>} : vector<64x128xf32>, vector<128x128xf32>, vector<64x128xf32> -> vector<64x128xf32>
    %c0_47 = arith.constant 0 : index
    %c0_48 = arith.constant 0 : index
    %267 = vector.load %arg7[%c0_47, %c0_48] : memref<1x128xf32, #tpu.memory_space<vmem>>, vector<1x128xf32>
    %268 = vector.broadcast %267 : vector<1x128xf32> to vector<64x128xf32>
    %269 = arith.addf %266, %268 : vector<64x128xf32>
    %270 = arith.negf %269 : vector<64x128xf32>
    %271 = math.exp %270 : vector<64x128xf32>
    %cst_49 = arith.constant 1.000000e+00 : f32
    %272 = vector.broadcast %cst_49 : f32 to vector<64x128xf32>
    %273 = arith.addf %272, %271 : vector<64x128xf32>
    %274 = arith.divf %272, %273 : vector<64x128xf32>
    %275 = arith.mulf %269, %274 : vector<64x128xf32>
    %c0_50 = arith.constant 0 : index
    %c0_51 = arith.constant 0 : index
    %276 = vector.load %arg8[%c0_50, %c0_51] : memref<128x128xf32, #tpu.memory_space<vmem>>, vector<128x128xf32>
    %cst_52 = arith.constant dense<0.000000e+00> : vector<64x128xf32>
    %277 = tpu.matmul %275, %276, %cst_52 {dimension_numbers = #tpu.dot_dimension_numbers<[1], [0], [0], [1], [0, 0, 1, 1], [], []>} : vector<64x128xf32>, vector<128x128xf32>, vector<64x128xf32> -> vector<64x128xf32>
    %c0_53 = arith.constant 0 : index
    %c0_54 = arith.constant 0 : index
    %278 = vector.load %arg9[%c0_53, %c0_54] : memref<1x128xf32, #tpu.memory_space<vmem>>, vector<1x128xf32>
    %279 = vector.broadcast %278 : vector<1x128xf32> to vector<64x128xf32>
    %280 = arith.addf %277, %279 : vector<64x128xf32>
    %cst_55 = arith.constant dense<0.000000e+00> : vector<128xf32>
    %281 = vector.multi_reduction <add>, %280, %cst_55 [0] : vector<64x128xf32> to vector<128xf32>
    %282 = vector.shape_cast %281 : vector<128xf32> to vector<1x128xf32>
    %cst_56 = arith.constant 2.500000e-01 : f32
    %283 = vector.broadcast %cst_56 : f32 to vector<1x128xf32>
    %284 = arith.mulf %282, %283 : vector<1x128xf32>
    %285 = vector.shape_cast %284 : vector<1x128xf32> to vector<1x1x128xf32>
    %c0_57 = arith.constant 0 : index
    %c0_58 = arith.constant 0 : index
    %c0_59 = arith.constant 0 : index
    %286 = vector.load %arg10[%c0_57, %c0_58, %c0_59] : memref<1x1x128xf32, #tpu.memory_space<vmem>>, vector<1x1x128xf32>
    tpu.vector_store %arg10[%c0_57, %c0_58, %c0_59], %285 {strides = array<i32>} : memref<1x1x128xf32, #tpu.memory_space<vmem>>, vector<1x1x128xf32>,
    return
  }
  func.func @transform_0(%arg0: i32) -> (i32, i32, i32) {
    %c0_i32 = arith.constant 0 : i32
    %c0_i32_0 = arith.constant 0 : i32
    %c0_i32_1 = arith.constant 0 : i32
    return %c0_i32, %arg0, %c0_i32_0 : i32, i32, i32
  }
  func.func @transform_1(%arg0: i32) -> (i32, i32) {
    %c0_i32 = arith.constant 0 : i32
    %c0_i32_0 = arith.constant 0 : i32
    %c0_i32_1 = arith.constant 0 : i32
    return %c0_i32, %c0_i32_0 : i32, i32
  }
  func.func @transform_2(%arg0: i32) -> (i32, i32) {
    %c0_i32 = arith.constant 0 : i32
    %c0_i32_0 = arith.constant 0 : i32
    %c0_i32_1 = arith.constant 0 : i32
    return %c0_i32, %c0_i32_0 : i32, i32
  }
  func.func @transform_3(%arg0: i32) -> (i32, i32) {
    %c0_i32 = arith.constant 0 : i32
    %c0_i32_0 = arith.constant 0 : i32
    %c0_i32_1 = arith.constant 0 : i32
    return %c0_i32, %c0_i32_0 : i32, i32
  }
  func.func @transform_4(%arg0: i32) -> (i32, i32) {
    %c0_i32 = arith.constant 0 : i32
    %c0_i32_0 = arith.constant 0 : i32
    %c0_i32_1 = arith.constant 0 : i32
    return %c0_i32, %c0_i32_0 : i32, i32
  }
  func.func @transform_5(%arg0: i32) -> (i32, i32) {
    %c0_i32 = arith.constant 0 : i32
    %c0_i32_0 = arith.constant 0 : i32
    %c0_i32_1 = arith.constant 0 : i32
    return %c0_i32, %c0_i32_0 : i32, i32
  }
  func.func @transform_6(%arg0: i32) -> (i32, i32) {
    %c0_i32 = arith.constant 0 : i32
    %c0_i32_0 = arith.constant 0 : i32
    %c0_i32_1 = arith.constant 0 : i32
    return %c0_i32, %c0_i32_0 : i32, i32
  }
  func.func @transform_7(%arg0: i32) -> (i32, i32) {
    %c0_i32 = arith.constant 0 : i32
    %c0_i32_0 = arith.constant 0 : i32
    %c0_i32_1 = arith.constant 0 : i32
    return %c0_i32, %c0_i32_0 : i32, i32
  }
  func.func @transform_8(%arg0: i32) -> (i32, i32) {
    %c0_i32 = arith.constant 0 : i32
    %c0_i32_0 = arith.constant 0 : i32
    %c0_i32_1 = arith.constant 0 : i32
    return %c0_i32, %c0_i32_0 : i32, i32
  }
  func.func @transform_9(%arg0: i32) -> (i32, i32, i32) {
    %c0_i32 = arith.constant 0 : i32
    %c0_i32_0 = arith.constant 0 : i32
    %c0_i32_1 = arith.constant 0 : i32
    return %arg0, %c0_i32, %c0_i32_0 : i32, i32, i32
  }
}

</mosaic_0001>

<llo_original>
// kernel: tpu_custom_call.1
$region0: #{tpu_custom_call.1}
  #allocation0 [shape = 'u32[]', space=smem, size = 0x4, offset = 0x4, fixed_abs, tag = 'smem constant byte address 0x4 - core index']
  #allocation1 [shape = 'u32[72,128]{1,0:T(1,128)}', space=vmem, size = 0x9000, scoped, tag = 'internal scratch']
  %s0 = inlined_call_operand.vmem [shape: f32[8,64,8], index: 0, kind: input, shape index: {}]
  %s1 = inlined_call_operand.vmem [shape: f32[8,384], index: 1, kind: input, shape index: {}]
  %s2 = inlined_call_operand.vmem [shape: f32[128,384], index: 2, kind: input, shape index: {}]
  %s3 = inlined_call_operand.vmem [shape: f32[1,384], index: 3, kind: input, shape index: {}]
  %s4 = inlined_call_operand.vmem [shape: f32[1,128], index: 4, kind: input, shape index: {}]
  %s5 = inlined_call_operand.vmem [shape: f32[128,128], index: 5, kind: input, shape index: {}]
  %s6 = inlined_call_operand.vmem [shape: f32[1,128], index: 6, kind: input, shape index: {}]
  %s7 = inlined_call_operand.hbm [shape: f32[128,128], index: 7, kind: input, shape index: {}]
  %s8 = inlined_call_operand.vmem [shape: f32[1,128], index: 8, kind: input, shape index: {}]
  %s9 = inlined_call_operand.hbm [shape: f32[1,1,128], index: 9, kind: output, shape index: {}]
  %s10 = sld [smem:[#allocation0]]
  $region50: #{tpu_custom_call.1} parent=0
    _
  %s12 = ssub.s32 1, %s10
  %s13 = scalar_select 0, %s12, %s10
  $region1: #{tpu_custom_call.1} parent=0
    #allocation2 [shape = 'u8[65536]{0}', space=vmem, size = 0x10000, scoped, tag = 'input window, operand 7, single buffered']
    #allocation3 [shape = 's32[1]{0}', space=sflag, size = 0x4, scoped, tag = 'scoped memory for tpu_custom_call.1']
    #allocation4 [shape = 's32[1]{0}', space=sflag, size = 0x4, scoped, tag = 'scoped memory for tpu_custom_call.1']
    #allocation5 [shape = 'u8[512]{0}', space=vmem, size = 0x400, scoped, tag = 'output window, operand 0, single buffered']
    %14 = vsyncpa [#allocation3], 0
    %15 = vsyncpa [#allocation4], 0
    // Predicated region
    $region2: #{tpu_custom_call.1} parent=1 // pred_check
      _
    $region3: #{tpu_custom_call.1} parent=1 // pred_check_branch
      %17 = sbr.rel (0) target = $region5
    $region4: #{tpu_custom_call.1} parent=1 // pred_region
      _
    $region5: #{tpu_custom_call.1} parent=1 // pred_fallthru
      _
    // Predicated region
    $region6: #{tpu_custom_call.1} parent=1 // pred_check
      _
    $region7: #{tpu_custom_call.1} parent=1 // pred_check_branch
      %19 = sbr.rel (0) target = $region9
    $region8: #{tpu_custom_call.1} parent=1 // pred_region
      _
    $region9: #{tpu_custom_call.1} parent=1 // pred_fallthru
      _
    // Predicated region
    $region10: #{tpu_custom_call.1} parent=1 // pred_check
      _
    $region11: #{tpu_custom_call.1} parent=1 // pred_check_branch
      %21 = sbr.rel (0) target = $region13
    $region12: #{tpu_custom_call.1} parent=1 // pred_region
      _
    $region13: #{tpu_custom_call.1} parent=1 // pred_fallthru
      _
    // Predicated region
    $region14: #{tpu_custom_call.1} parent=1 // pred_check
      _
    $region15: #{tpu_custom_call.1} parent=1 // pred_check_branch
      %23 = sbr.rel (0) target = $region17
    $region16: #{tpu_custom_call.1} parent=1 // pred_region
      _
    $region17: #{tpu_custom_call.1} parent=1 // pred_fallthru
      _
    // Predicated region
    $region18: #{tpu_custom_call.1} parent=1 // pred_check
      _
    $region19: #{tpu_custom_call.1} parent=1 // pred_check_branch
      %25 = sbr.rel (0) target = $region21
    $region20: #{tpu_custom_call.1} parent=1 // pred_region
      _
    $region21: #{tpu_custom_call.1} parent=1 // pred_fallthru
      _
    // Predicated region
    $region22: #{tpu_custom_call.1} parent=1 // pred_check
      _
    $region23: #{tpu_custom_call.1} parent=1 // pred_check_branch
      %27 = sbr.rel (0) target = $region25
    $region24: #{tpu_custom_call.1} parent=1 // pred_region
      _
    $region25: #{tpu_custom_call.1} parent=1 // pred_fallthru
      _
    // Predicated region
    $region26: #{tpu_custom_call.1} parent=1 // pred_check
      _
    $region27: #{tpu_custom_call.1} parent=1 // pred_check_branch
      %29 = sbr.rel (0) target = $region29
    $region28: #{tpu_custom_call.1} parent=1 // pred_region
      _
    $region29: #{tpu_custom_call.1} parent=1 // pred_fallthru
      _
    // Predicated region
    $region30: #{tpu_custom_call.1} parent=1 // pred_check
      _
    $region31: #{tpu_custom_call.1} parent=1 // pred_check_branch
      %31 = sbr.rel (0) target = $region33
    $region32: #{tpu_custom_call.1} parent=1 // pred_region
      %33 = vsyncadd [#allocation3], 0
      %s34 = sshll.u32 %s7, 4
      %s35 = int_to_ptr.hbm [resolvable:$true] %s34
      %s36 = sshll.u32 [#allocation2], 4
      %s37 = int_to_ptr.vmem [resolvable:$true] %s36
      %42 = dma.hbm_to_vmem [thread:$0]  %s35, 2048, %s37, [#allocation3], 128, 128, 8
    $region33: #{tpu_custom_call.1} parent=1 // pred_fallthru
      _
    // Predicated region
    $region34: #{tpu_custom_call.1} parent=1 // pred_check
      _
    $region35: #{tpu_custom_call.1} parent=1 // pred_check_branch
      %44 = sbr.rel (0) target = $region37
    $region36: #{tpu_custom_call.1} parent=1 // pred_region
      _
    $region37: #{tpu_custom_call.1} parent=1 // pred_fallthru
      _
    // Predicated region
    $region38: #{tpu_custom_call.1} parent=1 // pred_check
      _
    $region39: #{tpu_custom_call.1} parent=1 // pred_check_branch
      %46 = sbr.rel (0) target = $region41
    $region40: #{tpu_custom_call.1} parent=1 // pred_region
      %48 = dma.done [#allocation3], 2048
    $region41: #{tpu_custom_call.1} parent=1 // pred_fallthru
      _
    %v49 = vld [vmem:[%s0] sm:$0xff]
    %v50 = vld [vmem:[%s0 + $0x8] sm:$0xff]
    %v51 = vld [vmem:[%s0 + $0x10] sm:$0xff]
    %v52 = vld [vmem:[%s0 + $0x18] sm:$0xff]
    %v53 = vld [vmem:[%s0 + $0x20] sm:$0xff]
    %v54 = vld [vmem:[%s0 + $0x28] sm:$0xff]
    %v55 = vld [vmem:[%s0 + $0x30] sm:$0xff]
    %v56 = vld [vmem:[%s0 + $0x38] sm:$0xff]
    %v57 = vld [vmem:[%s0 + $0x40] sm:$0xff]
    %v58 = vld [vmem:[%s0 + $0x48] sm:$0xff]
    %v59 = vld [vmem:[%s0 + $0x50] sm:$0xff]
    %v60 = vld [vmem:[%s0 + $0x58] sm:$0xff]
    %v61 = vld [vmem:[%s0 + $0x60] sm:$0xff]
    %v62 = vld [vmem:[%s0 + $0x68] sm:$0xff]
    %v63 = vld [vmem:[%s0 + $0x70] sm:$0xff]
    %v64 = vld [vmem:[%s0 + $0x78] sm:$0xff]
    %v65 = vld [vmem:[%s0 + $0x80] sm:$0xff]
    %v66 = vld [vmem:[%s0 + $0x88] sm:$0xff]
    %v67 = vld [vmem:[%s0 + $0x90] sm:$0xff]
    %v68 = vld [vmem:[%s0 + $0x98] sm:$0xff]
    %v69 = vld [vmem:[%s0 + $0xa0] sm:$0xff]
    %v70 = vld [vmem:[%s0 + $0xa8] sm:$0xff]
    %v71 = vld [vmem:[%s0 + $0xb0] sm:$0xff]
    %v72 = vld [vmem:[%s0 + $0xb8] sm:$0xff]
    %v73 = vld [vmem:[%s0 + $0xc0] sm:$0xff]
    %v74 = vld [vmem:[%s0 + $0xc8] sm:$0xff]
    %v75 = vld [vmem:[%s0 + $0xd0] sm:$0xff]
    %v76 = vld [vmem:[%s0 + $0xd8] sm:$0xff]
    %v77 = vld [vmem:[%s0 + $0xe0] sm:$0xff]
    %v78 = vld [vmem:[%s0 + $0xe8] sm:$0xff]
    %v79 = vld [vmem:[%s0 + $0xf0] sm:$0xff]
    %v80 = vld [vmem:[%s0 + $0xf8] sm:$0xff]
    %v81 = vld [vmem:[%s0 + $0x100] sm:$0xff]
    %v82 = vld [vmem:[%s0 + $0x108] sm:$0xff]
    %v83 = vld [vmem:[%s0 + $0x110] sm:$0xff]
    %v84 = vld [vmem:[%s0 + $0x118] sm:$0xff]
    %v85 = vld [vmem:[%s0 + $0x120] sm:$0xff]
    %v86 = vld [vmem:[%s0 + $0x128] sm:$0xff]
    %v87 = vld [vmem:[%s0 + $0x130] sm:$0xff]
    %v88 = vld [vmem:[%s0 + $0x138] sm:$0xff]
    %v89 = vld [vmem:[%s0 + $0x140] sm:$0xff]
    %v90 = vld [vmem:[%s0 + $0x148] sm:$0xff]
    %v91 = vld [vmem:[%s0 + $0x150] sm:$0xff]
    %v92 = vld [vmem:[%s0 + $0x158] sm:$0xff]
    %v93 = vld [vmem:[%s0 + $0x160] sm:$0xff]
    %v94 = vld [vmem:[%s0 + $0x168] sm:$0xff]
    %v95 = vld [vmem:[%s0 + $0x170] sm:$0xff]
    %v96 = vld [vmem:[%s0 + $0x178] sm:$0xff]
    %v97 = vld [vmem:[%s0 + $0x180] sm:$0xff]
    %v98 = vld [vmem:[%s0 + $0x188] sm:$0xff]
    %v99 = vld [vmem:[%s0 + $0x190] sm:$0xff]
    %v100 = vld [vmem:[%s0 + $0x198] sm:$0xff]
    %v101 = vld [vmem:[%s0 + $0x1a0] sm:$0xff]
    %v102 = vld [vmem:[%s0 + $0x1a8] sm:$0xff]
    %v103 = vld [vmem:[%s0 + $0x1b0] sm:$0xff]
    %v104 = vld [vmem:[%s0 + $0x1b8] sm:$0xff]
    %v105 = vld [vmem:[%s0 + $0x1c0] sm:$0xff]
    %v106 = vld [vmem:[%s0 + $0x1c8] sm:$0xff]
    %v107 = vld [vmem:[%s0 + $0x1d0] sm:$0xff]
    %v108 = vld [vmem:[%s0 + $0x1d8] sm:$0xff]
    %v109 = vld [vmem:[%s0 + $0x1e0] sm:$0xff]
    %v110 = vld [vmem:[%s0 + $0x1e8] sm:$0xff]
    %v111 = vld [vmem:[%s0 + $0x1f0] sm:$0xff]
    %v112 = vld [vmem:[%s0 + $0x1f8] sm:$0xff]
    %v113 = vld [vmem:[%s1] sm:$0xff]
    %v114 = vld [vmem:[%s1 + $0x8] sm:$0xff]
    %v115 = vld [vmem:[%s1 + $0x10] sm:$0xff]
    %v116 = vld [vmem:[%s3] sm:$0x7]
    %v118 = vperm.slane %v116, 0
    %v119 = vperm.slane %v116, 1
    %v120 = vperm.slane %v116, 2
    %vm124 = vcmask 64512
    %v126 = vsel %vm124, %v49, 0
    %v129 = vsel %vm124, %v50, 0
    %v132 = vsel %vm124, %v51, 0
    %v135 = vsel %vm124, %v52, 0
    %v138 = vsel %vm124, %v53, 0
    %v141 = vsel %vm124, %v54, 0
    %v144 = vsel %vm124, %v55, 0
    %v147 = vsel %vm124, %v56, 0
    %v150 = vsel %vm124, %v57, 0
    %v153 = vsel %vm124, %v58, 0
    %v156 = vsel %vm124, %v59, 0
    %v159 = vsel %vm124, %v60, 0
    %v162 = vsel %vm124, %v61, 0
    %v165 = vsel %vm124, %v62, 0
    %v168 = vsel %vm124, %v63, 0
    %v171 = vsel %vm124, %v64, 0
    %v174 = vsel %vm124, %v65, 0
    %v177 = vsel %vm124, %v66, 0
    %v180 = vsel %vm124, %v67, 0
    %v183 = vsel %vm124, %v68, 0
    %v186 = vsel %vm124, %v69, 0
    %v189 = vsel %vm124, %v70, 0
    %v192 = vsel %vm124, %v71, 0
    %v195 = vsel %vm124, %v72, 0
    %v198 = vsel %vm124, %v73, 0
    %v201 = vsel %vm124, %v74, 0
    %v204 = vsel %vm124, %v75, 0
    %v207 = vsel %vm124, %v76, 0
    %v210 = vsel %vm124, %v77, 0
    %v213 = vsel %vm124, %v78, 0
    %v216 = vsel %vm124, %v79, 0
    %v219 = vsel %vm124, %v80, 0
    %v222 = vsel %vm124, %v81, 0
    %v225 = vsel %vm124, %v82, 0
    %v228 = vsel %vm124, %v83, 0
    %v231 = vsel %vm124, %v84, 0
    %v234 = vsel %vm124, %v85, 0
    %v237 = vsel %vm124, %v86, 0
    %v240 = vsel %vm124, %v87, 0
    %v243 = vsel %vm124, %v88, 0
    %v246 = vsel %vm124, %v89, 0
    %v249 = vsel %vm124, %v90, 0
    %v252 = vsel %vm124, %v91, 0
    %v255 = vsel %vm124, %v92, 0
    %v258 = vsel %vm124, %v93, 0
    %v261 = vsel %vm124, %v94, 0
    %v264 = vsel %vm124, %v95, 0
    %v267 = vsel %vm124, %v96, 0
    %v270 = vsel %vm124, %v97, 0
    %v273 = vsel %vm124, %v98, 0
    %v276 = vsel %vm124, %v99, 0
    %v279 = vsel %vm124, %v100, 0
    %v282 = vsel %vm124, %v101, 0
    %v285 = vsel %vm124, %v102, 0
    %v288 = vsel %vm124, %v103, 0
    %v291 = vsel %vm124, %v104, 0
    %v294 = vsel %vm124, %v105, 0
    %v297 = vsel %vm124, %v106, 0
    %v300 = vsel %vm124, %v107, 0
    %v303 = vsel %vm124, %v108, 0
    %v306 = vsel %vm124, %v109, 0
    %v309 = vsel %vm124, %v110, 0
    %v312 = vsel %vm124, %v111, 0
    %v315 = vsel %vm124, %v112, 0
    %317 = vmatpush.msra.mxu0 0.0
    %318 = vmatpush.msra.mxu0 0.0
    %319 = vmatpush.msra.mxu0 0.0
    %320 = vmatpush.msra.mxu0 0.0
    %321 = vmatpush.msra.mxu0 0.0
    %322 = vmatpush.msra.mxu0 0.0
    %323 = vmatpush.msra.mxu0 0.0
    %324 = vmatpush.msra.mxu0 0.0
    %325 = vmatpush.msra.mxu0 0.0
    %326 = vmatpush.msra.mxu0 0.0
    %327 = vmatpush.msra.mxu0 0.0
    %328 = vmatpush.msra.mxu0 0.0
    %329 = vmatpush.msra.mxu0 0.0
    %330 = vmatpush.msra.mxu0 0.0
    %331 = vmatpush.msra.mxu0 0.0
    %332 = vmatpush.msra.mxu0 %v113
    %333 = vmatmul.f32.gmra.mxu0 %v126
    %v334 = vpop.f32.mrf.mxu0
    %v335 = vadd.f32 %v118, %v334
    %336 = vmatmul.f32.gmra.mxu0 %v129
    %v337 = vpop.f32.mrf.mxu0
    %v338 = vadd.f32 %v118, %v337
    %339 = vmatmul.f32.gmra.mxu0 %v132
    %v340 = vpop.f32.mrf.mxu0
    %v341 = vadd.f32 %v118, %v340
    %342 = vmatmul.f32.gmra.mxu0 %v135
    %v343 = vpop.f32.mrf.mxu0
    %v344 = vadd.f32 %v118, %v343
    %345 = vmatmul.f32.gmra.mxu0 %v138
    %v346 = vpop.f32.mrf.mxu0
    %v347 = vadd.f32 %v118, %v346
    %348 = vmatmul.f32.gmra.mxu0 %v141
    %v349 = vpop.f32.mrf.mxu0
    %v350 = vadd.f32 %v118, %v349
    %351 = vmatmul.f32.gmra.mxu0 %v144
    %v352 = vpop.f32.mrf.mxu0
    %v353 = vadd.f32 %v118, %v352
    %354 = vmatmul.f32.gmra.mxu0 %v147
    %v355 = vpop.f32.mrf.mxu0
    %v356 = vadd.f32 %v118, %v355
    %357 = vmatmul.f32.gmra.mxu0 %v150
    %v358 = vpop.f32.mrf.mxu0
    %v359 = vadd.f32 %v118, %v358
    %360 = vmatmul.f32.gmra.mxu0 %v153
    %v361 = vpop.f32.mrf.mxu0
    %v362 = vadd.f32 %v118, %v361
    %363 = vmatmul.f32.gmra.mxu0 %v156
    %v364 = vpop.f32.mrf.mxu0
    %v365 = vadd.f32 %v118, %v364
    %366 = vmatmul.f32.gmra.mxu0 %v159
    %v367 = vpop.f32.mrf.mxu0
    %v368 = vadd.f32 %v118, %v367
    %369 = vmatmul.f32.gmra.mxu0 %v162
    %v370 = vpop.f32.mrf.mxu0
    %v371 = vadd.f32 %v118, %v370
    %372 = vmatmul.f32.gmra.mxu0 %v165
    %v373 = vpop.f32.mrf.mxu0
    %v374 = vadd.f32 %v118, %v373
    %375 = vmatmul.f32.gmra.mxu0 %v168
    %v376 = vpop.f32.mrf.mxu0
    %v377 = vadd.f32 %v118, %v376
    %378 = vmatmul.f32.gmra.mxu0 %v171
    %v379 = vpop.f32.mrf.mxu0
    %v380 = vadd.f32 %v118, %v379
    %381 = vmatmul.f32.gmra.mxu0 %v174
    %v382 = vpop.f32.mrf.mxu0
    %v383 = vadd.f32 %v118, %v382
    %384 = vmatmul.f32.gmra.mxu0 %v177
    %v385 = vpop.f32.mrf.mxu0
    %v386 = vadd.f32 %v118, %v385
    %387 = vmatmul.f32.gmra.mxu0 %v180
    %v388 = vpop.f32.mrf.mxu0
    %v389 = vadd.f32 %v118, %v388
    %390 = vmatmul.f32.gmra.mxu0 %v183
    %v391 = vpop.f32.mrf.mxu0
    %v392 = vadd.f32 %v118, %v391
    %393 = vmatmul.f32.gmra.mxu0 %v186
    %v394 = vpop.f32.mrf.mxu0
    %v395 = vadd.f32 %v118, %v394
    %396 = vmatmul.f32.gmra.mxu0 %v189
    %v397 = vpop.f32.mrf.mxu0
    %v398 = vadd.f32 %v118, %v397
    %399 = vmatmul.f32.gmra.mxu0 %v192
    %v400 = vpop.f32.mrf.mxu0
    %v401 = vadd.f32 %v118, %v400
    %402 = vmatmul.f32.gmra.mxu0 %v195
    %v403 = vpop.f32.mrf.mxu0
    %v404 = vadd.f32 %v118, %v403
    %405 = vmatmul.f32.gmra.mxu0 %v198
    %v406 = vpop.f32.mrf.mxu0
    %v407 = vadd.f32 %v118, %v406
    %408 = vmatmul.f32.gmra.mxu0 %v201
    %v409 = vpop.f32.mrf.mxu0
    %v410 = vadd.f32 %v118, %v409
    %411 = vmatmul.f32.gmra.mxu0 %v204
    %v412 = vpop.f32.mrf.mxu0
    %v413 = vadd.f32 %v118, %v412
    %414 = vmatmul.f32.gmra.mxu0 %v207
    %v415 = vpop.f32.mrf.mxu0
    %v416 = vadd.f32 %v118, %v415
    %417 = vmatmul.f32.gmra.mxu0 %v210
    %v418 = vpop.f32.mrf.mxu0
    %v419 = vadd.f32 %v118, %v418
    %420 = vmatmul.f32.gmra.mxu0 %v213
    %v421 = vpop.f32.mrf.mxu0
    %v422 = vadd.f32 %v118, %v421
    %423 = vmatmul.f32.gmra.mxu0 %v216
    %v424 = vpop.f32.mrf.mxu0
    %v425 = vadd.f32 %v118, %v424
    %426 = vmatmul.f32.gmra.mxu0 %v219
    %v427 = vpop.f32.mrf.mxu0
    %v428 = vadd.f32 %v118, %v427
    %429 = vmatmul.f32.gmra.mxu0 %v222
    %v430 = vpop.f32.mrf.mxu0
    %v431 = vadd.f32 %v118, %v430
    %432 = vmatmul.f32.gmra.mxu0 %v225
    %v433 = vpop.f32.mrf.mxu0
    %v434 = vadd.f32 %v118, %v433
    %435 = vmatmul.f32.gmra.mxu0 %v228
    %v436 = vpop.f32.mrf.mxu0
    %v437 = vadd.f32 %v118, %v436
    %438 = vmatmul.f32.gmra.mxu0 %v231
    %v439 = vpop.f32.mrf.mxu0
    %v440 = vadd.f32 %v118, %v439
    %441 = vmatmul.f32.gmra.mxu0 %v234
    %v442 = vpop.f32.mrf.mxu0
    %v443 = vadd.f32 %v118, %v442
    %444 = vmatmul.f32.gmra.mxu0 %v237
    %v445 = vpop.f32.mrf.mxu0
    %v446 = vadd.f32 %v118, %v445
    %447 = vmatmul.f32.gmra.mxu0 %v240
    %v448 = vpop.f32.mrf.mxu0
    %v449 = vadd.f32 %v118, %v448
    %450 = vmatmul.f32.gmra.mxu0 %v243
    %v451 = vpop.f32.mrf.mxu0
    %v452 = vadd.f32 %v118, %v451
    %453 = vmatmul.f32.gmra.mxu0 %v246
    %v454 = vpop.f32.mrf.mxu0
    %v455 = vadd.f32 %v118, %v454
    %456 = vmatmul.f32.gmra.mxu0 %v249
    %v457 = vpop.f32.mrf.mxu0
    %v458 = vadd.f32 %v118, %v457
    %459 = vmatmul.f32.gmra.mxu0 %v252
    %v460 = vpop.f32.mrf.mxu0
    %v461 = vadd.f32 %v118, %v460
    %462 = vmatmul.f32.gmra.mxu0 %v255
    %v463 = vpop.f32.mrf.mxu0
    %v464 = vadd.f32 %v118, %v463
    %465 = vmatmul.f32.gmra.mxu0 %v258
    %v466 = vpop.f32.mrf.mxu0
    %v467 = vadd.f32 %v118, %v466
    %468 = vmatmul.f32.gmra.mxu0 %v261
    %v469 = vpop.f32.mrf.mxu0
    %v470 = vadd.f32 %v118, %v469
    %471 = vmatmul.f32.gmra.mxu0 %v264
    %v472 = vpop.f32.mrf.mxu0
    %v473 = vadd.f32 %v118, %v472
    %474 = vmatmul.f32.gmra.mxu0 %v267
    %v475 = vpop.f32.mrf.mxu0
    %v476 = vadd.f32 %v118, %v475
    %477 = vmatmul.f32.gmra.mxu0 %v270
    %v478 = vpop.f32.mrf.mxu0
    %v479 = vadd.f32 %v118, %v478
    %480 = vmatmul.f32.gmra.mxu0 %v273
    %v481 = vpop.f32.mrf.mxu0
    %v482 = vadd.f32 %v118, %v481
    %483 = vmatmul.f32.gmra.mxu0 %v276
    %v484 = vpop.f32.mrf.mxu0
    %v485 = vadd.f32 %v118, %v484
    %486 = vmatmul.f32.gmra.mxu0 %v279
    %v487 = vpop.f32.mrf.mxu0
    %v488 = vadd.f32 %v118, %v487
    %489 = vmatmul.f32.gmra.mxu0 %v282
    %v490 = vpop.f32.mrf.mxu0
    %v491 = vadd.f32 %v118, %v490
    %492 = vmatmul.f32.gmra.mxu0 %v285
    %v493 = vpop.f32.mrf.mxu0
    %v494 = vadd.f32 %v118, %v493
    %495 = vmatmul.f32.gmra.mxu0 %v288
    %v496 = vpop.f32.mrf.mxu0
    %v497 = vadd.f32 %v118, %v496
    %498 = vmatmul.f32.gmra.mxu0 %v291
    %v499 = vpop.f32.mrf.mxu0
    %v500 = vadd.f32 %v118, %v499
    %501 = vmatmul.f32.gmra.mxu0 %v294
    %v502 = vpop.f32.mrf.mxu0
    %v503 = vadd.f32 %v118, %v502
    %504 = vmatmul.f32.gmra.mxu0 %v297
    %v505 = vpop.f32.mrf.mxu0
    %v506 = vadd.f32 %v118, %v505
    %507 = vmatmul.f32.gmra.mxu0 %v300
    %v508 = vpop.f32.mrf.mxu0
    %v509 = vadd.f32 %v118, %v508
    %510 = vmatmul.f32.gmra.mxu0 %v303
    %v511 = vpop.f32.mrf.mxu0
    %v512 = vadd.f32 %v118, %v511
    %513 = vmatmul.f32.gmra.mxu0 %v306
    %v514 = vpop.f32.mrf.mxu0
    %v515 = vadd.f32 %v118, %v514
    %516 = vmatmul.f32.gmra.mxu0 %v309
    %v517 = vpop.f32.mrf.mxu0
    %v518 = vadd.f32 %v118, %v517
    %519 = vmatmul.f32.gmra.mxu0 %v312
    %v520 = vpop.f32.mrf.mxu0
    %v521 = vadd.f32 %v118, %v520
    %522 = vmatmul.f32.gmra.mxu0 %v315
    %v523 = vpop.f32.mrf.mxu0
    %v524 = vadd.f32 %v118, %v523
    %525 = vdwg.mxu0
    %526 = vmatpush.msra.mxu0 0.0
    %527 = vmatpush.msra.mxu0 0.0
    %528 = vmatpush.msra.mxu0 0.0
    %529 = vmatpush.msra.mxu0 0.0
    %530 = vmatpush.msra.mxu0 0.0
    %531 = vmatpush.msra.mxu0 0.0
    %532 = vmatpush.msra.mxu0 0.0
    %533 = vmatpush.msra.mxu0 0.0
    %534 = vmatpush.msra.mxu0 0.0
    %535 = vmatpush.msra.mxu0 0.0
    %536 = vmatpush.msra.mxu0 0.0
    %537 = vmatpush.msra.mxu0 0.0
    %538 = vmatpush.msra.mxu0 0.0
    %539 = vmatpush.msra.mxu0 0.0
    %540 = vmatpush.msra.mxu0 0.0
    %541 = vmatpush.msra.mxu0 %v114
    %542 = vmatmul.f32.gmra.mxu0 %v126
    %v543 = vpop.f32.mrf.mxu0
    %v544 = vadd.f32 %v119, %v543
    %545 = vmatmul.f32.gmra.mxu0 %v129
    %v546 = vpop.f32.mrf.mxu0
    %v547 = vadd.f32 %v119, %v546
    %548 = vmatmul.f32.gmra.mxu0 %v132
    %v549 = vpop.f32.mrf.mxu0
    %v550 = vadd.f32 %v119, %v549
    %551 = vmatmul.f32.gmra.mxu0 %v135
    %v552 = vpop.f32.mrf.mxu0
    %v553 = vadd.f32 %v119, %v552
    %554 = vmatmul.f32.gmra.mxu0 %v138
    %v555 = vpop.f32.mrf.mxu0
    %v556 = vadd.f32 %v119, %v555
    %557 = vmatmul.f32.gmra.mxu0 %v141
    %v558 = vpop.f32.mrf.mxu0
    %v559 = vadd.f32 %v119, %v558
    %560 = vmatmul.f32.gmra.mxu0 %v144
    %v561 = vpop.f32.mrf.mxu0
    %v562 = vadd.f32 %v119, %v561
    %563 = vmatmul.f32.gmra.mxu0 %v147
    %v564 = vpop.f32.mrf.mxu0
    %v565 = vadd.f32 %v119, %v564
    %566 = vmatmul.f32.gmra.mxu0 %v150
    %v567 = vpop.f32.mrf.mxu0
    %v568 = vadd.f32 %v119, %v567
    %569 = vmatmul.f32.gmra.mxu0 %v153
    %v570 = vpop.f32.mrf.mxu0
    %v571 = vadd.f32 %v119, %v570
    %572 = vmatmul.f32.gmra.mxu0 %v156
    %v573 = vpop.f32.mrf.mxu0
    %v574 = vadd.f32 %v119, %v573
    %575 = vmatmul.f32.gmra.mxu0 %v159
    %v576 = vpop.f32.mrf.mxu0
    %v577 = vadd.f32 %v119, %v576
    %578 = vmatmul.f32.gmra.mxu0 %v162
    %v579 = vpop.f32.mrf.mxu0
    %v580 = vadd.f32 %v119, %v579
    %581 = vmatmul.f32.gmra.mxu0 %v165
    %v582 = vpop.f32.mrf.mxu0
    %v583 = vadd.f32 %v119, %v582
    %584 = vmatmul.f32.gmra.mxu0 %v168
    %v585 = vpop.f32.mrf.mxu0
    %v586 = vadd.f32 %v119, %v585
    %587 = vmatmul.f32.gmra.mxu0 %v171
    %v588 = vpop.f32.mrf.mxu0
    %v589 = vadd.f32 %v119, %v588
    %590 = vmatmul.f32.gmra.mxu0 %v174
    %v591 = vpop.f32.mrf.mxu0
    %v592 = vadd.f32 %v119, %v591
    %593 = vmatmul.f32.gmra.mxu0 %v177
    %v594 = vpop.f32.mrf.mxu0
    %v595 = vadd.f32 %v119, %v594
    %596 = vmatmul.f32.gmra.mxu0 %v180
    %v597 = vpop.f32.mrf.mxu0
    %v598 = vadd.f32 %v119, %v597
    %599 = vmatmul.f32.gmra.mxu0 %v183
    %v600 = vpop.f32.mrf.mxu0
    %v601 = vadd.f32 %v119, %v600
    %602 = vmatmul.f32.gmra.mxu0 %v186
    %v603 = vpop.f32.mrf.mxu0
    %v604 = vadd.f32 %v119, %v603
    %605 = vmatmul.f32.gmra.mxu0 %v189
    %v606 = vpop.f32.mrf.mxu0
    %v607 = vadd.f32 %v119, %v606
    %608 = vmatmul.f32.gmra.mxu0 %v192
    %v609 = vpop.f32.mrf.mxu0
    %v610 = vadd.f32 %v119, %v609
    %611 = vmatmul.f32.gmra.mxu0 %v195
    %v612 = vpop.f32.mrf.mxu0
    %v613 = vadd.f32 %v119, %v612
    %614 = vmatmul.f32.gmra.mxu0 %v198
    %v615 = vpop.f32.mrf.mxu0
    %v616 = vadd.f32 %v119, %v615
    %617 = vmatmul.f32.gmra.mxu0 %v201
    %v618 = vpop.f32.mrf.mxu0
    %v619 = vadd.f32 %v119, %v618
    %620 = vmatmul.f32.gmra.mxu0 %v204
    %v621 = vpop.f32.mrf.mxu0
    %v622 = vadd.f32 %v119, %v621
    %623 = vmatmul.f32.gmra.mxu0 %v207
    %v624 = vpop.f32.mrf.mxu0
    %v625 = vadd.f32 %v119, %v624
    %626 = vmatmul.f32.gmra.mxu0 %v210
    %v627 = vpop.f32.mrf.mxu0
    %v628 = vadd.f32 %v119, %v627
    %629 = vmatmul.f32.gmra.mxu0 %v213
    %v630 = vpop.f32.mrf.mxu0
    %v631 = vadd.f32 %v119, %v630
    %632 = vmatmul.f32.gmra.mxu0 %v216
    %v633 = vpop.f32.mrf.mxu0
    %v634 = vadd.f32 %v119, %v633
    %635 = vmatmul.f32.gmra.mxu0 %v219
    %v636 = vpop.f32.mrf.mxu0
    %v637 = vadd.f32 %v119, %v636
    %638 = vmatmul.f32.gmra.mxu0 %v222
    %v639 = vpop.f32.mrf.mxu0
    %v640 = vadd.f32 %v119, %v639
    %641 = vmatmul.f32.gmra.mxu0 %v225
    %v642 = vpop.f32.mrf.mxu0
    %v643 = vadd.f32 %v119, %v642
    %644 = vmatmul.f32.gmra.mxu0 %v228
    %v645 = vpop.f32.mrf.mxu0
    %v646 = vadd.f32 %v119, %v645
    %647 = vmatmul.f32.gmra.mxu0 %v231
    %v648 = vpop.f32.mrf.mxu0
    %v649 = vadd.f32 %v119, %v648
    %650 = vmatmul.f32.gmra.mxu0 %v234
    %v651 = vpop.f32.mrf.mxu0
    %v652 = vadd.f32 %v119, %v651
    %653 = vmatmul.f32.gmra.mxu0 %v237
    %v654 = vpop.f32.mrf.mxu0
    %v655 = vadd.f32 %v119, %v654
    %656 = vmatmul.f32.gmra.mxu0 %v240
    %v657 = vpop.f32.mrf.mxu0
    %v658 = vadd.f32 %v119, %v657
    %659 = vmatmul.f32.gmra.mxu0 %v243
    %v660 = vpop.f32.mrf.mxu0
    %v661 = vadd.f32 %v119, %v660
    %662 = vmatmul.f32.gmra.mxu0 %v246
    %v663 = vpop.f32.mrf.mxu0
    %v664 = vadd.f32 %v119, %v663
    %665 = vmatmul.f32.gmra.mxu0 %v249
    %v666 = vpop.f32.mrf.mxu0
    %v667 = vadd.f32 %v119, %v666
    %668 = vmatmul.f32.gmra.mxu0 %v252
    %v669 = vpop.f32.mrf.mxu0
    %v670 = vadd.f32 %v119, %v669
    %671 = vmatmul.f32.gmra.mxu0 %v255
    %v672 = vpop.f32.mrf.mxu0
    %v673 = vadd.f32 %v119, %v672
    %674 = vmatmul.f32.gmra.mxu0 %v258
    %v675 = vpop.f32.mrf.mxu0
    %v676 = vadd.f32 %v119, %v675
    %677 = vmatmul.f32.gmra.mxu0 %v261
    %v678 = vpop.f32.mrf.mxu0
    %v679 = vadd.f32 %v119, %v678
    %680 = vmatmul.f32.gmra.mxu0 %v264
    %v681 = vpop.f32.mrf.mxu0
    %v682 = vadd.f32 %v119, %v681
    %683 = vmatmul.f32.gmra.mxu0 %v267
    %v684 = vpop.f32.mrf.mxu0
    %v685 = vadd.f32 %v119, %v684
    %686 = vmatmul.f32.gmra.mxu0 %v270
    %v687 = vpop.f32.mrf.mxu0
    %v688 = vadd.f32 %v119, %v687
    %689 = vmatmul.f32.gmra.mxu0 %v273
    %v690 = vpop.f32.mrf.mxu0
    %v691 = vadd.f32 %v119, %v690
    %692 = vmatmul.f32.gmra.mxu0 %v276
    %v693 = vpop.f32.mrf.mxu0
    %v694 = vadd.f32 %v119, %v693
    %695 = vmatmul.f32.gmra.mxu0 %v279
    %v696 = vpop.f32.mrf.mxu0
    %v697 = vadd.f32 %v119, %v696
    %698 = vmatmul.f32.gmra.mxu0 %v282
    %v699 = vpop.f32.mrf.mxu0
    %v700 = vadd.f32 %v119, %v699
    %701 = vmatmul.f32.gmra.mxu0 %v285
    %v702 = vpop.f32.mrf.mxu0
    %v703 = vadd.f32 %v119, %v702
    %704 = vmatmul.f32.gmra.mxu0 %v288
    %v705 = vpop.f32.mrf.mxu0
    %v706 = vadd.f32 %v119, %v705
    %707 = vmatmul.f32.gmra.mxu0 %v291
    %v708 = vpop.f32.mrf.mxu0
    %v709 = vadd.f32 %v119, %v708
    %710 = vmatmul.f32.gmra.mxu0 %v294
    %v711 = vpop.f32.mrf.mxu0
    %v712 = vadd.f32 %v119, %v711
    %713 = vmatmul.f32.gmra.mxu0 %v297
    %v714 = vpop.f32.mrf.mxu0
    %v715 = vadd.f32 %v119, %v714
    %716 = vmatmul.f32.gmra.mxu0 %v300
    %v717 = vpop.f32.mrf.mxu0
    %v718 = vadd.f32 %v119, %v717
    %719 = vmatmul.f32.gmra.mxu0 %v303
    %v720 = vpop.f32.mrf.mxu0
    %v721 = vadd.f32 %v119, %v720
    %722 = vmatmul.f32.gmra.mxu0 %v306
    %v723 = vpop.f32.mrf.mxu0
    %v724 = vadd.f32 %v119, %v723
    %725 = vmatmul.f32.gmra.mxu0 %v309
    %v726 = vpop.f32.mrf.mxu0
    %v727 = vadd.f32 %v119, %v726
    %728 = vmatmul.f32.gmra.mxu0 %v312
    %v729 = vpop.f32.mrf.mxu0
    %v730 = vadd.f32 %v119, %v729
    %731 = vmatmul.f32.gmra.mxu0 %v315
    %v732 = vpop.f32.mrf.mxu0
    %v733 = vadd.f32 %v119, %v732
    %734 = vdwg.mxu0
    %735 = vmatpush.msra.mxu0 0.0
    %736 = vmatpush.msra.mxu0 0.0
    %737 = vmatpush.msra.mxu0 0.0
    %738 = vmatpush.msra.mxu0 0.0
    %739 = vmatpush.msra.mxu0 0.0
    %740 = vmatpush.msra.mxu0 0.0
    %741 = vmatpush.msra.mxu0 0.0
    %742 = vmatpush.msra.mxu0 0.0
    %743 = vmatpush.msra.mxu0 0.0
    %744 = vmatpush.msra.mxu0 0.0
    %745 = vmatpush.msra.mxu0 0.0
    %746 = vmatpush.msra.mxu0 0.0
    %747 = vmatpush.msra.mxu0 0.0
    %748 = vmatpush.msra.mxu0 0.0
    %749 = vmatpush.msra.mxu0 0.0
    %750 = vmatpush.msra.mxu0 %v115
    %751 = vmatmul.f32.gmra.mxu0 %v126
    %v752 = vpop.f32.mrf.mxu0
    %v753 = vadd.f32 %v120, %v752
    %754 = vmatmul.f32.gmra.mxu0 %v129
    %v755 = vpop.f32.mrf.mxu0
    %v756 = vadd.f32 %v120, %v755
    %757 = vmatmul.f32.gmra.mxu0 %v132
    %v758 = vpop.f32.mrf.mxu0
    %v759 = vadd.f32 %v120, %v758
    %760 = vmatmul.f32.gmra.mxu0 %v135
    %v761 = vpop.f32.mrf.mxu0
    %v762 = vadd.f32 %v120, %v761
    %763 = vmatmul.f32.gmra.mxu0 %v138
    %v764 = vpop.f32.mrf.mxu0
    %v765 = vadd.f32 %v120, %v764
    %766 = vmatmul.f32.gmra.mxu0 %v141
    %v767 = vpop.f32.mrf.mxu0
    %v768 = vadd.f32 %v120, %v767
    %769 = vmatmul.f32.gmra.mxu0 %v144
    %v770 = vpop.f32.mrf.mxu0
    %v771 = vadd.f32 %v120, %v770
    %772 = vmatmul.f32.gmra.mxu0 %v147
    %v773 = vpop.f32.mrf.mxu0
    %v774 = vadd.f32 %v120, %v773
    %775 = vmatmul.f32.gmra.mxu0 %v150
    %v776 = vpop.f32.mrf.mxu0
    %v777 = vadd.f32 %v120, %v776
    %778 = vmatmul.f32.gmra.mxu0 %v153
    %v779 = vpop.f32.mrf.mxu0
    %v780 = vadd.f32 %v120, %v779
    %781 = vmatmul.f32.gmra.mxu0 %v156
    %v782 = vpop.f32.mrf.mxu0
    %v783 = vadd.f32 %v120, %v782
    %784 = vmatmul.f32.gmra.mxu0 %v159
    %v785 = vpop.f32.mrf.mxu0
    %v786 = vadd.f32 %v120, %v785
    %787 = vmatmul.f32.gmra.mxu0 %v162
    %v788 = vpop.f32.mrf.mxu0
    %v789 = vadd.f32 %v120, %v788
    %790 = vmatmul.f32.gmra.mxu0 %v165
    %v791 = vpop.f32.mrf.mxu0
    %v792 = vadd.f32 %v120, %v791
    %793 = vmatmul.f32.gmra.mxu0 %v168
    %v794 = vpop.f32.mrf.mxu0
    %v795 = vadd.f32 %v120, %v794
    %796 = vmatmul.f32.gmra.mxu0 %v171
    %v797 = vpop.f32.mrf.mxu0
    %v798 = vadd.f32 %v120, %v797
    %799 = vmatmul.f32.gmra.mxu0 %v174
    %v800 = vpop.f32.mrf.mxu0
    %v801 = vadd.f32 %v120, %v800
    %802 = vmatmul.f32.gmra.mxu0 %v177
    %v803 = vpop.f32.mrf.mxu0
    %v804 = vadd.f32 %v120, %v803
    %805 = vmatmul.f32.gmra.mxu0 %v180
    %v806 = vpop.f32.mrf.mxu0
    %v807 = vadd.f32 %v120, %v806
    %808 = vmatmul.f32.gmra.mxu0 %v183
    %v809 = vpop.f32.mrf.mxu0
    %v810 = vadd.f32 %v120, %v809
    %811 = vmatmul.f32.gmra.mxu0 %v186
    %v812 = vpop.f32.mrf.mxu0
    %v813 = vadd.f32 %v120, %v812
    %814 = vmatmul.f32.gmra.mxu0 %v189
    %v815 = vpop.f32.mrf.mxu0
    %v816 = vadd.f32 %v120, %v815
    %817 = vmatmul.f32.gmra.mxu0 %v192
    %v818 = vpop.f32.mrf.mxu0
    %v819 = vadd.f32 %v120, %v818
    %820 = vmatmul.f32.gmra.mxu0 %v195
    %v821 = vpop.f32.mrf.mxu0
    %v822 = vadd.f32 %v120, %v821
    %823 = vmatmul.f32.gmra.mxu0 %v198
    %v824 = vpop.f32.mrf.mxu0
    %v825 = vadd.f32 %v120, %v824
    %826 = vmatmul.f32.gmra.mxu0 %v201
    %v827 = vpop.f32.mrf.mxu0
    %v828 = vadd.f32 %v120, %v827
    %829 = vmatmul.f32.gmra.mxu0 %v204
    %v830 = vpop.f32.mrf.mxu0
    %v831 = vadd.f32 %v120, %v830
    %832 = vmatmul.f32.gmra.mxu0 %v207
    %v833 = vpop.f32.mrf.mxu0
    %v834 = vadd.f32 %v120, %v833
    %835 = vmatmul.f32.gmra.mxu0 %v210
    %v836 = vpop.f32.mrf.mxu0
    %v837 = vadd.f32 %v120, %v836
    %838 = vmatmul.f32.gmra.mxu0 %v213
    %v839 = vpop.f32.mrf.mxu0
    %v840 = vadd.f32 %v120, %v839
    %841 = vmatmul.f32.gmra.mxu0 %v216
    %v842 = vpop.f32.mrf.mxu0
    %v843 = vadd.f32 %v120, %v842
    %844 = vmatmul.f32.gmra.mxu0 %v219
    %v845 = vpop.f32.mrf.mxu0
    %v846 = vadd.f32 %v120, %v845
    %847 = vmatmul.f32.gmra.mxu0 %v222
    %v848 = vpop.f32.mrf.mxu0
    %v849 = vadd.f32 %v120, %v848
    %850 = vmatmul.f32.gmra.mxu0 %v225
    %v851 = vpop.f32.mrf.mxu0
    %v852 = vadd.f32 %v120, %v851
    %853 = vmatmul.f32.gmra.mxu0 %v228
    %v854 = vpop.f32.mrf.mxu0
    %v855 = vadd.f32 %v120, %v854
    %856 = vmatmul.f32.gmra.mxu0 %v231
    %v857 = vpop.f32.mrf.mxu0
    %v858 = vadd.f32 %v120, %v857
    %859 = vmatmul.f32.gmra.mxu0 %v234
    %v860 = vpop.f32.mrf.mxu0
    %v861 = vadd.f32 %v120, %v860
    %862 = vmatmul.f32.gmra.mxu0 %v237
    %v863 = vpop.f32.mrf.mxu0
    %v864 = vadd.f32 %v120, %v863
    %865 = vmatmul.f32.gmra.mxu0 %v240
    %v866 = vpop.f32.mrf.mxu0
    %v867 = vadd.f32 %v120, %v866
    %868 = vmatmul.f32.gmra.mxu0 %v243
    %v869 = vpop.f32.mrf.mxu0
    %v870 = vadd.f32 %v120, %v869
    %871 = vmatmul.f32.gmra.mxu0 %v246
    %v872 = vpop.f32.mrf.mxu0
    %v873 = vadd.f32 %v120, %v872
    %874 = vmatmul.f32.gmra.mxu0 %v249
    %v875 = vpop.f32.mrf.mxu0
    %v876 = vadd.f32 %v120, %v875
    %877 = vmatmul.f32.gmra.mxu0 %v252
    %v878 = vpop.f32.mrf.mxu0
    %v879 = vadd.f32 %v120, %v878
    %880 = vmatmul.f32.gmra.mxu0 %v255
    %v881 = vpop.f32.mrf.mxu0
    %v882 = vadd.f32 %v120, %v881
    %883 = vmatmul.f32.gmra.mxu0 %v258
    %v884 = vpop.f32.mrf.mxu0
    %v885 = vadd.f32 %v120, %v884
    %886 = vmatmul.f32.gmra.mxu0 %v261
    %v887 = vpop.f32.mrf.mxu0
    %v888 = vadd.f32 %v120, %v887
    %889 = vmatmul.f32.gmra.mxu0 %v264
    %v890 = vpop.f32.mrf.mxu0
    %v891 = vadd.f32 %v120, %v890
    %892 = vmatmul.f32.gmra.mxu0 %v267
    %v893 = vpop.f32.mrf.mxu0
    %v894 = vadd.f32 %v120, %v893
    %895 = vmatmul.f32.gmra.mxu0 %v270
    %v896 = vpop.f32.mrf.mxu0
    %v897 = vadd.f32 %v120, %v896
    %898 = vmatmul.f32.gmra.mxu0 %v273
    %v899 = vpop.f32.mrf.mxu0
    %v900 = vadd.f32 %v120, %v899
    %901 = vmatmul.f32.gmra.mxu0 %v276
    %v902 = vpop.f32.mrf.mxu0
    %v903 = vadd.f32 %v120, %v902
    %904 = vmatmul.f32.gmra.mxu0 %v279
    %v905 = vpop.f32.mrf.mxu0
    %v906 = vadd.f32 %v120, %v905
    %907 = vmatmul.f32.gmra.mxu0 %v282
    %v908 = vpop.f32.mrf.mxu0
    %v909 = vadd.f32 %v120, %v908
    %910 = vmatmul.f32.gmra.mxu0 %v285
    %v911 = vpop.f32.mrf.mxu0
    %v912 = vadd.f32 %v120, %v911
    %913 = vmatmul.f32.gmra.mxu0 %v288
    %v914 = vpop.f32.mrf.mxu0
    %v915 = vadd.f32 %v120, %v914
    %916 = vmatmul.f32.gmra.mxu0 %v291
    %v917 = vpop.f32.mrf.mxu0
    %v918 = vadd.f32 %v120, %v917
    %919 = vmatmul.f32.gmra.mxu0 %v294
    %v920 = vpop.f32.mrf.mxu0
    %v921 = vadd.f32 %v120, %v920
    %922 = vmatmul.f32.gmra.mxu0 %v297
    %v923 = vpop.f32.mrf.mxu0
    %v924 = vadd.f32 %v120, %v923
    %925 = vmatmul.f32.gmra.mxu0 %v300
    %v926 = vpop.f32.mrf.mxu0
    %v927 = vadd.f32 %v120, %v926
    %928 = vmatmul.f32.gmra.mxu0 %v303
    %v929 = vpop.f32.mrf.mxu0
    %v930 = vadd.f32 %v120, %v929
    %931 = vmatmul.f32.gmra.mxu0 %v306
    %v932 = vpop.f32.mrf.mxu0
    %v933 = vadd.f32 %v120, %v932
    %934 = vmatmul.f32.gmra.mxu0 %v309
    %v935 = vpop.f32.mrf.mxu0
    %v936 = vadd.f32 %v120, %v935
    %937 = vmatmul.f32.gmra.mxu0 %v312
    %v938 = vpop.f32.mrf.mxu0
    %v939 = vadd.f32 %v120, %v938
    %940 = vmatmul.f32.gmra.mxu0 %v315
    %v941 = vpop.f32.mrf.mxu0
    %v942 = vadd.f32 %v120, %v941
    %943 = vdwg.mxu0
    %v944 = vld [vmem:[%s2] sm:$0xff]
    %v945 = vld [vmem:[%s2 + $0x8] sm:$0xff]
    %v946 = vld [vmem:[%s2 + $0x10] sm:$0xff]
    %v947 = vld [vmem:[%s2 + $0x18] sm:$0xff]
    %v948 = vld [vmem:[%s2 + $0x20] sm:$0xff]
    %v949 = vld [vmem:[%s2 + $0x28] sm:$0xff]
    %v950 = vld [vmem:[%s2 + $0x30] sm:$0xff]
    %v951 = vld [vmem:[%s2 + $0x38] sm:$0xff]
    %v952 = vld [vmem:[%s2 + $0x40] sm:$0xff]
    %v953 = vld [vmem:[%s2 + $0x48] sm:$0xff]
    %v954 = vld [vmem:[%s2 + $0x50] sm:$0xff]
    %v955 = vld [vmem:[%s2 + $0x58] sm:$0xff]
    %v956 = vld [vmem:[%s2 + $0x60] sm:$0xff]
    %v957 = vld [vmem:[%s2 + $0x68] sm:$0xff]
    %v958 = vld [vmem:[%s2 + $0x70] sm:$0xff]
    %v959 = vld [vmem:[%s2 + $0x78] sm:$0xff]
    %v960 = vld [vmem:[%s2 + $0x80] sm:$0xff]
    %v961 = vld [vmem:[%s2 + $0x88] sm:$0xff]
    %v962 = vld [vmem:[%s2 + $0x90] sm:$0xff]
    %v963 = vld [vmem:[%s2 + $0x98] sm:$0xff]
    %v964 = vld [vmem:[%s2 + $0xa0] sm:$0xff]
    %v965 = vld [vmem:[%s2 + $0xa8] sm:$0xff]
    %v966 = vld [vmem:[%s2 + $0xb0] sm:$0xff]
    %v967 = vld [vmem:[%s2 + $0xb8] sm:$0xff]
    %v968 = vld [vmem:[%s2 + $0xc0] sm:$0xff]
    %v969 = vld [vmem:[%s2 + $0xc8] sm:$0xff]
    %v970 = vld [vmem:[%s2 + $0xd0] sm:$0xff]
    %v971 = vld [vmem:[%s2 + $0xd8] sm:$0xff]
    %v972 = vld [vmem:[%s2 + $0xe0] sm:$0xff]
    %v973 = vld [vmem:[%s2 + $0xe8] sm:$0xff]
    %v974 = vld [vmem:[%s2 + $0xf0] sm:$0xff]
    %v975 = vld [vmem:[%s2 + $0xf8] sm:$0xff]
    %v976 = vld [vmem:[%s2 + $0x100] sm:$0xff]
    %v977 = vld [vmem:[%s2 + $0x108] sm:$0xff]
    %v978 = vld [vmem:[%s2 + $0x110] sm:$0xff]
    %v979 = vld [vmem:[%s2 + $0x118] sm:$0xff]
    %v980 = vld [vmem:[%s2 + $0x120] sm:$0xff]
    %v981 = vld [vmem:[%s2 + $0x128] sm:$0xff]
    %v982 = vld [vmem:[%s2 + $0x130] sm:$0xff]
    %v983 = vld [vmem:[%s2 + $0x138] sm:$0xff]
    %v984 = vld [vmem:[%s2 + $0x140] sm:$0xff]
    %v985 = vld [vmem:[%s2 + $0x148] sm:$0xff]
    %v986 = vld [vmem:[%s2 + $0x150] sm:$0xff]
    %v987 = vld [vmem:[%s2 + $0x158] sm:$0xff]
    %v988 = vld [vmem:[%s2 + $0x160] sm:$0xff]
    %v989 = vld [vmem:[%s2 + $0x168] sm:$0xff]
    %v990 = vld [vmem:[%s2 + $0x170] sm:$0xff]
    %v991 = vld [vmem:[%s2 + $0x178] sm:$0xff]
    %v992 = vld [vmem:[%s4] sm:$0x1]
    %993 = vmatpush.msra.mxu0 %v989
    %994 = vmatpush.msra.mxu0 %v986
    %995 = vmatpush.msra.mxu0 %v983
    %996 = vmatpush.msra.mxu0 %v980
    %997 = vmatpush.msra.mxu0 %v977
    %998 = vmatpush.msra.mxu0 %v974
    %999 = vmatpush.msra.mxu0 %v971
    %1000 = vmatpush.msra.mxu0 %v968
    %1001 = vmatpush.msra.mxu0 %v965
    %1002 = vmatpush.msra.mxu0 %v962
    %1003 = vmatpush.msra.mxu0 %v959
    %1004 = vmatpush.msra.mxu0 %v956
    %1005 = vmatpush.msra.mxu0 %v953
    %1006 = vmatpush.msra.mxu0 %v950
    %1007 = vmatpush.msra.mxu0 %v947
    %1008 = vmatpush.msra.mxu0 %v944
    %1009 = vmatmul.f32.gmra.mxu0 0.0
    %v1010 = vpop.f32.mrf.mxu0
    %v1011 = vadd.f32 0.0, %v1010
    %1012 = vmatmul.f32.gmra.mxu0 0.0
    %v1013 = vpop.f32.mrf.mxu0
    %v1014 = vadd.f32 0.0, %v1013
    %1015 = vmatmul.f32.gmra.mxu0 0.0
    %v1016 = vpop.f32.mrf.mxu0
    %v1017 = vadd.f32 0.0, %v1016
    %1018 = vmatmul.f32.gmra.mxu0 0.0
    %v1019 = vpop.f32.mrf.mxu0
    %v1020 = vadd.f32 0.0, %v1019
    %1021 = vmatmul.f32.gmra.mxu0 0.0
    %v1022 = vpop.f32.mrf.mxu0
    %v1023 = vadd.f32 0.0, %v1022
    %1024 = vmatmul.f32.gmra.mxu0 0.0
    %v1025 = vpop.f32.mrf.mxu0
    %v1026 = vadd.f32 0.0, %v1025
    %1027 = vmatmul.f32.gmra.mxu0 0.0
    %v1028 = vpop.f32.mrf.mxu0
    %v1029 = vadd.f32 0.0, %v1028
    %1030 = vmatmul.f32.gmra.mxu0 0.0
    %v1031 = vpop.f32.mrf.mxu0
    %v1032 = vadd.f32 0.0, %v1031
    %1033 = vdwg.mxu0
    %1034 = vmatpush.msra.mxu0 %v990
    %1035 = vmatpush.msra.mxu0 %v987
    %1036 = vmatpush.msra.mxu0 %v984
    %1037 = vmatpush.msra.mxu0 %v981
    %1038 = vmatpush.msra.mxu0 %v978
    %1039 = vmatpush.msra.mxu0 %v975
    %1040 = vmatpush.msra.mxu0 %v972
    %1041 = vmatpush.msra.mxu0 %v969
    %1042 = vmatpush.msra.mxu0 %v966
    %1043 = vmatpush.msra.mxu0 %v963
    %1044 = vmatpush.msra.mxu0 %v960
    %1045 = vmatpush.msra.mxu0 %v957
    %1046 = vmatpush.msra.mxu0 %v954
    %1047 = vmatpush.msra.mxu0 %v951
    %1048 = vmatpush.msra.mxu0 %v948
    %1049 = vmatpush.msra.mxu0 %v945
    %1050 = vmatmul.f32.gmra.mxu0 0.0
    %v1051 = vpop.f32.mrf.mxu0
    %v1052 = vadd.f32 0.0, %v1051
    %1053 = vmatmul.f32.gmra.mxu0 0.0
    %v1054 = vpop.f32.mrf.mxu0
    %v1055 = vadd.f32 0.0, %v1054
    %1056 = vmatmul.f32.gmra.mxu0 0.0
    %v1057 = vpop.f32.mrf.mxu0
    %v1058 = vadd.f32 0.0, %v1057
    %1059 = vmatmul.f32.gmra.mxu0 0.0
    %v1060 = vpop.f32.mrf.mxu0
    %v1061 = vadd.f32 0.0, %v1060
    %1062 = vmatmul.f32.gmra.mxu0 0.0
    %v1063 = vpop.f32.mrf.mxu0
    %v1064 = vadd.f32 0.0, %v1063
    %1065 = vmatmul.f32.gmra.mxu0 0.0
    %v1066 = vpop.f32.mrf.mxu0
    %v1067 = vadd.f32 0.0, %v1066
    %1068 = vmatmul.f32.gmra.mxu0 0.0
    %v1069 = vpop.f32.mrf.mxu0
    %v1070 = vadd.f32 0.0, %v1069
    %1071 = vmatmul.f32.gmra.mxu0 0.0
    %v1072 = vpop.f32.mrf.mxu0
    %v1073 = vadd.f32 0.0, %v1072
    %1074 = vdwg.mxu0
    %1075 = vmatpush.msra.mxu0 %v991
    %1076 = vmatpush.msra.mxu0 %v988
    %1077 = vmatpush.msra.mxu0 %v985
    %1078 = vmatpush.msra.mxu0 %v982
    %1079 = vmatpush.msra.mxu0 %v979
    %1080 = vmatpush.msra.mxu0 %v976
    %1081 = vmatpush.msra.mxu0 %v973
    %1082 = vmatpush.msra.mxu0 %v970
    %1083 = vmatpush.msra.mxu0 %v967
    %1084 = vmatpush.msra.mxu0 %v964
    %1085 = vmatpush.msra.mxu0 %v961
    %1086 = vmatpush.msra.mxu0 %v958
    %1087 = vmatpush.msra.mxu0 %v955
    %1088 = vmatpush.msra.mxu0 %v952
    %1089 = vmatpush.msra.mxu0 %v949
    %1090 = vmatpush.msra.mxu0 %v946
    %1091 = vmatmul.f32.gmra.mxu0 0.0
    %v1092 = vpop.f32.mrf.mxu0
    %v1093 = vadd.f32 0.0, %v1092
    %1094 = vmatmul.f32.gmra.mxu0 0.0
    %v1095 = vpop.f32.mrf.mxu0
    %v1096 = vadd.f32 0.0, %v1095
    %1097 = vmatmul.f32.gmra.mxu0 0.0
    %v1098 = vpop.f32.mrf.mxu0
    %v1099 = vadd.f32 0.0, %v1098
    %1100 = vmatmul.f32.gmra.mxu0 0.0
    %v1101 = vpop.f32.mrf.mxu0
    %v1102 = vadd.f32 0.0, %v1101
    %1103 = vmatmul.f32.gmra.mxu0 0.0
    %v1104 = vpop.f32.mrf.mxu0
    %v1105 = vadd.f32 0.0, %v1104
    %1106 = vmatmul.f32.gmra.mxu0 0.0
    %v1107 = vpop.f32.mrf.mxu0
    %v1108 = vadd.f32 0.0, %v1107
    %1109 = vmatmul.f32.gmra.mxu0 0.0
    %v1110 = vpop.f32.mrf.mxu0
    %v1111 = vadd.f32 0.0, %v1110
    %1112 = vmatmul.f32.gmra.mxu0 0.0
    %v1113 = vpop.f32.mrf.mxu0
    %v1114 = vadd.f32 0.0, %v1113
    %1115 = vdwg.mxu0
    %v1116 = vadd.f32 %v335, %v1011
    %v1117 = vadd.f32 %v338, %v1014
    %v1118 = vadd.f32 %v341, %v1017
    %v1119 = vadd.f32 %v344, %v1020
    %v1120 = vadd.f32 %v347, %v1023
    %v1121 = vadd.f32 %v350, %v1026
    %v1122 = vadd.f32 %v353, %v1029
    %v1123 = vadd.f32 %v356, %v1032
    %v1124 = vxor.u32 %v1116, 2147483648
    %v1125 = vxor.u32 %v1117, 2147483648
    %v1126 = vxor.u32 %v1118, 2147483648
    %v1127 = vxor.u32 %v1119, 2147483648
    %v1128 = vxor.u32 %v1120, 2147483648
    %v1129 = vxor.u32 %v1121, 2147483648
    %v1130 = vxor.u32 %v1122, 2147483648
    %v1131 = vxor.u32 %v1123, 2147483648
    %v1132 = vmul.f32 %v1124, 1.442695
    %v1133 = vpow.pop %v1132
    %v1134 = vmul.f32 %v1125, 1.442695
    %v1135 = vpow.pop %v1134
    %v1136 = vmul.f32 %v1126, 1.442695
    %v1137 = vpow.pop %v1136
    %v1138 = vmul.f32 %v1127, 1.442695
    %v1139 = vpow.pop %v1138
    %v1140 = vmul.f32 %v1128, 1.442695
    %v1141 = vpow.pop %v1140
    %v1142 = vmul.f32 %v1129, 1.442695
    %v1143 = vpow.pop %v1142
    %v1144 = vmul.f32 %v1130, 1.442695
    %v1145 = vpow.pop %v1144
    %v1146 = vmul.f32 %v1131, 1.442695
    %v1147 = vpow.pop %v1146
    %v1148 = vadd.f32 %v1133, 1.0
    %v1149 = vadd.f32 %v1135, 1.0
    %v1150 = vadd.f32 %v1137, 1.0
    %v1151 = vadd.f32 %v1139, 1.0
    %v1152 = vadd.f32 %v1141, 1.0
    %v1153 = vadd.f32 %v1143, 1.0
    %v1154 = vadd.f32 %v1145, 1.0
    %v1155 = vadd.f32 %v1147, 1.0
    %v1156 = vrcp.pop %v1148
    %v1157 = vmul.f32 %v1148, %v1156
    %v1158 = vsub.f32 1.0, %v1157
    %v1159 = vmul.f32 %v1156, %v1158
    %v1160 = vadd.f32 %v1156, %v1159
    %vm1161 = vweird.f32 %v1148
    %vm1162 = vweird.f32 %v1156
    %vm1163 = vmor %vm1161, %vm1162
    %v1164 = vsel %vm1163, %v1156, %v1160
    %v1165 = vand.u32 2147483647, %v1148
    %vm1166 = vcmp.eq.f32.partialorder %v1165, 8.507059e+37
    %v1167 = vand.u32 %v1148, 2147483648
    %v1168 = vor.u32 1.1754944e-38, %v1167
    %v1169 = vsel %vm1166, %v1168, %v1164
    %v1170 = vmul.f32 1.0, %v1169
    %v1171 = vrcp.pop %v1149
    %v1172 = vmul.f32 %v1149, %v1171
    %v1173 = vsub.f32 1.0, %v1172
    %v1174 = vmul.f32 %v1171, %v1173
    %v1175 = vadd.f32 %v1171, %v1174
    %vm1176 = vweird.f32 %v1149
    %vm1177 = vweird.f32 %v1171
    %vm1178 = vmor %vm1176, %vm1177
    %v1179 = vsel %vm1178, %v1171, %v1175
    %v1180 = vand.u32 2147483647, %v1149
    %vm1181 = vcmp.eq.f32.partialorder %v1180, 8.507059e+37
    %v1182 = vand.u32 %v1149, 2147483648
    %v1183 = vor.u32 1.1754944e-38, %v1182
    %v1184 = vsel %vm1181, %v1183, %v1179
    %v1185 = vmul.f32 1.0, %v1184
    %v1186 = vrcp.pop %v1150
    %v1187 = vmul.f32 %v1150, %v1186
    %v1188 = vsub.f32 1.0, %v1187
    %v1189 = vmul.f32 %v1186, %v1188
    %v1190 = vadd.f32 %v1186, %v1189
    %vm1191 = vweird.f32 %v1150
    %vm1192 = vweird.f32 %v1186
    %vm1193 = vmor %vm1191, %vm1192
    %v1194 = vsel %vm1193, %v1186, %v1190
    %v1195 = vand.u32 2147483647, %v1150
    %vm1196 = vcmp.eq.f32.partialorder %v1195, 8.507059e+37
    %v1197 = vand.u32 %v1150, 2147483648
    %v1198 = vor.u32 1.1754944e-38, %v1197
    %v1199 = vsel %vm1196, %v1198, %v1194
    %v1200 = vmul.f32 1.0, %v1199
    %v1201 = vrcp.pop %v1151
    %v1202 = vmul.f32 %v1151, %v1201
    %v1203 = vsub.f32 1.0, %v1202
    %v1204 = vmul.f32 %v1201, %v1203
    %v1205 = vadd.f32 %v1201, %v1204
    %vm1206 = vweird.f32 %v1151
    %vm1207 = vweird.f32 %v1201
    %vm1208 = vmor %vm1206, %vm1207
    %v1209 = vsel %vm1208, %v1201, %v1205
    %v1210 = vand.u32 2147483647, %v1151
    %vm1211 = vcmp.eq.f32.partialorder %v1210, 8.507059e+37
    %v1212 = vand.u32 %v1151, 2147483648
    %v1213 = vor.u32 1.1754944e-38, %v1212
    %v1214 = vsel %vm1211, %v1213, %v1209
    %v1215 = vmul.f32 1.0, %v1214
    %v1216 = vrcp.pop %v1152
    %v1217 = vmul.f32 %v1152, %v1216
    %v1218 = vsub.f32 1.0, %v1217
    %v1219 = vmul.f32 %v1216, %v1218
    %v1220 = vadd.f32 %v1216, %v1219
    %vm1221 = vweird.f32 %v1152
    %vm1222 = vweird.f32 %v1216
    %vm1223 = vmor %vm1221, %vm1222
    %v1224 = vsel %vm1223, %v1216, %v1220
    %v1225 = vand.u32 2147483647, %v1152
    %vm1226 = vcmp.eq.f32.partialorder %v1225, 8.507059e+37
    %v1227 = vand.u32 %v1152, 2147483648
    %v1228 = vor.u32 1.1754944e-38, %v1227
    %v1229 = vsel %vm1226, %v1228, %v1224
    %v1230 = vmul.f32 1.0, %v1229
    %v1231 = vrcp.pop %v1153
    %v1232 = vmul.f32 %v1153, %v1231
    %v1233 = vsub.f32 1.0, %v1232
    %v1234 = vmul.f32 %v1231, %v1233
    %v1235 = vadd.f32 %v1231, %v1234
    %vm1236 = vweird.f32 %v1153
    %vm1237 = vweird.f32 %v1231
    %vm1238 = vmor %vm1236, %vm1237
    %v1239 = vsel %vm1238, %v1231, %v1235
    %v1240 = vand.u32 2147483647, %v1153
    %vm1241 = vcmp.eq.f32.partialorder %v1240, 8.507059e+37
    %v1242 = vand.u32 %v1153, 2147483648
    %v1243 = vor.u32 1.1754944e-38, %v1242
    %v1244 = vsel %vm1241, %v1243, %v1239
    %v1245 = vmul.f32 1.0, %v1244
    %v1246 = vrcp.pop %v1154
    %v1247 = vmul.f32 %v1154, %v1246
    %v1248 = vsub.f32 1.0, %v1247
    %v1249 = vmul.f32 %v1246, %v1248
    %v1250 = vadd.f32 %v1246, %v1249
    %vm1251 = vweird.f32 %v1154
    %vm1252 = vweird.f32 %v1246
    %vm1253 = vmor %vm1251, %vm1252
    %v1254 = vsel %vm1253, %v1246, %v1250
    %v1255 = vand.u32 2147483647, %v1154
    %vm1256 = vcmp.eq.f32.partialorder %v1255, 8.507059e+37
    %v1257 = vand.u32 %v1154, 2147483648
    %v1258 = vor.u32 1.1754944e-38, %v1257
    %v1259 = vsel %vm1256, %v1258, %v1254
    %v1260 = vmul.f32 1.0, %v1259
    %v1261 = vrcp.pop %v1155
    %v1262 = vmul.f32 %v1155, %v1261
    %v1263 = vsub.f32 1.0, %v1262
    %v1264 = vmul.f32 %v1261, %v1263
    %v1265 = vadd.f32 %v1261, %v1264
    %vm1266 = vweird.f32 %v1155
    %vm1267 = vweird.f32 %v1261
    %vm1268 = vmor %vm1266, %vm1267
    %v1269 = vsel %vm1268, %v1261, %v1265
    %v1270 = vand.u32 2147483647, %v1155
    %vm1271 = vcmp.eq.f32.partialorder %v1270, 8.507059e+37
    %v1272 = vand.u32 %v1155, 2147483648
    %v1273 = vor.u32 1.1754944e-38, %v1272
    %v1274 = vsel %vm1271, %v1273, %v1269
    %v1275 = vmul.f32 1.0, %v1274
    %v1276 = vadd.f32 %v544, %v1052
    %v1277 = vadd.f32 %v547, %v1055
    %v1278 = vadd.f32 %v550, %v1058
    %v1279 = vadd.f32 %v553, %v1061
    %v1280 = vadd.f32 %v556, %v1064
    %v1281 = vadd.f32 %v559, %v1067
    %v1282 = vadd.f32 %v562, %v1070
    %v1283 = vadd.f32 %v565, %v1073
    %v1284 = vxor.u32 %v1276, 2147483648
    %v1285 = vxor.u32 %v1277, 2147483648
    %v1286 = vxor.u32 %v1278, 2147483648
    %v1287 = vxor.u32 %v1279, 2147483648
    %v1288 = vxor.u32 %v1280, 2147483648
    %v1289 = vxor.u32 %v1281, 2147483648
    %v1290 = vxor.u32 %v1282, 2147483648
    %v1291 = vxor.u32 %v1283, 2147483648
    %v1292 = vmul.f32 %v1284, 1.442695
    %v1293 = vpow.pop %v1292
    %v1294 = vmul.f32 %v1285, 1.442695
    %v1295 = vpow.pop %v1294
    %v1296 = vmul.f32 %v1286, 1.442695
    %v1297 = vpow.pop %v1296
    %v1298 = vmul.f32 %v1287, 1.442695
    %v1299 = vpow.pop %v1298
    %v1300 = vmul.f32 %v1288, 1.442695
    %v1301 = vpow.pop %v1300
    %v1302 = vmul.f32 %v1289, 1.442695
    %v1303 = vpow.pop %v1302
    %v1304 = vmul.f32 %v1290, 1.442695
    %v1305 = vpow.pop %v1304
    %v1306 = vmul.f32 %v1291, 1.442695
    %v1307 = vpow.pop %v1306
    %v1308 = vadd.f32 %v1293, 1.0
    %v1309 = vadd.f32 %v1295, 1.0
    %v1310 = vadd.f32 %v1297, 1.0
    %v1311 = vadd.f32 %v1299, 1.0
    %v1312 = vadd.f32 %v1301, 1.0
    %v1313 = vadd.f32 %v1303, 1.0
    %v1314 = vadd.f32 %v1305, 1.0
    %v1315 = vadd.f32 %v1307, 1.0
    %v1316 = vrcp.pop %v1308
    %v1317 = vmul.f32 %v1308, %v1316
    %v1318 = vsub.f32 1.0, %v1317
    %v1319 = vmul.f32 %v1316, %v1318
    %v1320 = vadd.f32 %v1316, %v1319
    %vm1321 = vweird.f32 %v1308
    %vm1322 = vweird.f32 %v1316
    %vm1323 = vmor %vm1321, %vm1322
    %v1324 = vsel %vm1323, %v1316, %v1320
    %v1325 = vand.u32 2147483647, %v1308
    %vm1326 = vcmp.eq.f32.partialorder %v1325, 8.507059e+37
    %v1327 = vand.u32 %v1308, 2147483648
    %v1328 = vor.u32 1.1754944e-38, %v1327
    %v1329 = vsel %vm1326, %v1328, %v1324
    %v1330 = vmul.f32 1.0, %v1329
    %v1331 = vrcp.pop %v1309
    %v1332 = vmul.f32 %v1309, %v1331
    %v1333 = vsub.f32 1.0, %v1332
    %v1334 = vmul.f32 %v1331, %v1333
    %v1335 = vadd.f32 %v1331, %v1334
    %vm1336 = vweird.f32 %v1309
    %vm1337 = vweird.f32 %v1331
    %vm1338 = vmor %vm1336, %vm1337
    %v1339 = vsel %vm1338, %v1331, %v1335
    %v1340 = vand.u32 2147483647, %v1309
    %vm1341 = vcmp.eq.f32.partialorder %v1340, 8.507059e+37
    %v1342 = vand.u32 %v1309, 2147483648
    %v1343 = vor.u32 1.1754944e-38, %v1342
    %v1344 = vsel %vm1341, %v1343, %v1339
    %v1345 = vmul.f32 1.0, %v1344
    %v1346 = vrcp.pop %v1310
    %v1347 = vmul.f32 %v1310, %v1346
    %v1348 = vsub.f32 1.0, %v1347
    %v1349 = vmul.f32 %v1346, %v1348
    %v1350 = vadd.f32 %v1346, %v1349
    %vm1351 = vweird.f32 %v1310
    %vm1352 = vweird.f32 %v1346
    %vm1353 = vmor %vm1351, %vm1352
    %v1354 = vsel %vm1353, %v1346, %v1350
    %v1355 = vand.u32 2147483647, %v1310
    %vm1356 = vcmp.eq.f32.partialorder %v1355, 8.507059e+37
    %v1357 = vand.u32 %v1310, 2147483648
    %v1358 = vor.u32 1.1754944e-38, %v1357
    %v1359 = vsel %vm1356, %v1358, %v1354
    %v1360 = vmul.f32 1.0, %v1359
    %v1361 = vrcp.pop %v1311
    %v1362 = vmul.f32 %v1311, %v1361
    %v1363 = vsub.f32 1.0, %v1362
    %v1364 = vmul.f32 %v1361, %v1363
    %v1365 = vadd.f32 %v1361, %v1364
    %vm1366 = vweird.f32 %v1311
    %vm1367 = vweird.f32 %v1361
    %vm1368 = vmor %vm1366, %vm1367
    %v1369 = vsel %vm1368, %v1361, %v1365
    %v1370 = vand.u32 2147483647, %v1311
    %vm1371 = vcmp.eq.f32.partialorder %v1370, 8.507059e+37
    %v1372 = vand.u32 %v1311, 2147483648
    %v1373 = vor.u32 1.1754944e-38, %v1372
    %v1374 = vsel %vm1371, %v1373, %v1369
    %v1375 = vmul.f32 1.0, %v1374
    %v1376 = vrcp.pop %v1312
    %v1377 = vmul.f32 %v1312, %v1376
    %v1378 = vsub.f32 1.0, %v1377
    %v1379 = vmul.f32 %v1376, %v1378
    %v1380 = vadd.f32 %v1376, %v1379
    %vm1381 = vweird.f32 %v1312
    %vm1382 = vweird.f32 %v1376
    %vm1383 = vmor %vm1381, %vm1382
    %v1384 = vsel %vm1383, %v1376, %v1380
    %v1385 = vand.u32 2147483647, %v1312
    %vm1386 = vcmp.eq.f32.partialorder %v1385, 8.507059e+37
    %v1387 = vand.u32 %v1312, 2147483648
    %v1388 = vor.u32 1.1754944e-38, %v1387
    %v1389 = vsel %vm1386, %v1388, %v1384
    %v1390 = vmul.f32 1.0, %v1389
    %v1391 = vrcp.pop %v1313
    %v1392 = vmul.f32 %v1313, %v1391
    %v1393 = vsub.f32 1.0, %v1392
    %v1394 = vmul.f32 %v1391, %v1393
    %v1395 = vadd.f32 %v1391, %v1394
    %vm1396 = vweird.f32 %v1313
    %vm1397 = vweird.f32 %v1391
    %vm1398 = vmor %vm1396, %vm1397
    %v1399 = vsel %vm1398, %v1391, %v1395
    %v1400 = vand.u32 2147483647, %v1313
    %vm1401 = vcmp.eq.f32.partialorder %v1400, 8.507059e+37
    %v1402 = vand.u32 %v1313, 2147483648
    %v1403 = vor.u32 1.1754944e-38, %v1402
    %v1404 = vsel %vm1401, %v1403, %v1399
    %v1405 = vmul.f32 1.0, %v1404
    %v1406 = vrcp.pop %v1314
    %v1407 = vmul.f32 %v1314, %v1406
    %v1408 = vsub.f32 1.0, %v1407
    %v1409 = vmul.f32 %v1406, %v1408
    %v1410 = vadd.f32 %v1406, %v1409
    %vm1411 = vweird.f32 %v1314
    %vm1412 = vweird.f32 %v1406
    %vm1413 = vmor %vm1411, %vm1412
    %v1414 = vsel %vm1413, %v1406, %v1410
    %v1415 = vand.u32 2147483647, %v1314
    %vm1416 = vcmp.eq.f32.partialorder %v1415, 8.507059e+37
    %v1417 = vand.u32 %v1314, 2147483648
    %v1418 = vor.u32 1.1754944e-38, %v1417
    %v1419 = vsel %vm1416, %v1418, %v1414
    %v1420 = vmul.f32 1.0, %v1419
    %v1421 = vrcp.pop %v1315
    %v1422 = vmul.f32 %v1315, %v1421
    %v1423 = vsub.f32 1.0, %v1422
    %v1424 = vmul.f32 %v1421, %v1423
    %v1425 = vadd.f32 %v1421, %v1424
    %vm1426 = vweird.f32 %v1315
    %vm1427 = vweird.f32 %v1421
    %vm1428 = vmor %vm1426, %vm1427
    %v1429 = vsel %vm1428, %v1421, %v1425
    %v1430 = vand.u32 2147483647, %v1315
    %vm1431 = vcmp.eq.f32.partialorder %v1430, 8.507059e+37
    %v1432 = vand.u32 %v1315, 2147483648
    %v1433 = vor.u32 1.1754944e-38, %v1432
    %v1434 = vsel %vm1431, %v1433, %v1429
    %v1435 = vmul.f32 1.0, %v1434
    %v1437 = vperm.slane %v992, 0
    %v1439 = vadd.f32 %v1093, %v1437
    %v1440 = vadd.f32 %v1096, %v1437
    %v1441 = vadd.f32 %v1099, %v1437
    %v1442 = vadd.f32 %v1102, %v1437
    %v1443 = vadd.f32 %v1105, %v1437
    %v1444 = vadd.f32 %v1108, %v1437
    %v1445 = vadd.f32 %v1111, %v1437
    %v1446 = vadd.f32 %v1114, %v1437
    %v1447 = vmul.f32 %v1170, %v1439
    %v1448 = vmul.f32 %v1185, %v1440
    %v1449 = vmul.f32 %v1200, %v1441
    %v1450 = vmul.f32 %v1215, %v1442
    %v1451 = vmul.f32 %v1230, %v1443
    %v1452 = vmul.f32 %v1245, %v1444
    %v1453 = vmul.f32 %v1260, %v1445
    %v1454 = vmul.f32 %v1275, %v1446
    %v1455 = vadd.f32 %v753, %v1447
    %v1456 = vadd.f32 %v756, %v1448
    %v1457 = vadd.f32 %v759, %v1449
    %v1458 = vadd.f32 %v762, %v1450
    %v1459 = vadd.f32 %v765, %v1451
    %v1460 = vadd.f32 %v768, %v1452
    %v1461 = vadd.f32 %v771, %v1453
    %v1462 = vadd.f32 %v774, %v1454
    %v1463 = vtanh.pop %v1455
    %v1464 = vtanh.pop %v1456
    %v1465 = vtanh.pop %v1457
    %v1466 = vtanh.pop %v1458
    %v1467 = vtanh.pop %v1459
    %v1468 = vtanh.pop %v1460
    %v1469 = vtanh.pop %v1461
    %v1470 = vtanh.pop %v1462
    %v1471 = vsub.f32 1.0, %v1330
    %v1472 = vsub.f32 1.0, %v1345
    %v1473 = vsub.f32 1.0, %v1360
    %v1474 = vsub.f32 1.0, %v1375
    %v1475 = vsub.f32 1.0, %v1390
    %v1476 = vsub.f32 1.0, %v1405
    %v1477 = vsub.f32 1.0, %v1420
    %v1478 = vsub.f32 1.0, %v1435
    %v1479 = vmul.f32 %v1471, %v1463
    %v1480 = vmul.f32 %v1472, %v1464
    %v1481 = vmul.f32 %v1473, %v1465
    %v1482 = vmul.f32 %v1474, %v1466
    %v1483 = vmul.f32 %v1475, %v1467
    %v1484 = vmul.f32 %v1476, %v1468
    %v1485 = vmul.f32 %v1477, %v1469
    %v1486 = vmul.f32 %v1478, %v1470
    %v1487 = vmul.f32 %v1330, 0.0
    %v1488 = vmul.f32 %v1345, 0.0
    %v1489 = vmul.f32 %v1360, 0.0
    %v1490 = vmul.f32 %v1375, 0.0
    %v1491 = vmul.f32 %v1390, 0.0
    %v1492 = vmul.f32 %v1405, 0.0
    %v1493 = vmul.f32 %v1420, 0.0
    %v1494 = vmul.f32 %v1435, 0.0
    %v1495 = vadd.f32 %v1479, %v1487
    %v1496 = vadd.f32 %v1480, %v1488
    %v1497 = vadd.f32 %v1481, %v1489
    %v1498 = vadd.f32 %v1482, %v1490
    %v1499 = vadd.f32 %v1483, %v1491
    %v1500 = vadd.f32 %v1484, %v1492
    %v1501 = vadd.f32 %v1485, %v1493
    %v1502 = vadd.f32 %v1486, %v1494
    %1503 = vmatpush.msra.mxu0 %v989
    %1504 = vmatpush.msra.mxu0 %v986
    %1505 = vmatpush.msra.mxu0 %v983
    %1506 = vmatpush.msra.mxu0 %v980
    %1507 = vmatpush.msra.mxu0 %v977
    %1508 = vmatpush.msra.mxu0 %v974
    %1509 = vmatpush.msra.mxu0 %v971
    %1510 = vmatpush.msra.mxu0 %v968
    %1511 = vmatpush.msra.mxu0 %v965
    %1512 = vmatpush.msra.mxu0 %v962
    %1513 = vmatpush.msra.mxu0 %v959
    %1514 = vmatpush.msra.mxu0 %v956
    %1515 = vmatpush.msra.mxu0 %v953
    %1516 = vmatpush.msra.mxu0 %v950
    %1517 = vmatpush.msra.mxu0 %v947
    %1518 = vmatpush.msra.mxu0 %v944
    %1519 = vmatmul.f32.gmra.mxu0 %v1495
    %v1520 = vpop.f32.mrf.mxu0
    %v1521 = vadd.f32 0.0, %v1520
    %1522 = vmatmul.f32.gmra.mxu0 %v1496
    %v1523 = vpop.f32.mrf.mxu0
    %v1524 = vadd.f32 0.0, %v1523
    %1525 = vmatmul.f32.gmra.mxu0 %v1497
    %v1526 = vpop.f32.mrf.mxu0
    %v1527 = vadd.f32 0.0, %v1526
    %1528 = vmatmul.f32.gmra.mxu0 %v1498
    %v1529 = vpop.f32.mrf.mxu0
    %v1530 = vadd.f32 0.0, %v1529
    %1531 = vmatmul.f32.gmra.mxu0 %v1499
    %v1532 = vpop.f32.mrf.mxu0
    %v1533 = vadd.f32 0.0, %v1532
    %1534 = vmatmul.f32.gmra.mxu0 %v1500
    %v1535 = vpop.f32.mrf.mxu0
    %v1536 = vadd.f32 0.0, %v1535
    %1537 = vmatmul.f32.gmra.mxu0 %v1501
    %v1538 = vpop.f32.mrf.mxu0
    %v1539 = vadd.f32 0.0, %v1538
    %1540 = vmatmul.f32.gmra.mxu0 %v1502
    %v1541 = vpop.f32.mrf.mxu0
    %v1542 = vadd.f32 0.0, %v1541
    %1543 = vdwg.mxu0
    %1544 = vmatpush.msra.mxu0 %v990
    %1545 = vmatpush.msra.mxu0 %v987
    %1546 = vmatpush.msra.mxu0 %v984
    %1547 = vmatpush.msra.mxu0 %v981
    %1548 = vmatpush.msra.mxu0 %v978
    %1549 = vmatpush.msra.mxu0 %v975
    %1550 = vmatpush.msra.mxu0 %v972
    %1551 = vmatpush.msra.mxu0 %v969
    %1552 = vmatpush.msra.mxu0 %v966
    %1553 = vmatpush.msra.mxu0 %v963
    %1554 = vmatpush.msra.mxu0 %v960
    %1555 = vmatpush.msra.mxu0 %v957
    %1556 = vmatpush.msra.mxu0 %v954
    %1557 = vmatpush.msra.mxu0 %v951
    %1558 = vmatpush.msra.mxu0 %v948
    %1559 = vmatpush.msra.mxu0 %v945
    %1560 = vmatmul.f32.gmra.mxu0 %v1495
    %v1561 = vpop.f32.mrf.mxu0
    %v1562 = vadd.f32 0.0, %v1561
    %1563 = vmatmul.f32.gmra.mxu0 %v1496
    %v1564 = vpop.f32.mrf.mxu0
    %v1565 = vadd.f32 0.0, %v1564
    %1566 = vmatmul.f32.gmra.mxu0 %v1497
    %v1567 = vpop.f32.mrf.mxu0
    %v1568 = vadd.f32 0.0, %v1567
    %1569 = vmatmul.f32.gmra.mxu0 %v1498
    %v1570 = vpop.f32.mrf.mxu0
    %v1571 = vadd.f32 0.0, %v1570
    %1572 = vmatmul.f32.gmra.mxu0 %v1499
    %v1573 = vpop.f32.mrf.mxu0
    %v1574 = vadd.f32 0.0, %v1573
    %1575 = vmatmul.f32.gmra.mxu0 %v1500
    %v1576 = vpop.f32.mrf.mxu0
    %v1577 = vadd.f32 0.0, %v1576
    %1578 = vmatmul.f32.gmra.mxu0 %v1501
    %v1579 = vpop.f32.mrf.mxu0
    %v1580 = vadd.f32 0.0, %v1579
    %1581 = vmatmul.f32.gmra.mxu0 %v1502
    %v1582 = vpop.f32.mrf.mxu0
    %v1583 = vadd.f32 0.0, %v1582
    %1584 = vdwg.mxu0
    %1585 = vmatpush.msra.mxu0 %v991
    %1586 = vmatpush.msra.mxu0 %v988
    %1587 = vmatpush.msra.mxu0 %v985
    %1588 = vmatpush.msra.mxu0 %v982
    %1589 = vmatpush.msra.mxu0 %v979
    %1590 = vmatpush.msra.mxu0 %v976
    %1591 = vmatpush.msra.mxu0 %v973
    %1592 = vmatpush.msra.mxu0 %v970
    %1593 = vmatpush.msra.mxu0 %v967
    %1594 = vmatpush.msra.mxu0 %v964
    %1595 = vmatpush.msra.mxu0 %v961
    %1596 = vmatpush.msra.mxu0 %v958
    %1597 = vmatpush.msra.mxu0 %v955
    %1598 = vmatpush.msra.mxu0 %v952
    %1599 = vmatpush.msra.mxu0 %v949
    %1600 = vmatpush.msra.mxu0 %v946
    %1601 = vmatmul.f32.gmra.mxu0 %v1495
    %v1602 = vpop.f32.mrf.mxu0
    %v1603 = vadd.f32 0.0, %v1602
    %1604 = vmatmul.f32.gmra.mxu0 %v1496
    %v1605 = vpop.f32.mrf.mxu0
    %v1606 = vadd.f32 0.0, %v1605
    %1607 = vmatmul.f32.gmra.mxu0 %v1497
    %v1608 = vpop.f32.mrf.mxu0
    %v1609 = vadd.f32 0.0, %v1608
    %1610 = vmatmul.f32.gmra.mxu0 %v1498
    %v1611 = vpop.f32.mrf.mxu0
    %v1612 = vadd.f32 0.0, %v1611
    %1613 = vmatmul.f32.gmra.mxu0 %v1499
    %v1614 = vpop.f32.mrf.mxu0
    %v1615 = vadd.f32 0.0, %v1614
    %1616 = vmatmul.f32.gmra.mxu0 %v1500
    %v1617 = vpop.f32.mrf.mxu0
    %v1618 = vadd.f32 0.0, %v1617
    %1619 = vmatmul.f32.gmra.mxu0 %v1501
    %v1620 = vpop.f32.mrf.mxu0
    %v1621 = vadd.f32 0.0, %v1620
    %1622 = vmatmul.f32.gmra.mxu0 %v1502
    %v1623 = vpop.f32.mrf.mxu0
    %v1624 = vadd.f32 0.0, %v1623
    %1625 = vdwg.mxu0
    %v1626 = vadd.f32 %v359, %v1521
    %v1627 = vadd.f32 %v362, %v1524
    %v1628 = vadd.f32 %v365, %v1527
    %v1629 = vadd.f32 %v368, %v1530
    %v1630 = vadd.f32 %v371, %v1533
    %v1631 = vadd.f32 %v374, %v1536
    %v1632 = vadd.f32 %v377, %v1539
    %v1633 = vadd.f32 %v380, %v1542
    %v1634 = vxor.u32 %v1626, 2147483648
    %v1635 = vxor.u32 %v1627, 2147483648
    %v1636 = vxor.u32 %v1628, 2147483648
    %v1637 = vxor.u32 %v1629, 2147483648
    %v1638 = vxor.u32 %v1630, 2147483648
    %v1639 = vxor.u32 %v1631, 2147483648
    %v1640 = vxor.u32 %v1632, 2147483648
    %v1641 = vxor.u32 %v1633, 2147483648
    %v1642 = vmul.f32 %v1634, 1.442695
    %v1643 = vpow.pop %v1642
    %v1644 = vmul.f32 %v1635, 1.442695
    %v1645 = vpow.pop %v1644
    %v1646 = vmul.f32 %v1636, 1.442695
    %v1647 = vpow.pop %v1646
    %v1648 = vmul.f32 %v1637, 1.442695
    %v1649 = vpow.pop %v1648
    %v1650 = vmul.f32 %v1638, 1.442695
    %v1651 = vpow.pop %v1650
    %v1652 = vmul.f32 %v1639, 1.442695
    %v1653 = vpow.pop %v1652
    %v1654 = vmul.f32 %v1640, 1.442695
    %v1655 = vpow.pop %v1654
    %v1656 = vmul.f32 %v1641, 1.442695
    %v1657 = vpow.pop %v1656
    %v1658 = vadd.f32 %v1643, 1.0
    %v1659 = vadd.f32 %v1645, 1.0
    %v1660 = vadd.f32 %v1647, 1.0
    %v1661 = vadd.f32 %v1649, 1.0
    %v1662 = vadd.f32 %v1651, 1.0
    %v1663 = vadd.f32 %v1653, 1.0
    %v1664 = vadd.f32 %v1655, 1.0
    %v1665 = vadd.f32 %v1657, 1.0
    %v1666 = vrcp.pop %v1658
    %v1667 = vmul.f32 %v1658, %v1666
    %v1668 = vsub.f32 1.0, %v1667
    %v1669 = vmul.f32 %v1666, %v1668
    %v1670 = vadd.f32 %v1666, %v1669
    %vm1671 = vweird.f32 %v1658
    %vm1672 = vweird.f32 %v1666
    %vm1673 = vmor %vm1671, %vm1672
    %v1674 = vsel %vm1673, %v1666, %v1670
    %v1675 = vand.u32 2147483647, %v1658
    %vm1676 = vcmp.eq.f32.partialorder %v1675, 8.507059e+37
    %v1677 = vand.u32 %v1658, 2147483648
    %v1678 = vor.u32 1.1754944e-38, %v1677
    %v1679 = vsel %vm1676, %v1678, %v1674
    %v1680 = vmul.f32 1.0, %v1679
    %v1681 = vrcp.pop %v1659
    %v1682 = vmul.f32 %v1659, %v1681
    %v1683 = vsub.f32 1.0, %v1682
    %v1684 = vmul.f32 %v1681, %v1683
    %v1685 = vadd.f32 %v1681, %v1684
    %vm1686 = vweird.f32 %v1659
    %vm1687 = vweird.f32 %v1681
    %vm1688 = vmor %vm1686, %vm1687
    %v1689 = vsel %vm1688, %v1681, %v1685
    %v1690 = vand.u32 2147483647, %v1659
    %vm1691 = vcmp.eq.f32.partialorder %v1690, 8.507059e+37
    %v1692 = vand.u32 %v1659, 2147483648
    %v1693 = vor.u32 1.1754944e-38, %v1692
    %v1694 = vsel %vm1691, %v1693, %v1689
    %v1695 = vmul.f32 1.0, %v1694
    %v1696 = vrcp.pop %v1660
    %v1697 = vmul.f32 %v1660, %v1696
    %v1698 = vsub.f32 1.0, %v1697
    %v1699 = vmul.f32 %v1696, %v1698
    %v1700 = vadd.f32 %v1696, %v1699
    %vm1701 = vweird.f32 %v1660
    %vm1702 = vweird.f32 %v1696
    %vm1703 = vmor %vm1701, %vm1702
    %v1704 = vsel %vm1703, %v1696, %v1700
    %v1705 = vand.u32 2147483647, %v1660
    %vm1706 = vcmp.eq.f32.partialorder %v1705, 8.507059e+37
    %v1707 = vand.u32 %v1660, 2147483648
    %v1708 = vor.u32 1.1754944e-38, %v1707
    %v1709 = vsel %vm1706, %v1708, %v1704
    %v1710 = vmul.f32 1.0, %v1709
    %v1711 = vrcp.pop %v1661
    %v1712 = vmul.f32 %v1661, %v1711
    %v1713 = vsub.f32 1.0, %v1712
    %v1714 = vmul.f32 %v1711, %v1713
    %v1715 = vadd.f32 %v1711, %v1714
    %vm1716 = vweird.f32 %v1661
    %vm1717 = vweird.f32 %v1711
    %vm1718 = vmor %vm1716, %vm1717
    %v1719 = vsel %vm1718, %v1711, %v1715
    %v1720 = vand.u32 2147483647, %v1661
    %vm1721 = vcmp.eq.f32.partialorder %v1720, 8.507059e+37
    %v1722 = vand.u32 %v1661, 2147483648
    %v1723 = vor.u32 1.1754944e-38, %v1722
    %v1724 = vsel %vm1721, %v1723, %v1719
    %v1725 = vmul.f32 1.0, %v1724
    %v1726 = vrcp.pop %v1662
    %v1727 = vmul.f32 %v1662, %v1726
    %v1728 = vsub.f32 1.0, %v1727
    %v1729 = vmul.f32 %v1726, %v1728
    %v1730 = vadd.f32 %v1726, %v1729
    %vm1731 = vweird.f32 %v1662
    %vm1732 = vweird.f32 %v1726
    %vm1733 = vmor %vm1731, %vm1732
    %v1734 = vsel %vm1733, %v1726, %v1730
    %v1735 = vand.u32 2147483647, %v1662
    %vm1736 = vcmp.eq.f32.partialorder %v1735, 8.507059e+37
    %v1737 = vand.u32 %v1662, 2147483648
    %v1738 = vor.u32 1.1754944e-38, %v1737
    %v1739 = vsel %vm1736, %v1738, %v1734
    %v1740 = vmul.f32 1.0, %v1739
    %v1741 = vrcp.pop %v1663
    %v1742 = vmul.f32 %v1663, %v1741
    %v1743 = vsub.f32 1.0, %v1742
    %v1744 = vmul.f32 %v1741, %v1743
    %v1745 = vadd.f32 %v1741, %v1744
    %vm1746 = vweird.f32 %v1663
    %vm1747 = vweird.f32 %v1741
    %vm1748 = vmor %vm1746, %vm1747
    %v1749 = vsel %vm1748, %v1741, %v1745
    %v1750 = vand.u32 2147483647, %v1663
    %vm1751 = vcmp.eq.f32.partialorder %v1750, 8.507059e+37
    %v1752 = vand.u32 %v1663, 2147483648
    %v1753 = vor.u32 1.1754944e-38, %v1752
    %v1754 = vsel %vm1751, %v1753, %v1749
    %v1755 = vmul.f32 1.0, %v1754
    %v1756 = vrcp.pop %v1664
    %v1757 = vmul.f32 %v1664, %v1756
    %v1758 = vsub.f32 1.0, %v1757
    %v1759 = vmul.f32 %v1756, %v1758
    %v1760 = vadd.f32 %v1756, %v1759
    %vm1761 = vweird.f32 %v1664
    %vm1762 = vweird.f32 %v1756
    %vm1763 = vmor %vm1761, %vm1762
    %v1764 = vsel %vm1763, %v1756, %v1760
    %v1765 = vand.u32 2147483647, %v1664
    %vm1766 = vcmp.eq.f32.partialorder %v1765, 8.507059e+37
    %v1767 = vand.u32 %v1664, 2147483648
    %v1768 = vor.u32 1.1754944e-38, %v1767
    %v1769 = vsel %vm1766, %v1768, %v1764
    %v1770 = vmul.f32 1.0, %v1769
    %v1771 = vrcp.pop %v1665
    %v1772 = vmul.f32 %v1665, %v1771
    %v1773 = vsub.f32 1.0, %v1772
    %v1774 = vmul.f32 %v1771, %v1773
    %v1775 = vadd.f32 %v1771, %v1774
    %vm1776 = vweird.f32 %v1665
    %vm1777 = vweird.f32 %v1771
    %vm1778 = vmor %vm1776, %vm1777
    %v1779 = vsel %vm1778, %v1771, %v1775
    %v1780 = vand.u32 2147483647, %v1665
    %vm1781 = vcmp.eq.f32.partialorder %v1780, 8.507059e+37
    %v1782 = vand.u32 %v1665, 2147483648
    %v1783 = vor.u32 1.1754944e-38, %v1782
    %v1784 = vsel %vm1781, %v1783, %v1779
    %v1785 = vmul.f32 1.0, %v1784
    %v1786 = vadd.f32 %v568, %v1562
    %v1787 = vadd.f32 %v571, %v1565
    %v1788 = vadd.f32 %v574, %v1568
    %v1789 = vadd.f32 %v577, %v1571
    %v1790 = vadd.f32 %v580, %v1574
    %v1791 = vadd.f32 %v583, %v1577
    %v1792 = vadd.f32 %v586, %v1580
    %v1793 = vadd.f32 %v589, %v1583
    %v1794 = vxor.u32 %v1786, 2147483648
    %v1795 = vxor.u32 %v1787, 2147483648
    %v1796 = vxor.u32 %v1788, 2147483648
    %v1797 = vxor.u32 %v1789, 2147483648
    %v1798 = vxor.u32 %v1790, 2147483648
    %v1799 = vxor.u32 %v1791, 2147483648
    %v1800 = vxor.u32 %v1792, 2147483648
    %v1801 = vxor.u32 %v1793, 2147483648
    %v1802 = vmul.f32 %v1794, 1.442695
    %v1803 = vpow.pop %v1802
    %v1804 = vmul.f32 %v1795, 1.442695
    %v1805 = vpow.pop %v1804
    %v1806 = vmul.f32 %v1796, 1.442695
    %v1807 = vpow.pop %v1806
    %v1808 = vmul.f32 %v1797, 1.442695
    %v1809 = vpow.pop %v1808
    %v1810 = vmul.f32 %v1798, 1.442695
    %v1811 = vpow.pop %v1810
    %v1812 = vmul.f32 %v1799, 1.442695
    %v1813 = vpow.pop %v1812
    %v1814 = vmul.f32 %v1800, 1.442695
    %v1815 = vpow.pop %v1814
    %v1816 = vmul.f32 %v1801, 1.442695
    %v1817 = vpow.pop %v1816
    %v1818 = vadd.f32 %v1803, 1.0
    %v1819 = vadd.f32 %v1805, 1.0
    %v1820 = vadd.f32 %v1807, 1.0
    %v1821 = vadd.f32 %v1809, 1.0
    %v1822 = vadd.f32 %v1811, 1.0
    %v1823 = vadd.f32 %v1813, 1.0
    %v1824 = vadd.f32 %v1815, 1.0
    %v1825 = vadd.f32 %v1817, 1.0
    %v1826 = vrcp.pop %v1818
    %v1827 = vmul.f32 %v1818, %v1826
    %v1828 = vsub.f32 1.0, %v1827
    %v1829 = vmul.f32 %v1826, %v1828
    %v1830 = vadd.f32 %v1826, %v1829
    %vm1831 = vweird.f32 %v1818
    %vm1832 = vweird.f32 %v1826
    %vm1833 = vmor %vm1831, %vm1832
    %v1834 = vsel %vm1833, %v1826, %v1830
    %v1835 = vand.u32 2147483647, %v1818
    %vm1836 = vcmp.eq.f32.partialorder %v1835, 8.507059e+37
    %v1837 = vand.u32 %v1818, 2147483648
    %v1838 = vor.u32 1.1754944e-38, %v1837
    %v1839 = vsel %vm1836, %v1838, %v1834
    %v1840 = vmul.f32 1.0, %v1839
    %v1841 = vrcp.pop %v1819
    %v1842 = vmul.f32 %v1819, %v1841
    %v1843 = vsub.f32 1.0, %v1842
    %v1844 = vmul.f32 %v1841, %v1843
    %v1845 = vadd.f32 %v1841, %v1844
    %vm1846 = vweird.f32 %v1819
    %vm1847 = vweird.f32 %v1841
    %vm1848 = vmor %vm1846, %vm1847
    %v1849 = vsel %vm1848, %v1841, %v1845
    %v1850 = vand.u32 2147483647, %v1819
    %vm1851 = vcmp.eq.f32.partialorder %v1850, 8.507059e+37
    %v1852 = vand.u32 %v1819, 2147483648
    %v1853 = vor.u32 1.1754944e-38, %v1852
    %v1854 = vsel %vm1851, %v1853, %v1849
    %v1855 = vmul.f32 1.0, %v1854
    %v1856 = vrcp.pop %v1820
    %v1857 = vmul.f32 %v1820, %v1856
    %v1858 = vsub.f32 1.0, %v1857
    %v1859 = vmul.f32 %v1856, %v1858
    %v1860 = vadd.f32 %v1856, %v1859
    %vm1861 = vweird.f32 %v1820
    %vm1862 = vweird.f32 %v1856
    %vm1863 = vmor %vm1861, %vm1862
    %v1864 = vsel %vm1863, %v1856, %v1860
    %v1865 = vand.u32 2147483647, %v1820
    %vm1866 = vcmp.eq.f32.partialorder %v1865, 8.507059e+37
    %v1867 = vand.u32 %v1820, 2147483648
    %v1868 = vor.u32 1.1754944e-38, %v1867
    %v1869 = vsel %vm1866, %v1868, %v1864
    %v1870 = vmul.f32 1.0, %v1869
    %v1871 = vrcp.pop %v1821
    %v1872 = vmul.f32 %v1821, %v1871
    %v1873 = vsub.f32 1.0, %v1872
    %v1874 = vmul.f32 %v1871, %v1873
    %v1875 = vadd.f32 %v1871, %v1874
    %vm1876 = vweird.f32 %v1821
    %vm1877 = vweird.f32 %v1871
    %vm1878 = vmor %vm1876, %vm1877
    %v1879 = vsel %vm1878, %v1871, %v1875
    %v1880 = vand.u32 2147483647, %v1821
    %vm1881 = vcmp.eq.f32.partialorder %v1880, 8.507059e+37
    %v1882 = vand.u32 %v1821, 2147483648
    %v1883 = vor.u32 1.1754944e-38, %v1882
    %v1884 = vsel %vm1881, %v1883, %v1879
    %v1885 = vmul.f32 1.0, %v1884
    %v1886 = vrcp.pop %v1822
    %v1887 = vmul.f32 %v1822, %v1886
    %v1888 = vsub.f32 1.0, %v1887
    %v1889 = vmul.f32 %v1886, %v1888
    %v1890 = vadd.f32 %v1886, %v1889
    %vm1891 = vweird.f32 %v1822
    %vm1892 = vweird.f32 %v1886
    %vm1893 = vmor %vm1891, %vm1892
    %v1894 = vsel %vm1893, %v1886, %v1890
    %v1895 = vand.u32 2147483647, %v1822
    %vm1896 = vcmp.eq.f32.partialorder %v1895, 8.507059e+37
    %v1897 = vand.u32 %v1822, 2147483648
    %v1898 = vor.u32 1.1754944e-38, %v1897
    %v1899 = vsel %vm1896, %v1898, %v1894
    %v1900 = vmul.f32 1.0, %v1899
    %v1901 = vrcp.pop %v1823
    %v1902 = vmul.f32 %v1823, %v1901
    %v1903 = vsub.f32 1.0, %v1902
    %v1904 = vmul.f32 %v1901, %v1903
    %v1905 = vadd.f32 %v1901, %v1904
    %vm1906 = vweird.f32 %v1823
    %vm1907 = vweird.f32 %v1901
    %vm1908 = vmor %vm1906, %vm1907
    %v1909 = vsel %vm1908, %v1901, %v1905
    %v1910 = vand.u32 2147483647, %v1823
    %vm1911 = vcmp.eq.f32.partialorder %v1910, 8.507059e+37
    %v1912 = vand.u32 %v1823, 2147483648
    %v1913 = vor.u32 1.1754944e-38, %v1912
    %v1914 = vsel %vm1911, %v1913, %v1909
    %v1915 = vmul.f32 1.0, %v1914
    %v1916 = vrcp.pop %v1824
    %v1917 = vmul.f32 %v1824, %v1916
    %v1918 = vsub.f32 1.0, %v1917
    %v1919 = vmul.f32 %v1916, %v1918
    %v1920 = vadd.f32 %v1916, %v1919
    %vm1921 = vweird.f32 %v1824
    %vm1922 = vweird.f32 %v1916
    %vm1923 = vmor %vm1921, %vm1922
    %v1924 = vsel %vm1923, %v1916, %v1920
    %v1925 = vand.u32 2147483647, %v1824
    %vm1926 = vcmp.eq.f32.partialorder %v1925, 8.507059e+37
    %v1927 = vand.u32 %v1824, 2147483648
    %v1928 = vor.u32 1.1754944e-38, %v1927
    %v1929 = vsel %vm1926, %v1928, %v1924
    %v1930 = vmul.f32 1.0, %v1929
    %v1931 = vrcp.pop %v1825
    %v1932 = vmul.f32 %v1825, %v1931
    %v1933 = vsub.f32 1.0, %v1932
    %v1934 = vmul.f32 %v1931, %v1933
    %v1935 = vadd.f32 %v1931, %v1934
    %vm1936 = vweird.f32 %v1825
    %vm1937 = vweird.f32 %v1931
    %vm1938 = vmor %vm1936, %vm1937
    %v1939 = vsel %vm1938, %v1931, %v1935
    %v1940 = vand.u32 2147483647, %v1825
    %vm1941 = vcmp.eq.f32.partialorder %v1940, 8.507059e+37
    %v1942 = vand.u32 %v1825, 2147483648
    %v1943 = vor.u32 1.1754944e-38, %v1942
    %v1944 = vsel %vm1941, %v1943, %v1939
    %v1945 = vmul.f32 1.0, %v1944
    %v1946 = vadd.f32 %v1603, %v1437
    %v1947 = vadd.f32 %v1606, %v1437
    %v1948 = vadd.f32 %v1609, %v1437
    %v1949 = vadd.f32 %v1612, %v1437
    %v1950 = vadd.f32 %v1615, %v1437
    %v1951 = vadd.f32 %v1618, %v1437
    %v1952 = vadd.f32 %v1621, %v1437
    %v1953 = vadd.f32 %v1624, %v1437
    %v1954 = vmul.f32 %v1680, %v1946
    %v1955 = vmul.f32 %v1695, %v1947
    %v1956 = vmul.f32 %v1710, %v1948
    %v1957 = vmul.f32 %v1725, %v1949
    %v1958 = vmul.f32 %v1740, %v1950
    %v1959 = vmul.f32 %v1755, %v1951
    %v1960 = vmul.f32 %v1770, %v1952
    %v1961 = vmul.f32 %v1785, %v1953
    %v1962 = vadd.f32 %v777, %v1954
    %v1963 = vadd.f32 %v780, %v1955
    %v1964 = vadd.f32 %v783, %v1956
    %v1965 = vadd.f32 %v786, %v1957
    %v1966 = vadd.f32 %v789, %v1958
    %v1967 = vadd.f32 %v792, %v1959
    %v1968 = vadd.f32 %v795, %v1960
    %v1969 = vadd.f32 %v798, %v1961
    %v1970 = vtanh.pop %v1962
    %v1971 = vtanh.pop %v1963
    %v1972 = vtanh.pop %v1964
    %v1973 = vtanh.pop %v1965
    %v1974 = vtanh.pop %v1966
    %v1975 = vtanh.pop %v1967
    %v1976 = vtanh.pop %v1968
    %v1977 = vtanh.pop %v1969
    %v1978 = vsub.f32 1.0, %v1840
    %v1979 = vsub.f32 1.0, %v1855
    %v1980 = vsub.f32 1.0, %v1870
    %v1981 = vsub.f32 1.0, %v1885
    %v1982 = vsub.f32 1.0, %v1900
    %v1983 = vsub.f32 1.0, %v1915
    %v1984 = vsub.f32 1.0, %v1930
    %v1985 = vsub.f32 1.0, %v1945
    %v1986 = vmul.f32 %v1978, %v1970
    %v1987 = vmul.f32 %v1979, %v1971
    %v1988 = vmul.f32 %v1980, %v1972
    %v1989 = vmul.f32 %v1981, %v1973
    %v1990 = vmul.f32 %v1982, %v1974
    %v1991 = vmul.f32 %v1983, %v1975
    %v1992 = vmul.f32 %v1984, %v1976
    %v1993 = vmul.f32 %v1985, %v1977
    %v1994 = vmul.f32 %v1840, %v1495
    %v1995 = vmul.f32 %v1855, %v1496
    %v1996 = vmul.f32 %v1870, %v1497
    %v1997 = vmul.f32 %v1885, %v1498
    %v1998 = vmul.f32 %v1900, %v1499
    %v1999 = vmul.f32 %v1915, %v1500
    %v2000 = vmul.f32 %v1930, %v1501
    %v2001 = vmul.f32 %v1945, %v1502
    %v2002 = vadd.f32 %v1986, %v1994
    %v2003 = vadd.f32 %v1987, %v1995
    %v2004 = vadd.f32 %v1988, %v1996
    %v2005 = vadd.f32 %v1989, %v1997
    %v2006 = vadd.f32 %v1990, %v1998
    %v2007 = vadd.f32 %v1991, %v1999
    %v2008 = vadd.f32 %v1992, %v2000
    %v2009 = vadd.f32 %v1993, %v2001
    %2010 = vmatpush.msra.mxu0 %v989
    %2011 = vmatpush.msra.mxu0 %v986
    %2012 = vmatpush.msra.mxu0 %v983
    %2013 = vmatpush.msra.mxu0 %v980
    %2014 = vmatpush.msra.mxu0 %v977
    %2015 = vmatpush.msra.mxu0 %v974
    %2016 = vmatpush.msra.mxu0 %v971
    %2017 = vmatpush.msra.mxu0 %v968
    %2018 = vmatpush.msra.mxu0 %v965
    %2019 = vmatpush.msra.mxu0 %v962
    %2020 = vmatpush.msra.mxu0 %v959
    %2021 = vmatpush.msra.mxu0 %v956
    %2022 = vmatpush.msra.mxu0 %v953
    %2023 = vmatpush.msra.mxu0 %v950
    %2024 = vmatpush.msra.mxu0 %v947
    %2025 = vmatpush.msra.mxu0 %v944
    %2026 = vmatmul.f32.gmra.mxu0 %v2002
    %v2027 = vpop.f32.mrf.mxu0
    %v2028 = vadd.f32 0.0, %v2027
    %2029 = vmatmul.f32.gmra.mxu0 %v2003
    %v2030 = vpop.f32.mrf.mxu0
    %v2031 = vadd.f32 0.0, %v2030
    %2032 = vmatmul.f32.gmra.mxu0 %v2004
    %v2033 = vpop.f32.mrf.mxu0
    %v2034 = vadd.f32 0.0, %v2033
    %2035 = vmatmul.f32.gmra.mxu0 %v2005
    %v2036 = vpop.f32.mrf.mxu0
    %v2037 = vadd.f32 0.0, %v2036
    %2038 = vmatmul.f32.gmra.mxu0 %v2006
    %v2039 = vpop.f32.mrf.mxu0
    %v2040 = vadd.f32 0.0, %v2039
    %2041 = vmatmul.f32.gmra.mxu0 %v2007
    %v2042 = vpop.f32.mrf.mxu0
    %v2043 = vadd.f32 0.0, %v2042
    %2044 = vmatmul.f32.gmra.mxu0 %v2008
    %v2045 = vpop.f32.mrf.mxu0
    %v2046 = vadd.f32 0.0, %v2045
    %2047 = vmatmul.f32.gmra.mxu0 %v2009
    %v2048 = vpop.f32.mrf.mxu0
    %v2049 = vadd.f32 0.0, %v2048
    %2050 = vdwg.mxu0
    %2051 = vmatpush.msra.mxu0 %v990
    %2052 = vmatpush.msra.mxu0 %v987
    %2053 = vmatpush.msra.mxu0 %v984
    %2054 = vmatpush.msra.mxu0 %v981
    %2055 = vmatpush.msra.mxu0 %v978
    %2056 = vmatpush.msra.mxu0 %v975
    %2057 = vmatpush.msra.mxu0 %v972
    %2058 = vmatpush.msra.mxu0 %v969
    %2059 = vmatpush.msra.mxu0 %v966
    %2060 = vmatpush.msra.mxu0 %v963
    %2061 = vmatpush.msra.mxu0 %v960
    %2062 = vmatpush.msra.mxu0 %v957
    %2063 = vmatpush.msra.mxu0 %v954
    %2064 = vmatpush.msra.mxu0 %v951
    %2065 = vmatpush.msra.mxu0 %v948
    %2066 = vmatpush.msra.mxu0 %v945
    %2067 = vmatmul.f32.gmra.mxu0 %v2002
    %v2068 = vpop.f32.mrf.mxu0
    %v2069 = vadd.f32 0.0, %v2068
    %2070 = vmatmul.f32.gmra.mxu0 %v2003
    %v2071 = vpop.f32.mrf.mxu0
    %v2072 = vadd.f32 0.0, %v2071
    %2073 = vmatmul.f32.gmra.mxu0 %v2004
    %v2074 = vpop.f32.mrf.mxu0
    %v2075 = vadd.f32 0.0, %v2074
    %2076 = vmatmul.f32.gmra.mxu0 %v2005
    %v2077 = vpop.f32.mrf.mxu0
    %v2078 = vadd.f32 0.0, %v2077
    %2079 = vmatmul.f32.gmra.mxu0 %v2006
    %v2080 = vpop.f32.mrf.mxu0
    %v2081 = vadd.f32 0.0, %v2080
    %2082 = vmatmul.f32.gmra.mxu0 %v2007
    %v2083 = vpop.f32.mrf.mxu0
    %v2084 = vadd.f32 0.0, %v2083
    %2085 = vmatmul.f32.gmra.mxu0 %v2008
    %v2086 = vpop.f32.mrf.mxu0
    %v2087 = vadd.f32 0.0, %v2086
    %2088 = vmatmul.f32.gmra.mxu0 %v2009
    %v2089 = vpop.f32.mrf.mxu0
    %v2090 = vadd.f32 0.0, %v2089
    %2091 = vdwg.mxu0
    %2092 = vmatpush.msra.mxu0 %v991
    %2093 = vmatpush.msra.mxu0 %v988
    %2094 = vmatpush.msra.mxu0 %v985
    %2095 = vmatpush.msra.mxu0 %v982
    %2096 = vmatpush.msra.mxu0 %v979
    %2097 = vmatpush.msra.mxu0 %v976
    %2098 = vmatpush.msra.mxu0 %v973
    %2099 = vmatpush.msra.mxu0 %v970
    %2100 = vmatpush.msra.mxu0 %v967
    %2101 = vmatpush.msra.mxu0 %v964
    %2102 = vmatpush.msra.mxu0 %v961
    %2103 = vmatpush.msra.mxu0 %v958
    %2104 = vmatpush.msra.mxu0 %v955
    %2105 = vmatpush.msra.mxu0 %v952
    %2106 = vmatpush.msra.mxu0 %v949
    %2107 = vmatpush.msra.mxu0 %v946
    %2108 = vmatmul.f32.gmra.mxu0 %v2002
    %v2109 = vpop.f32.mrf.mxu0
    %v2110 = vadd.f32 0.0, %v2109
    %2111 = vmatmul.f32.gmra.mxu0 %v2003
    %v2112 = vpop.f32.mrf.mxu0
    %v2113 = vadd.f32 0.0, %v2112
    %2114 = vmatmul.f32.gmra.mxu0 %v2004
    %v2115 = vpop.f32.mrf.mxu0
    %v2116 = vadd.f32 0.0, %v2115
    %2117 = vmatmul.f32.gmra.mxu0 %v2005
    %v2118 = vpop.f32.mrf.mxu0
    %v2119 = vadd.f32 0.0, %v2118
    %2120 = vmatmul.f32.gmra.mxu0 %v2006
    %v2121 = vpop.f32.mrf.mxu0
    %v2122 = vadd.f32 0.0, %v2121
    %2123 = vmatmul.f32.gmra.mxu0 %v2007
    %v2124 = vpop.f32.mrf.mxu0
    %v2125 = vadd.f32 0.0, %v2124
    %2126 = vmatmul.f32.gmra.mxu0 %v2008
    %v2127 = vpop.f32.mrf.mxu0
    %v2128 = vadd.f32 0.0, %v2127
    %2129 = vmatmul.f32.gmra.mxu0 %v2009
    %v2130 = vpop.f32.mrf.mxu0
    %v2131 = vadd.f32 0.0, %v2130
    %2132 = vdwg.mxu0
    %v2133 = vadd.f32 %v383, %v2028
    %v2134 = vadd.f32 %v386, %v2031
    %v2135 = vadd.f32 %v389, %v2034
    %v2136 = vadd.f32 %v392, %v2037
    %v2137 = vadd.f32 %v395, %v2040
    %v2138 = vadd.f32 %v398, %v2043
    %v2139 = vadd.f32 %v401, %v2046
    %v2140 = vadd.f32 %v404, %v2049
    %v2141 = vxor.u32 %v2133, 2147483648
    %v2142 = vxor.u32 %v2134, 2147483648
    %v2143 = vxor.u32 %v2135, 2147483648
    %v2144 = vxor.u32 %v2136, 2147483648
    %v2145 = vxor.u32 %v2137, 2147483648
    %v2146 = vxor.u32 %v2138, 2147483648
    %v2147 = vxor.u32 %v2139, 2147483648
    %v2148 = vxor.u32 %v2140, 2147483648
    %v2149 = vmul.f32 %v2141, 1.442695
    %v2150 = vpow.pop %v2149
    %v2151 = vmul.f32 %v2142, 1.442695
    %v2152 = vpow.pop %v2151
    %v2153 = vmul.f32 %v2143, 1.442695
    %v2154 = vpow.pop %v2153
    %v2155 = vmul.f32 %v2144, 1.442695
    %v2156 = vpow.pop %v2155
    %v2157 = vmul.f32 %v2145, 1.442695
    %v2158 = vpow.pop %v2157
    %v2159 = vmul.f32 %v2146, 1.442695
    %v2160 = vpow.pop %v2159
    %v2161 = vmul.f32 %v2147, 1.442695
    %v2162 = vpow.pop %v2161
    %v2163 = vmul.f32 %v2148, 1.442695
    %v2164 = vpow.pop %v2163
    %v2165 = vadd.f32 %v2150, 1.0
    %v2166 = vadd.f32 %v2152, 1.0
    %v2167 = vadd.f32 %v2154, 1.0
    %v2168 = vadd.f32 %v2156, 1.0
    %v2169 = vadd.f32 %v2158, 1.0
    %v2170 = vadd.f32 %v2160, 1.0
    %v2171 = vadd.f32 %v2162, 1.0
    %v2172 = vadd.f32 %v2164, 1.0
    %v2173 = vrcp.pop %v2165
    %v2174 = vmul.f32 %v2165, %v2173
    %v2175 = vsub.f32 1.0, %v2174
    %v2176 = vmul.f32 %v2173, %v2175
    %v2177 = vadd.f32 %v2173, %v2176
    %vm2178 = vweird.f32 %v2165
    %vm2179 = vweird.f32 %v2173
    %vm2180 = vmor %vm2178, %vm2179
    %v2181 = vsel %vm2180, %v2173, %v2177
    %v2182 = vand.u32 2147483647, %v2165
    %vm2183 = vcmp.eq.f32.partialorder %v2182, 8.507059e+37
    %v2184 = vand.u32 %v2165, 2147483648
    %v2185 = vor.u32 1.1754944e-38, %v2184
    %v2186 = vsel %vm2183, %v2185, %v2181
    %v2187 = vmul.f32 1.0, %v2186
    %v2188 = vrcp.pop %v2166
    %v2189 = vmul.f32 %v2166, %v2188
    %v2190 = vsub.f32 1.0, %v2189
    %v2191 = vmul.f32 %v2188, %v2190
    %v2192 = vadd.f32 %v2188, %v2191
    %vm2193 = vweird.f32 %v2166
    %vm2194 = vweird.f32 %v2188
    %vm2195 = vmor %vm2193, %vm2194
    %v2196 = vsel %vm2195, %v2188, %v2192
    %v2197 = vand.u32 2147483647, %v2166
    %vm2198 = vcmp.eq.f32.partialorder %v2197, 8.507059e+37
    %v2199 = vand.u32 %v2166, 2147483648
    %v2200 = vor.u32 1.1754944e-38, %v2199
    %v2201 = vsel %vm2198, %v2200, %v2196
    %v2202 = vmul.f32 1.0, %v2201
    %v2203 = vrcp.pop %v2167
    %v2204 = vmul.f32 %v2167, %v2203
    %v2205 = vsub.f32 1.0, %v2204
    %v2206 = vmul.f32 %v2203, %v2205
    %v2207 = vadd.f32 %v2203, %v2206
    %vm2208 = vweird.f32 %v2167
    %vm2209 = vweird.f32 %v2203
    %vm2210 = vmor %vm2208, %vm2209
    %v2211 = vsel %vm2210, %v2203, %v2207
    %v2212 = vand.u32 2147483647, %v2167
    %vm2213 = vcmp.eq.f32.partialorder %v2212, 8.507059e+37
    %v2214 = vand.u32 %v2167, 2147483648
    %v2215 = vor.u32 1.1754944e-38, %v2214
    %v2216 = vsel %vm2213, %v2215, %v2211
    %v2217 = vmul.f32 1.0, %v2216
    %v2218 = vrcp.pop %v2168
    %v2219 = vmul.f32 %v2168, %v2218
    %v2220 = vsub.f32 1.0, %v2219
    %v2221 = vmul.f32 %v2218, %v2220
    %v2222 = vadd.f32 %v2218, %v2221
    %vm2223 = vweird.f32 %v2168
    %vm2224 = vweird.f32 %v2218
    %vm2225 = vmor %vm2223, %vm2224
    %v2226 = vsel %vm2225, %v2218, %v2222
    %v2227 = vand.u32 2147483647, %v2168
    %vm2228 = vcmp.eq.f32.partialorder %v2227, 8.507059e+37
    %v2229 = vand.u32 %v2168, 2147483648
    %v2230 = vor.u32 1.1754944e-38, %v2229
    %v2231 = vsel %vm2228, %v2230, %v2226
    %v2232 = vmul.f32 1.0, %v2231
    %v2233 = vrcp.pop %v2169
    %v2234 = vmul.f32 %v2169, %v2233
    %v2235 = vsub.f32 1.0, %v2234
    %v2236 = vmul.f32 %v2233, %v2235
    %v2237 = vadd.f32 %v2233, %v2236
    %vm2238 = vweird.f32 %v2169
    %vm2239 = vweird.f32 %v2233
    %vm2240 = vmor %vm2238, %vm2239
    %v2241 = vsel %vm2240, %v2233, %v2237
    %v2242 = vand.u32 2147483647, %v2169
    %vm2243 = vcmp.eq.f32.partialorder %v2242, 8.507059e+37
    %v2244 = vand.u32 %v2169, 2147483648
    %v2245 = vor.u32 1.1754944e-38, %v2244
    %v2246 = vsel %vm2243, %v2245, %v2241
    %v2247 = vmul.f32 1.0, %v2246
    %v2248 = vrcp.pop %v2170
    %v2249 = vmul.f32 %v2170, %v2248
    %v2250 = vsub.f32 1.0, %v2249
    %v2251 = vmul.f32 %v2248, %v2250
    %v2252 = vadd.f32 %v2248, %v2251
    %vm2253 = vweird.f32 %v2170
    %vm2254 = vweird.f32 %v2248
    %vm2255 = vmor %vm2253, %vm2254
    %v2256 = vsel %vm2255, %v2248, %v2252
    %v2257 = vand.u32 2147483647, %v2170
    %vm2258 = vcmp.eq.f32.partialorder %v2257, 8.507059e+37
    %v2259 = vand.u32 %v2170, 2147483648
    %v2260 = vor.u32 1.1754944e-38, %v2259
    %v2261 = vsel %vm2258, %v2260, %v2256
    %v2262 = vmul.f32 1.0, %v2261
    %v2263 = vrcp.pop %v2171
    %v2264 = vmul.f32 %v2171, %v2263
    %v2265 = vsub.f32 1.0, %v2264
    %v2266 = vmul.f32 %v2263, %v2265
    %v2267 = vadd.f32 %v2263, %v2266
    %vm2268 = vweird.f32 %v2171
    %vm2269 = vweird.f32 %v2263
    %vm2270 = vmor %vm2268, %vm2269
    %v2271 = vsel %vm2270, %v2263, %v2267
    %v2272 = vand.u32 2147483647, %v2171
    %vm2273 = vcmp.eq.f32.partialorder %v2272, 8.507059e+37
    %v2274 = vand.u32 %v2171, 2147483648
    %v2275 = vor.u32 1.1754944e-38, %v2274
    %v2276 = vsel %vm2273, %v2275, %v2271
    %v2277 = vmul.f32 1.0, %v2276
    %v2278 = vrcp.pop %v2172
    %v2279 = vmul.f32 %v2172, %v2278
    %v2280 = vsub.f32 1.0, %v2279
    %v2281 = vmul.f32 %v2278, %v2280
    %v2282 = vadd.f32 %v2278, %v2281
    %vm2283 = vweird.f32 %v2172
    %vm2284 = vweird.f32 %v2278
    %vm2285 = vmor %vm2283, %vm2284
    %v2286 = vsel %vm2285, %v2278, %v2282
    %v2287 = vand.u32 2147483647, %v2172
    %vm2288 = vcmp.eq.f32.partialorder %v2287, 8.507059e+37
    %v2289 = vand.u32 %v2172, 2147483648
    %v2290 = vor.u32 1.1754944e-38, %v2289
    %v2291 = vsel %vm2288, %v2290, %v2286
    %v2292 = vmul.f32 1.0, %v2291
    %v2293 = vadd.f32 %v592, %v2069
    %v2294 = vadd.f32 %v595, %v2072
    %v2295 = vadd.f32 %v598, %v2075
    %v2296 = vadd.f32 %v601, %v2078
    %v2297 = vadd.f32 %v604, %v2081
    %v2298 = vadd.f32 %v607, %v2084
    %v2299 = vadd.f32 %v610, %v2087
    %v2300 = vadd.f32 %v613, %v2090
    %v2301 = vxor.u32 %v2293, 2147483648
    %v2302 = vxor.u32 %v2294, 2147483648
    %v2303 = vxor.u32 %v2295, 2147483648
    %v2304 = vxor.u32 %v2296, 2147483648
    %v2305 = vxor.u32 %v2297, 2147483648
    %v2306 = vxor.u32 %v2298, 2147483648
    %v2307 = vxor.u32 %v2299, 2147483648
    %v2308 = vxor.u32 %v2300, 2147483648
    %v2309 = vmul.f32 %v2301, 1.442695
    %v2310 = vpow.pop %v2309
    %v2311 = vmul.f32 %v2302, 1.442695
    %v2312 = vpow.pop %v2311
    %v2313 = vmul.f32 %v2303, 1.442695
    %v2314 = vpow.pop %v2313
    %v2315 = vmul.f32 %v2304, 1.442695
    %v2316 = vpow.pop %v2315
    %v2317 = vmul.f32 %v2305, 1.442695
    %v2318 = vpow.pop %v2317
    %v2319 = vmul.f32 %v2306, 1.442695
    %v2320 = vpow.pop %v2319
    %v2321 = vmul.f32 %v2307, 1.442695
    %v2322 = vpow.pop %v2321
    %v2323 = vmul.f32 %v2308, 1.442695
    %v2324 = vpow.pop %v2323
    %v2325 = vadd.f32 %v2310, 1.0
    %v2326 = vadd.f32 %v2312, 1.0
    %v2327 = vadd.f32 %v2314, 1.0
    %v2328 = vadd.f32 %v2316, 1.0
    %v2329 = vadd.f32 %v2318, 1.0
    %v2330 = vadd.f32 %v2320, 1.0
    %v2331 = vadd.f32 %v2322, 1.0
    %v2332 = vadd.f32 %v2324, 1.0
    %v2333 = vrcp.pop %v2325
    %v2334 = vmul.f32 %v2325, %v2333
    %v2335 = vsub.f32 1.0, %v2334
    %v2336 = vmul.f32 %v2333, %v2335
    %v2337 = vadd.f32 %v2333, %v2336
    %vm2338 = vweird.f32 %v2325
    %vm2339 = vweird.f32 %v2333
    %vm2340 = vmor %vm2338, %vm2339
    %v2341 = vsel %vm2340, %v2333, %v2337
    %v2342 = vand.u32 2147483647, %v2325
    %vm2343 = vcmp.eq.f32.partialorder %v2342, 8.507059e+37
    %v2344 = vand.u32 %v2325, 2147483648
    %v2345 = vor.u32 1.1754944e-38, %v2344
    %v2346 = vsel %vm2343, %v2345, %v2341
    %v2347 = vmul.f32 1.0, %v2346
    %v2348 = vrcp.pop %v2326
    %v2349 = vmul.f32 %v2326, %v2348
    %v2350 = vsub.f32 1.0, %v2349
    %v2351 = vmul.f32 %v2348, %v2350
    %v2352 = vadd.f32 %v2348, %v2351
    %vm2353 = vweird.f32 %v2326
    %vm2354 = vweird.f32 %v2348
    %vm2355 = vmor %vm2353, %vm2354
    %v2356 = vsel %vm2355, %v2348, %v2352
    %v2357 = vand.u32 2147483647, %v2326
    %vm2358 = vcmp.eq.f32.partialorder %v2357, 8.507059e+37
    %v2359 = vand.u32 %v2326, 2147483648
    %v2360 = vor.u32 1.1754944e-38, %v2359
    %v2361 = vsel %vm2358, %v2360, %v2356
    %v2362 = vmul.f32 1.0, %v2361
    %v2363 = vrcp.pop %v2327
    %v2364 = vmul.f32 %v2327, %v2363
    %v2365 = vsub.f32 1.0, %v2364
    %v2366 = vmul.f32 %v2363, %v2365
    %v2367 = vadd.f32 %v2363, %v2366
    %vm2368 = vweird.f32 %v2327
    %vm2369 = vweird.f32 %v2363
    %vm2370 = vmor %vm2368, %vm2369
    %v2371 = vsel %vm2370, %v2363, %v2367
    %v2372 = vand.u32 2147483647, %v2327
    %vm2373 = vcmp.eq.f32.partialorder %v2372, 8.507059e+37
    %v2374 = vand.u32 %v2327, 2147483648
    %v2375 = vor.u32 1.1754944e-38, %v2374
    %v2376 = vsel %vm2373, %v2375, %v2371
    %v2377 = vmul.f32 1.0, %v2376
    %v2378 = vrcp.pop %v2328
    %v2379 = vmul.f32 %v2328, %v2378
    %v2380 = vsub.f32 1.0, %v2379
    %v2381 = vmul.f32 %v2378, %v2380
    %v2382 = vadd.f32 %v2378, %v2381
    %vm2383 = vweird.f32 %v2328
    %vm2384 = vweird.f32 %v2378
    %vm2385 = vmor %vm2383, %vm2384
    %v2386 = vsel %vm2385, %v2378, %v2382
    %v2387 = vand.u32 2147483647, %v2328
    %vm2388 = vcmp.eq.f32.partialorder %v2387, 8.507059e+37
    %v2389 = vand.u32 %v2328, 2147483648
    %v2390 = vor.u32 1.1754944e-38, %v2389
    %v2391 = vsel %vm2388, %v2390, %v2386
    %v2392 = vmul.f32 1.0, %v2391
    %v2393 = vrcp.pop %v2329
    %v2394 = vmul.f32 %v2329, %v2393
    %v2395 = vsub.f32 1.0, %v2394
    %v2396 = vmul.f32 %v2393, %v2395
    %v2397 = vadd.f32 %v2393, %v2396
    %vm2398 = vweird.f32 %v2329
    %vm2399 = vweird.f32 %v2393
    %vm2400 = vmor %vm2398, %vm2399
    %v2401 = vsel %vm2400, %v2393, %v2397
    %v2402 = vand.u32 2147483647, %v2329
    %vm2403 = vcmp.eq.f32.partialorder %v2402, 8.507059e+37
    %v2404 = vand.u32 %v2329, 2147483648
    %v2405 = vor.u32 1.1754944e-38, %v2404
    %v2406 = vsel %vm2403, %v2405, %v2401
    %v2407 = vmul.f32 1.0, %v2406
    %v2408 = vrcp.pop %v2330
    %v2409 = vmul.f32 %v2330, %v2408
    %v2410 = vsub.f32 1.0, %v2409
    %v2411 = vmul.f32 %v2408, %v2410
    %v2412 = vadd.f32 %v2408, %v2411
    %vm2413 = vweird.f32 %v2330
    %vm2414 = vweird.f32 %v2408
    %vm2415 = vmor %vm2413, %vm2414
    %v2416 = vsel %vm2415, %v2408, %v2412
    %v2417 = vand.u32 2147483647, %v2330
    %vm2418 = vcmp.eq.f32.partialorder %v2417, 8.507059e+37
    %v2419 = vand.u32 %v2330, 2147483648
    %v2420 = vor.u32 1.1754944e-38, %v2419
    %v2421 = vsel %vm2418, %v2420, %v2416
    %v2422 = vmul.f32 1.0, %v2421
    %v2423 = vrcp.pop %v2331
    %v2424 = vmul.f32 %v2331, %v2423
    %v2425 = vsub.f32 1.0, %v2424
    %v2426 = vmul.f32 %v2423, %v2425
    %v2427 = vadd.f32 %v2423, %v2426
    %vm2428 = vweird.f32 %v2331
    %vm2429 = vweird.f32 %v2423
    %vm2430 = vmor %vm2428, %vm2429
    %v2431 = vsel %vm2430, %v2423, %v2427
    %v2432 = vand.u32 2147483647, %v2331
    %vm2433 = vcmp.eq.f32.partialorder %v2432, 8.507059e+37
    %v2434 = vand.u32 %v2331, 2147483648
    %v2435 = vor.u32 1.1754944e-38, %v2434
    %v2436 = vsel %vm2433, %v2435, %v2431
    %v2437 = vmul.f32 1.0, %v2436
    %v2438 = vrcp.pop %v2332
    %v2439 = vmul.f32 %v2332, %v2438
    %v2440 = vsub.f32 1.0, %v2439
    %v2441 = vmul.f32 %v2438, %v2440
    %v2442 = vadd.f32 %v2438, %v2441
    %vm2443 = vweird.f32 %v2332
    %vm2444 = vweird.f32 %v2438
    %vm2445 = vmor %vm2443, %vm2444
    %v2446 = vsel %vm2445, %v2438, %v2442
    %v2447 = vand.u32 2147483647, %v2332
    %vm2448 = vcmp.eq.f32.partialorder %v2447, 8.507059e+37
    %v2449 = vand.u32 %v2332, 2147483648
    %v2450 = vor.u32 1.1754944e-38, %v2449
    %v2451 = vsel %vm2448, %v2450, %v2446
    %v2452 = vmul.f32 1.0, %v2451
    %v2453 = vadd.f32 %v2110, %v1437
    %v2454 = vadd.f32 %v2113, %v1437
    %v2455 = vadd.f32 %v2116, %v1437
    %v2456 = vadd.f32 %v2119, %v1437
    %v2457 = vadd.f32 %v2122, %v1437
    %v2458 = vadd.f32 %v2125, %v1437
    %v2459 = vadd.f32 %v2128, %v1437
    %v2460 = vadd.f32 %v2131, %v1437
    %v2461 = vmul.f32 %v2187, %v2453
    %v2462 = vmul.f32 %v2202, %v2454
    %v2463 = vmul.f32 %v2217, %v2455
    %v2464 = vmul.f32 %v2232, %v2456
    %v2465 = vmul.f32 %v2247, %v2457
    %v2466 = vmul.f32 %v2262, %v2458
    %v2467 = vmul.f32 %v2277, %v2459
    %v2468 = vmul.f32 %v2292, %v2460
    %v2469 = vadd.f32 %v801, %v2461
    %v2470 = vadd.f32 %v804, %v2462
    %v2471 = vadd.f32 %v807, %v2463
    %v2472 = vadd.f32 %v810, %v2464
    %v2473 = vadd.f32 %v813, %v2465
    %v2474 = vadd.f32 %v816, %v2466
    %v2475 = vadd.f32 %v819, %v2467
    %v2476 = vadd.f32 %v822, %v2468
    %v2477 = vtanh.pop %v2469
    %v2478 = vtanh.pop %v2470
    %v2479 = vtanh.pop %v2471
    %v2480 = vtanh.pop %v2472
    %v2481 = vtanh.pop %v2473
    %v2482 = vtanh.pop %v2474
    %v2483 = vtanh.pop %v2475
    %v2484 = vtanh.pop %v2476
    %v2485 = vsub.f32 1.0, %v2347
    %v2486 = vsub.f32 1.0, %v2362
    %v2487 = vsub.f32 1.0, %v2377
    %v2488 = vsub.f32 1.0, %v2392
    %v2489 = vsub.f32 1.0, %v2407
    %v2490 = vsub.f32 1.0, %v2422
    %v2491 = vsub.f32 1.0, %v2437
    %v2492 = vsub.f32 1.0, %v2452
    %v2493 = vmul.f32 %v2485, %v2477
    %v2494 = vmul.f32 %v2486, %v2478
    %v2495 = vmul.f32 %v2487, %v2479
    %v2496 = vmul.f32 %v2488, %v2480
    %v2497 = vmul.f32 %v2489, %v2481
    %v2498 = vmul.f32 %v2490, %v2482
    %v2499 = vmul.f32 %v2491, %v2483
    %v2500 = vmul.f32 %v2492, %v2484
    %v2501 = vmul.f32 %v2347, %v2002
    %v2502 = vmul.f32 %v2362, %v2003
    %v2503 = vmul.f32 %v2377, %v2004
    %v2504 = vmul.f32 %v2392, %v2005
    %v2505 = vmul.f32 %v2407, %v2006
    %v2506 = vmul.f32 %v2422, %v2007
    %v2507 = vmul.f32 %v2437, %v2008
    %v2508 = vmul.f32 %v2452, %v2009
    %v2509 = vadd.f32 %v2493, %v2501
    %v2510 = vadd.f32 %v2494, %v2502
    %v2511 = vadd.f32 %v2495, %v2503
    %v2512 = vadd.f32 %v2496, %v2504
    %v2513 = vadd.f32 %v2497, %v2505
    %v2514 = vadd.f32 %v2498, %v2506
    %v2515 = vadd.f32 %v2499, %v2507
    %v2516 = vadd.f32 %v2500, %v2508
    %2517 = vmatpush.msra.mxu0 %v989
    %2518 = vmatpush.msra.mxu0 %v986
    %2519 = vmatpush.msra.mxu0 %v983
    %2520 = vmatpush.msra.mxu0 %v980
    %2521 = vmatpush.msra.mxu0 %v977
    %2522 = vmatpush.msra.mxu0 %v974
    %2523 = vmatpush.msra.mxu0 %v971
    %2524 = vmatpush.msra.mxu0 %v968
    %2525 = vmatpush.msra.mxu0 %v965
    %2526 = vmatpush.msra.mxu0 %v962
    %2527 = vmatpush.msra.mxu0 %v959
    %2528 = vmatpush.msra.mxu0 %v956
    %2529 = vmatpush.msra.mxu0 %v953
    %2530 = vmatpush.msra.mxu0 %v950
    %2531 = vmatpush.msra.mxu0 %v947
    %2532 = vmatpush.msra.mxu0 %v944
    %2533 = vmatmul.f32.gmra.mxu0 %v2509
    %v2534 = vpop.f32.mrf.mxu0
    %v2535 = vadd.f32 0.0, %v2534
    %2536 = vmatmul.f32.gmra.mxu0 %v2510
    %v2537 = vpop.f32.mrf.mxu0
    %v2538 = vadd.f32 0.0, %v2537
    %2539 = vmatmul.f32.gmra.mxu0 %v2511
    %v2540 = vpop.f32.mrf.mxu0
    %v2541 = vadd.f32 0.0, %v2540
    %2542 = vmatmul.f32.gmra.mxu0 %v2512
    %v2543 = vpop.f32.mrf.mxu0
    %v2544 = vadd.f32 0.0, %v2543
    %2545 = vmatmul.f32.gmra.mxu0 %v2513
    %v2546 = vpop.f32.mrf.mxu0
    %v2547 = vadd.f32 0.0, %v2546
    %2548 = vmatmul.f32.gmra.mxu0 %v2514
    %v2549 = vpop.f32.mrf.mxu0
    %v2550 = vadd.f32 0.0, %v2549
    %2551 = vmatmul.f32.gmra.mxu0 %v2515
    %v2552 = vpop.f32.mrf.mxu0
    %v2553 = vadd.f32 0.0, %v2552
    %2554 = vmatmul.f32.gmra.mxu0 %v2516
    %v2555 = vpop.f32.mrf.mxu0
    %v2556 = vadd.f32 0.0, %v2555
    %2557 = vdwg.mxu0
    %2558 = vmatpush.msra.mxu0 %v990
    %2559 = vmatpush.msra.mxu0 %v987
    %2560 = vmatpush.msra.mxu0 %v984
    %2561 = vmatpush.msra.mxu0 %v981
    %2562 = vmatpush.msra.mxu0 %v978
    %2563 = vmatpush.msra.mxu0 %v975
    %2564 = vmatpush.msra.mxu0 %v972
    %2565 = vmatpush.msra.mxu0 %v969
    %2566 = vmatpush.msra.mxu0 %v966
    %2567 = vmatpush.msra.mxu0 %v963
    %2568 = vmatpush.msra.mxu0 %v960
    %2569 = vmatpush.msra.mxu0 %v957
    %2570 = vmatpush.msra.mxu0 %v954
    %2571 = vmatpush.msra.mxu0 %v951
    %2572 = vmatpush.msra.mxu0 %v948
    %2573 = vmatpush.msra.mxu0 %v945
    %2574 = vmatmul.f32.gmra.mxu0 %v2509
    %v2575 = vpop.f32.mrf.mxu0
    %v2576 = vadd.f32 0.0, %v2575
    %2577 = vmatmul.f32.gmra.mxu0 %v2510
    %v2578 = vpop.f32.mrf.mxu0
    %v2579 = vadd.f32 0.0, %v2578
    %2580 = vmatmul.f32.gmra.mxu0 %v2511
    %v2581 = vpop.f32.mrf.mxu0
    %v2582 = vadd.f32 0.0, %v2581
    %2583 = vmatmul.f32.gmra.mxu0 %v2512
    %v2584 = vpop.f32.mrf.mxu0
    %v2585 = vadd.f32 0.0, %v2584
    %2586 = vmatmul.f32.gmra.mxu0 %v2513
    %v2587 = vpop.f32.mrf.mxu0
    %v2588 = vadd.f32 0.0, %v2587
    %2589 = vmatmul.f32.gmra.mxu0 %v2514
    %v2590 = vpop.f32.mrf.mxu0
    %v2591 = vadd.f32 0.0, %v2590
    %2592 = vmatmul.f32.gmra.mxu0 %v2515
    %v2593 = vpop.f32.mrf.mxu0
    %v2594 = vadd.f32 0.0, %v2593
    %2595 = vmatmul.f32.gmra.mxu0 %v2516
    %v2596 = vpop.f32.mrf.mxu0
    %v2597 = vadd.f32 0.0, %v2596
    %2598 = vdwg.mxu0
    %2599 = vmatpush.msra.mxu0 %v991
    %2600 = vmatpush.msra.mxu0 %v988
    %2601 = vmatpush.msra.mxu0 %v985
    %2602 = vmatpush.msra.mxu0 %v982
    %2603 = vmatpush.msra.mxu0 %v979
    %2604 = vmatpush.msra.mxu0 %v976
    %2605 = vmatpush.msra.mxu0 %v973
    %2606 = vmatpush.msra.mxu0 %v970
    %2607 = vmatpush.msra.mxu0 %v967
    %2608 = vmatpush.msra.mxu0 %v964
    %2609 = vmatpush.msra.mxu0 %v961
    %2610 = vmatpush.msra.mxu0 %v958
    %2611 = vmatpush.msra.mxu0 %v955
    %2612 = vmatpush.msra.mxu0 %v952
    %2613 = vmatpush.msra.mxu0 %v949
    %2614 = vmatpush.msra.mxu0 %v946
    %2615 = vmatmul.f32.gmra.mxu0 %v2509
    %v2616 = vpop.f32.mrf.mxu0
    %v2617 = vadd.f32 0.0, %v2616
    %2618 = vmatmul.f32.gmra.mxu0 %v2510
    %v2619 = vpop.f32.mrf.mxu0
    %v2620 = vadd.f32 0.0, %v2619
    %2621 = vmatmul.f32.gmra.mxu0 %v2511
    %v2622 = vpop.f32.mrf.mxu0
    %v2623 = vadd.f32 0.0, %v2622
    %2624 = vmatmul.f32.gmra.mxu0 %v2512
    %v2625 = vpop.f32.mrf.mxu0
    %v2626 = vadd.f32 0.0, %v2625
    %2627 = vmatmul.f32.gmra.mxu0 %v2513
    %v2628 = vpop.f32.mrf.mxu0
    %v2629 = vadd.f32 0.0, %v2628
    %2630 = vmatmul.f32.gmra.mxu0 %v2514
    %v2631 = vpop.f32.mrf.mxu0
    %v2632 = vadd.f32 0.0, %v2631
    %2633 = vmatmul.f32.gmra.mxu0 %v2515
    %v2634 = vpop.f32.mrf.mxu0
    %v2635 = vadd.f32 0.0, %v2634
    %2636 = vmatmul.f32.gmra.mxu0 %v2516
    %v2637 = vpop.f32.mrf.mxu0
    %v2638 = vadd.f32 0.0, %v2637
    %2639 = vdwg.mxu0
    %v2640 = vadd.f32 %v407, %v2535
    %v2641 = vadd.f32 %v410, %v2538
    %v2642 = vadd.f32 %v413, %v2541
    %v2643 = vadd.f32 %v416, %v2544
    %v2644 = vadd.f32 %v419, %v2547
    %v2645 = vadd.f32 %v422, %v2550
    %v2646 = vadd.f32 %v425, %v2553
    %v2647 = vadd.f32 %v428, %v2556
    %v2648 = vxor.u32 %v2640, 2147483648
    %v2649 = vxor.u32 %v2641, 2147483648
    %v2650 = vxor.u32 %v2642, 2147483648
    %v2651 = vxor.u32 %v2643, 2147483648
    %v2652 = vxor.u32 %v2644, 2147483648
    %v2653 = vxor.u32 %v2645, 2147483648
    %v2654 = vxor.u32 %v2646, 2147483648
    %v2655 = vxor.u32 %v2647, 2147483648
    %v2656 = vmul.f32 %v2648, 1.442695
    %v2657 = vpow.pop %v2656
    %v2658 = vmul.f32 %v2649, 1.442695
    %v2659 = vpow.pop %v2658
    %v2660 = vmul.f32 %v2650, 1.442695
    %v2661 = vpow.pop %v2660
    %v2662 = vmul.f32 %v2651, 1.442695
    %v2663 = vpow.pop %v2662
    %v2664 = vmul.f32 %v2652, 1.442695
    %v2665 = vpow.pop %v2664
    %v2666 = vmul.f32 %v2653, 1.442695
    %v2667 = vpow.pop %v2666
    %v2668 = vmul.f32 %v2654, 1.442695
    %v2669 = vpow.pop %v2668
    %v2670 = vmul.f32 %v2655, 1.442695
    %v2671 = vpow.pop %v2670
    %v2672 = vadd.f32 %v2657, 1.0
    %v2673 = vadd.f32 %v2659, 1.0
    %v2674 = vadd.f32 %v2661, 1.0
    %v2675 = vadd.f32 %v2663, 1.0
    %v2676 = vadd.f32 %v2665, 1.0
    %v2677 = vadd.f32 %v2667, 1.0
    %v2678 = vadd.f32 %v2669, 1.0
    %v2679 = vadd.f32 %v2671, 1.0
    %v2680 = vrcp.pop %v2672
    %v2681 = vmul.f32 %v2672, %v2680
    %v2682 = vsub.f32 1.0, %v2681
    %v2683 = vmul.f32 %v2680, %v2682
    %v2684 = vadd.f32 %v2680, %v2683
    %vm2685 = vweird.f32 %v2672
    %vm2686 = vweird.f32 %v2680
    %vm2687 = vmor %vm2685, %vm2686
    %v2688 = vsel %vm2687, %v2680, %v2684
    %v2689 = vand.u32 2147483647, %v2672
    %vm2690 = vcmp.eq.f32.partialorder %v2689, 8.507059e+37
    %v2691 = vand.u32 %v2672, 2147483648
    %v2692 = vor.u32 1.1754944e-38, %v2691
    %v2693 = vsel %vm2690, %v2692, %v2688
    %v2694 = vmul.f32 1.0, %v2693
    %v2695 = vrcp.pop %v2673
    %v2696 = vmul.f32 %v2673, %v2695
    %v2697 = vsub.f32 1.0, %v2696
    %v2698 = vmul.f32 %v2695, %v2697
    %v2699 = vadd.f32 %v2695, %v2698
    %vm2700 = vweird.f32 %v2673
    %vm2701 = vweird.f32 %v2695
    %vm2702 = vmor %vm2700, %vm2701
    %v2703 = vsel %vm2702, %v2695, %v2699
    %v2704 = vand.u32 2147483647, %v2673
    %vm2705 = vcmp.eq.f32.partialorder %v2704, 8.507059e+37
    %v2706 = vand.u32 %v2673, 2147483648
    %v2707 = vor.u32 1.1754944e-38, %v2706
    %v2708 = vsel %vm2705, %v2707, %v2703
    %v2709 = vmul.f32 1.0, %v2708
    %v2710 = vrcp.pop %v2674
    %v2711 = vmul.f32 %v2674, %v2710
    %v2712 = vsub.f32 1.0, %v2711
    %v2713 = vmul.f32 %v2710, %v2712
    %v2714 = vadd.f32 %v2710, %v2713
    %vm2715 = vweird.f32 %v2674
    %vm2716 = vweird.f32 %v2710
    %vm2717 = vmor %vm2715, %vm2716
    %v2718 = vsel %vm2717, %v2710, %v2714
    %v2719 = vand.u32 2147483647, %v2674
    %vm2720 = vcmp.eq.f32.partialorder %v2719, 8.507059e+37
    %v2721 = vand.u32 %v2674, 2147483648
    %v2722 = vor.u32 1.1754944e-38, %v2721
    %v2723 = vsel %vm2720, %v2722, %v2718
    %v2724 = vmul.f32 1.0, %v2723
    %v2725 = vrcp.pop %v2675
    %v2726 = vmul.f32 %v2675, %v2725
    %v2727 = vsub.f32 1.0, %v2726
    %v2728 = vmul.f32 %v2725, %v2727
    %v2729 = vadd.f32 %v2725, %v2728
    %vm2730 = vweird.f32 %v2675
    %vm2731 = vweird.f32 %v2725
    %vm2732 = vmor %vm2730, %vm2731
    %v2733 = vsel %vm2732, %v2725, %v2729
    %v2734 = vand.u32 2147483647, %v2675
    %vm2735 = vcmp.eq.f32.partialorder %v2734, 8.507059e+37
    %v2736 = vand.u32 %v2675, 2147483648
    %v2737 = vor.u32 1.1754944e-38, %v2736
    %v2738 = vsel %vm2735, %v2737, %v2733
    %v2739 = vmul.f32 1.0, %v2738
    %v2740 = vrcp.pop %v2676
    %v2741 = vmul.f32 %v2676, %v2740
    %v2742 = vsub.f32 1.0, %v2741
    %v2743 = vmul.f32 %v2740, %v2742
    %v2744 = vadd.f32 %v2740, %v2743
    %vm2745 = vweird.f32 %v2676
    %vm2746 = vweird.f32 %v2740
    %vm2747 = vmor %vm2745, %vm2746
    %v2748 = vsel %vm2747, %v2740, %v2744
    %v2749 = vand.u32 2147483647, %v2676
    %vm2750 = vcmp.eq.f32.partialorder %v2749, 8.507059e+37
    %v2751 = vand.u32 %v2676, 2147483648
    %v2752 = vor.u32 1.1754944e-38, %v2751
    %v2753 = vsel %vm2750, %v2752, %v2748
    %v2754 = vmul.f32 1.0, %v2753
    %v2755 = vrcp.pop %v2677
    %v2756 = vmul.f32 %v2677, %v2755
    %v2757 = vsub.f32 1.0, %v2756
    %v2758 = vmul.f32 %v2755, %v2757
    %v2759 = vadd.f32 %v2755, %v2758
    %vm2760 = vweird.f32 %v2677
    %vm2761 = vweird.f32 %v2755
    %vm2762 = vmor %vm2760, %vm2761
    %v2763 = vsel %vm2762, %v2755, %v2759
    %v2764 = vand.u32 2147483647, %v2677
    %vm2765 = vcmp.eq.f32.partialorder %v2764, 8.507059e+37
    %v2766 = vand.u32 %v2677, 2147483648
    %v2767 = vor.u32 1.1754944e-38, %v2766
    %v2768 = vsel %vm2765, %v2767, %v2763
    %v2769 = vmul.f32 1.0, %v2768
    %v2770 = vrcp.pop %v2678
    %v2771 = vmul.f32 %v2678, %v2770
    %v2772 = vsub.f32 1.0, %v2771
    %v2773 = vmul.f32 %v2770, %v2772
    %v2774 = vadd.f32 %v2770, %v2773
    %vm2775 = vweird.f32 %v2678
    %vm2776 = vweird.f32 %v2770
    %vm2777 = vmor %vm2775, %vm2776
    %v2778 = vsel %vm2777, %v2770, %v2774
    %v2779 = vand.u32 2147483647, %v2678
    %vm2780 = vcmp.eq.f32.partialorder %v2779, 8.507059e+37
    %v2781 = vand.u32 %v2678, 2147483648
    %v2782 = vor.u32 1.1754944e-38, %v2781
    %v2783 = vsel %vm2780, %v2782, %v2778
    %v2784 = vmul.f32 1.0, %v2783
    %v2785 = vrcp.pop %v2679
    %v2786 = vmul.f32 %v2679, %v2785
    %v2787 = vsub.f32 1.0, %v2786
    %v2788 = vmul.f32 %v2785, %v2787
    %v2789 = vadd.f32 %v2785, %v2788
    %vm2790 = vweird.f32 %v2679
    %vm2791 = vweird.f32 %v2785
    %vm2792 = vmor %vm2790, %vm2791
    %v2793 = vsel %vm2792, %v2785, %v2789
    %v2794 = vand.u32 2147483647, %v2679
    %vm2795 = vcmp.eq.f32.partialorder %v2794, 8.507059e+37
    %v2796 = vand.u32 %v2679, 2147483648
    %v2797 = vor.u32 1.1754944e-38, %v2796
    %v2798 = vsel %vm2795, %v2797, %v2793
    %v2799 = vmul.f32 1.0, %v2798
    %v2800 = vadd.f32 %v616, %v2576
    %v2801 = vadd.f32 %v619, %v2579
    %v2802 = vadd.f32 %v622, %v2582
    %v2803 = vadd.f32 %v625, %v2585
    %v2804 = vadd.f32 %v628, %v2588
    %v2805 = vadd.f32 %v631, %v2591
    %v2806 = vadd.f32 %v634, %v2594
    %v2807 = vadd.f32 %v637, %v2597
    %v2808 = vxor.u32 %v2800, 2147483648
    %v2809 = vxor.u32 %v2801, 2147483648
    %v2810 = vxor.u32 %v2802, 2147483648
    %v2811 = vxor.u32 %v2803, 2147483648
    %v2812 = vxor.u32 %v2804, 2147483648
    %v2813 = vxor.u32 %v2805, 2147483648
    %v2814 = vxor.u32 %v2806, 2147483648
    %v2815 = vxor.u32 %v2807, 2147483648
    %v2816 = vmul.f32 %v2808, 1.442695
    %v2817 = vpow.pop %v2816
    %v2818 = vmul.f32 %v2809, 1.442695
    %v2819 = vpow.pop %v2818
    %v2820 = vmul.f32 %v2810, 1.442695
    %v2821 = vpow.pop %v2820
    %v2822 = vmul.f32 %v2811, 1.442695
    %v2823 = vpow.pop %v2822
    %v2824 = vmul.f32 %v2812, 1.442695
    %v2825 = vpow.pop %v2824
    %v2826 = vmul.f32 %v2813, 1.442695
    %v2827 = vpow.pop %v2826
    %v2828 = vmul.f32 %v2814, 1.442695
    %v2829 = vpow.pop %v2828
    %v2830 = vmul.f32 %v2815, 1.442695
    %v2831 = vpow.pop %v2830
    %v2832 = vadd.f32 %v2817, 1.0
    %v2833 = vadd.f32 %v2819, 1.0
    %v2834 = vadd.f32 %v2821, 1.0
    %v2835 = vadd.f32 %v2823, 1.0
    %v2836 = vadd.f32 %v2825, 1.0
    %v2837 = vadd.f32 %v2827, 1.0
    %v2838 = vadd.f32 %v2829, 1.0
    %v2839 = vadd.f32 %v2831, 1.0
    %v2840 = vrcp.pop %v2832
    %v2841 = vmul.f32 %v2832, %v2840
    %v2842 = vsub.f32 1.0, %v2841
    %v2843 = vmul.f32 %v2840, %v2842
    %v2844 = vadd.f32 %v2840, %v2843
    %vm2845 = vweird.f32 %v2832
    %vm2846 = vweird.f32 %v2840
    %vm2847 = vmor %vm2845, %vm2846
    %v2848 = vsel %vm2847, %v2840, %v2844
    %v2849 = vand.u32 2147483647, %v2832
    %vm2850 = vcmp.eq.f32.partialorder %v2849, 8.507059e+37
    %v2851 = vand.u32 %v2832, 2147483648
    %v2852 = vor.u32 1.1754944e-38, %v2851
    %v2853 = vsel %vm2850, %v2852, %v2848
    %v2854 = vmul.f32 1.0, %v2853
    %v2855 = vrcp.pop %v2833
    %v2856 = vmul.f32 %v2833, %v2855
    %v2857 = vsub.f32 1.0, %v2856
    %v2858 = vmul.f32 %v2855, %v2857
    %v2859 = vadd.f32 %v2855, %v2858
    %vm2860 = vweird.f32 %v2833
    %vm2861 = vweird.f32 %v2855
    %vm2862 = vmor %vm2860, %vm2861
    %v2863 = vsel %vm2862, %v2855, %v2859
    %v2864 = vand.u32 2147483647, %v2833
    %vm2865 = vcmp.eq.f32.partialorder %v2864, 8.507059e+37
    %v2866 = vand.u32 %v2833, 2147483648
    %v2867 = vor.u32 1.1754944e-38, %v2866
    %v2868 = vsel %vm2865, %v2867, %v2863
    %v2869 = vmul.f32 1.0, %v2868
    %v2870 = vrcp.pop %v2834
    %v2871 = vmul.f32 %v2834, %v2870
    %v2872 = vsub.f32 1.0, %v2871
    %v2873 = vmul.f32 %v2870, %v2872
    %v2874 = vadd.f32 %v2870, %v2873
    %vm2875 = vweird.f32 %v2834
    %vm2876 = vweird.f32 %v2870
    %vm2877 = vmor %vm2875, %vm2876
    %v2878 = vsel %vm2877, %v2870, %v2874
    %v2879 = vand.u32 2147483647, %v2834
    %vm2880 = vcmp.eq.f32.partialorder %v2879, 8.507059e+37
    %v2881 = vand.u32 %v2834, 2147483648
    %v2882 = vor.u32 1.1754944e-38, %v2881
    %v2883 = vsel %vm2880, %v2882, %v2878
    %v2884 = vmul.f32 1.0, %v2883
    %v2885 = vrcp.pop %v2835
    %v2886 = vmul.f32 %v2835, %v2885
    %v2887 = vsub.f32 1.0, %v2886
    %v2888 = vmul.f32 %v2885, %v2887
    %v2889 = vadd.f32 %v2885, %v2888
    %vm2890 = vweird.f32 %v2835
    %vm2891 = vweird.f32 %v2885
    %vm2892 = vmor %vm2890, %vm2891
    %v2893 = vsel %vm2892, %v2885, %v2889
    %v2894 = vand.u32 2147483647, %v2835
    %vm2895 = vcmp.eq.f32.partialorder %v2894, 8.507059e+37
    %v2896 = vand.u32 %v2835, 2147483648
    %v2897 = vor.u32 1.1754944e-38, %v2896
    %v2898 = vsel %vm2895, %v2897, %v2893
    %v2899 = vmul.f32 1.0, %v2898
    %v2900 = vrcp.pop %v2836
    %v2901 = vmul.f32 %v2836, %v2900
    %v2902 = vsub.f32 1.0, %v2901
    %v2903 = vmul.f32 %v2900, %v2902
    %v2904 = vadd.f32 %v2900, %v2903
    %vm2905 = vweird.f32 %v2836
    %vm2906 = vweird.f32 %v2900
    %vm2907 = vmor %vm2905, %vm2906
    %v2908 = vsel %vm2907, %v2900, %v2904
    %v2909 = vand.u32 2147483647, %v2836
    %vm2910 = vcmp.eq.f32.partialorder %v2909, 8.507059e+37
    %v2911 = vand.u32 %v2836, 2147483648
    %v2912 = vor.u32 1.1754944e-38, %v2911
    %v2913 = vsel %vm2910, %v2912, %v2908
    %v2914 = vmul.f32 1.0, %v2913
    %v2915 = vrcp.pop %v2837
    %v2916 = vmul.f32 %v2837, %v2915
    %v2917 = vsub.f32 1.0, %v2916
    %v2918 = vmul.f32 %v2915, %v2917
    %v2919 = vadd.f32 %v2915, %v2918
    %vm2920 = vweird.f32 %v2837
    %vm2921 = vweird.f32 %v2915
    %vm2922 = vmor %vm2920, %vm2921
    %v2923 = vsel %vm2922, %v2915, %v2919
    %v2924 = vand.u32 2147483647, %v2837
    %vm2925 = vcmp.eq.f32.partialorder %v2924, 8.507059e+37
    %v2926 = vand.u32 %v2837, 2147483648
    %v2927 = vor.u32 1.1754944e-38, %v2926
    %v2928 = vsel %vm2925, %v2927, %v2923
    %v2929 = vmul.f32 1.0, %v2928
    %v2930 = vrcp.pop %v2838
    %v2931 = vmul.f32 %v2838, %v2930
    %v2932 = vsub.f32 1.0, %v2931
    %v2933 = vmul.f32 %v2930, %v2932
    %v2934 = vadd.f32 %v2930, %v2933
    %vm2935 = vweird.f32 %v2838
    %vm2936 = vweird.f32 %v2930
    %vm2937 = vmor %vm2935, %vm2936
    %v2938 = vsel %vm2937, %v2930, %v2934
    %v2939 = vand.u32 2147483647, %v2838
    %vm2940 = vcmp.eq.f32.partialorder %v2939, 8.507059e+37
    %v2941 = vand.u32 %v2838, 2147483648
    %v2942 = vor.u32 1.1754944e-38, %v2941
    %v2943 = vsel %vm2940, %v2942, %v2938
    %v2944 = vmul.f32 1.0, %v2943
    %v2945 = vrcp.pop %v2839
    %v2946 = vmul.f32 %v2839, %v2945
    %v2947 = vsub.f32 1.0, %v2946
    %v2948 = vmul.f32 %v2945, %v2947
    %v2949 = vadd.f32 %v2945, %v2948
    %vm2950 = vweird.f32 %v2839
    %vm2951 = vweird.f32 %v2945
    %vm2952 = vmor %vm2950, %vm2951
    %v2953 = vsel %vm2952, %v2945, %v2949
    %v2954 = vand.u32 2147483647, %v2839
    %vm2955 = vcmp.eq.f32.partialorder %v2954, 8.507059e+37
    %v2956 = vand.u32 %v2839, 2147483648
    %v2957 = vor.u32 1.1754944e-38, %v2956
    %v2958 = vsel %vm2955, %v2957, %v2953
    %v2959 = vmul.f32 1.0, %v2958
    %v2960 = vadd.f32 %v2617, %v1437
    %v2961 = vadd.f32 %v2620, %v1437
    %v2962 = vadd.f32 %v2623, %v1437
    %v2963 = vadd.f32 %v2626, %v1437
    %v2964 = vadd.f32 %v2629, %v1437
    %v2965 = vadd.f32 %v2632, %v1437
    %v2966 = vadd.f32 %v2635, %v1437
    %v2967 = vadd.f32 %v2638, %v1437
    %v2968 = vmul.f32 %v2694, %v2960
    %v2969 = vmul.f32 %v2709, %v2961
    %v2970 = vmul.f32 %v2724, %v2962
    %v2971 = vmul.f32 %v2739, %v2963
    %v2972 = vmul.f32 %v2754, %v2964
    %v2973 = vmul.f32 %v2769, %v2965
    %v2974 = vmul.f32 %v2784, %v2966
    %v2975 = vmul.f32 %v2799, %v2967
    %v2976 = vadd.f32 %v825, %v2968
    %v2977 = vadd.f32 %v828, %v2969
    %v2978 = vadd.f32 %v831, %v2970
    %v2979 = vadd.f32 %v834, %v2971
    %v2980 = vadd.f32 %v837, %v2972
    %v2981 = vadd.f32 %v840, %v2973
    %v2982 = vadd.f32 %v843, %v2974
    %v2983 = vadd.f32 %v846, %v2975
    %v2984 = vtanh.pop %v2976
    %v2985 = vtanh.pop %v2977
    %v2986 = vtanh.pop %v2978
    %v2987 = vtanh.pop %v2979
    %v2988 = vtanh.pop %v2980
    %v2989 = vtanh.pop %v2981
    %v2990 = vtanh.pop %v2982
    %v2991 = vtanh.pop %v2983
    %v2992 = vsub.f32 1.0, %v2854
    %v2993 = vsub.f32 1.0, %v2869
    %v2994 = vsub.f32 1.0, %v2884
    %v2995 = vsub.f32 1.0, %v2899
    %v2996 = vsub.f32 1.0, %v2914
    %v2997 = vsub.f32 1.0, %v2929
    %v2998 = vsub.f32 1.0, %v2944
    %v2999 = vsub.f32 1.0, %v2959
    %v3000 = vmul.f32 %v2992, %v2984
    %v3001 = vmul.f32 %v2993, %v2985
    %v3002 = vmul.f32 %v2994, %v2986
    %v3003 = vmul.f32 %v2995, %v2987
    %v3004 = vmul.f32 %v2996, %v2988
    %v3005 = vmul.f32 %v2997, %v2989
    %v3006 = vmul.f32 %v2998, %v2990
    %v3007 = vmul.f32 %v2999, %v2991
    %v3008 = vmul.f32 %v2854, %v2509
    %v3009 = vmul.f32 %v2869, %v2510
    %v3010 = vmul.f32 %v2884, %v2511
    %v3011 = vmul.f32 %v2899, %v2512
    %v3012 = vmul.f32 %v2914, %v2513
    %v3013 = vmul.f32 %v2929, %v2514
    %v3014 = vmul.f32 %v2944, %v2515
    %v3015 = vmul.f32 %v2959, %v2516
    %v3016 = vadd.f32 %v3000, %v3008
    %v3017 = vadd.f32 %v3001, %v3009
    %v3018 = vadd.f32 %v3002, %v3010
    %v3019 = vadd.f32 %v3003, %v3011
    %v3020 = vadd.f32 %v3004, %v3012
    %v3021 = vadd.f32 %v3005, %v3013
    %v3022 = vadd.f32 %v3006, %v3014
    %v3023 = vadd.f32 %v3007, %v3015
    %3024 = vmatpush.msra.mxu0 %v989
    %3025 = vmatpush.msra.mxu0 %v986
    %3026 = vmatpush.msra.mxu0 %v983
    %3027 = vmatpush.msra.mxu0 %v980
    %3028 = vmatpush.msra.mxu0 %v977
    %3029 = vmatpush.msra.mxu0 %v974
    %3030 = vmatpush.msra.mxu0 %v971
    %3031 = vmatpush.msra.mxu0 %v968
    %3032 = vmatpush.msra.mxu0 %v965
    %3033 = vmatpush.msra.mxu0 %v962
    %3034 = vmatpush.msra.mxu0 %v959
    %3035 = vmatpush.msra.mxu0 %v956
    %3036 = vmatpush.msra.mxu0 %v953
    %3037 = vmatpush.msra.mxu0 %v950
    %3038 = vmatpush.msra.mxu0 %v947
    %3039 = vmatpush.msra.mxu0 %v944
    %3040 = vmatmul.f32.gmra.mxu0 %v3016
    %v3041 = vpop.f32.mrf.mxu0
    %v3042 = vadd.f32 0.0, %v3041
    %3043 = vmatmul.f32.gmra.mxu0 %v3017
    %v3044 = vpop.f32.mrf.mxu0
    %v3045 = vadd.f32 0.0, %v3044
    %3046 = vmatmul.f32.gmra.mxu0 %v3018
    %v3047 = vpop.f32.mrf.mxu0
    %v3048 = vadd.f32 0.0, %v3047
    %3049 = vmatmul.f32.gmra.mxu0 %v3019
    %v3050 = vpop.f32.mrf.mxu0
    %v3051 = vadd.f32 0.0, %v3050
    %3052 = vmatmul.f32.gmra.mxu0 %v3020
    %v3053 = vpop.f32.mrf.mxu0
    %v3054 = vadd.f32 0.0, %v3053
    %3055 = vmatmul.f32.gmra.mxu0 %v3021
    %v3056 = vpop.f32.mrf.mxu0
    %v3057 = vadd.f32 0.0, %v3056
    %3058 = vmatmul.f32.gmra.mxu0 %v3022
    %v3059 = vpop.f32.mrf.mxu0
    %v3060 = vadd.f32 0.0, %v3059
    %3061 = vmatmul.f32.gmra.mxu0 %v3023
    %v3062 = vpop.f32.mrf.mxu0
    %v3063 = vadd.f32 0.0, %v3062
    %3064 = vdwg.mxu0
    %3065 = vmatpush.msra.mxu0 %v990
    %3066 = vmatpush.msra.mxu0 %v987
    %3067 = vmatpush.msra.mxu0 %v984
    %3068 = vmatpush.msra.mxu0 %v981
    %3069 = vmatpush.msra.mxu0 %v978
    %3070 = vmatpush.msra.mxu0 %v975
    %3071 = vmatpush.msra.mxu0 %v972
    %3072 = vmatpush.msra.mxu0 %v969
    %3073 = vmatpush.msra.mxu0 %v966
    %3074 = vmatpush.msra.mxu0 %v963
    %3075 = vmatpush.msra.mxu0 %v960
    %3076 = vmatpush.msra.mxu0 %v957
    %3077 = vmatpush.msra.mxu0 %v954
    %3078 = vmatpush.msra.mxu0 %v951
    %3079 = vmatpush.msra.mxu0 %v948
    %3080 = vmatpush.msra.mxu0 %v945
    %3081 = vmatmul.f32.gmra.mxu0 %v3016
    %v3082 = vpop.f32.mrf.mxu0
    %v3083 = vadd.f32 0.0, %v3082
    %3084 = vmatmul.f32.gmra.mxu0 %v3017
    %v3085 = vpop.f32.mrf.mxu0
    %v3086 = vadd.f32 0.0, %v3085
    %3087 = vmatmul.f32.gmra.mxu0 %v3018
    %v3088 = vpop.f32.mrf.mxu0
    %v3089 = vadd.f32 0.0, %v3088
    %3090 = vmatmul.f32.gmra.mxu0 %v3019
    %v3091 = vpop.f32.mrf.mxu0
    %v3092 = vadd.f32 0.0, %v3091
    %3093 = vmatmul.f32.gmra.mxu0 %v3020
    %v3094 = vpop.f32.mrf.mxu0
    %v3095 = vadd.f32 0.0, %v3094
    %3096 = vmatmul.f32.gmra.mxu0 %v3021
    %v3097 = vpop.f32.mrf.mxu0
    %v3098 = vadd.f32 0.0, %v3097
    %3099 = vmatmul.f32.gmra.mxu0 %v3022
    %v3100 = vpop.f32.mrf.mxu0
    %v3101 = vadd.f32 0.0, %v3100
    %3102 = vmatmul.f32.gmra.mxu0 %v3023
    %v3103 = vpop.f32.mrf.mxu0
    %v3104 = vadd.f32 0.0, %v3103
    %3105 = vdwg.mxu0
    %3106 = vmatpush.msra.mxu0 %v991
    %3107 = vmatpush.msra.mxu0 %v988
    %3108 = vmatpush.msra.mxu0 %v985
    %3109 = vmatpush.msra.mxu0 %v982
    %3110 = vmatpush.msra.mxu0 %v979
    %3111 = vmatpush.msra.mxu0 %v976
    %3112 = vmatpush.msra.mxu0 %v973
    %3113 = vmatpush.msra.mxu0 %v970
    %3114 = vmatpush.msra.mxu0 %v967
    %3115 = vmatpush.msra.mxu0 %v964
    %3116 = vmatpush.msra.mxu0 %v961
    %3117 = vmatpush.msra.mxu0 %v958
    %3118 = vmatpush.msra.mxu0 %v955
    %3119 = vmatpush.msra.mxu0 %v952
    %3120 = vmatpush.msra.mxu0 %v949
    %3121 = vmatpush.msra.mxu0 %v946
    %3122 = vmatmul.f32.gmra.mxu0 %v3016
    %v3123 = vpop.f32.mrf.mxu0
    %v3124 = vadd.f32 0.0, %v3123
    %3125 = vmatmul.f32.gmra.mxu0 %v3017
    %v3126 = vpop.f32.mrf.mxu0
    %v3127 = vadd.f32 0.0, %v3126
    %3128 = vmatmul.f32.gmra.mxu0 %v3018
    %v3129 = vpop.f32.mrf.mxu0
    %v3130 = vadd.f32 0.0, %v3129
    %3131 = vmatmul.f32.gmra.mxu0 %v3019
    %v3132 = vpop.f32.mrf.mxu0
    %v3133 = vadd.f32 0.0, %v3132
    %3134 = vmatmul.f32.gmra.mxu0 %v3020
    %v3135 = vpop.f32.mrf.mxu0
    %v3136 = vadd.f32 0.0, %v3135
    %3137 = vmatmul.f32.gmra.mxu0 %v3021
    %v3138 = vpop.f32.mrf.mxu0
    %v3139 = vadd.f32 0.0, %v3138
    %3140 = vmatmul.f32.gmra.mxu0 %v3022
    %v3141 = vpop.f32.mrf.mxu0
    %v3142 = vadd.f32 0.0, %v3141
    %3143 = vmatmul.f32.gmra.mxu0 %v3023
    %v3144 = vpop.f32.mrf.mxu0
    %v3145 = vadd.f32 0.0, %v3144
    %3146 = vdwg.mxu0
    %v3147 = vadd.f32 %v431, %v3042
    %v3148 = vadd.f32 %v434, %v3045
    %v3149 = vadd.f32 %v437, %v3048
    %v3150 = vadd.f32 %v440, %v3051
    %v3151 = vadd.f32 %v443, %v3054
    %v3152 = vadd.f32 %v446, %v3057
    %v3153 = vadd.f32 %v449, %v3060
    %v3154 = vadd.f32 %v452, %v3063
    %v3155 = vxor.u32 %v3147, 2147483648
    %v3156 = vxor.u32 %v3148, 2147483648
    %v3157 = vxor.u32 %v3149, 2147483648
    %v3158 = vxor.u32 %v3150, 2147483648
    %v3159 = vxor.u32 %v3151, 2147483648
    %v3160 = vxor.u32 %v3152, 2147483648
    %v3161 = vxor.u32 %v3153, 2147483648
    %v3162 = vxor.u32 %v3154, 2147483648
    %v3163 = vmul.f32 %v3155, 1.442695
    %v3164 = vpow.pop %v3163
    %v3165 = vmul.f32 %v3156, 1.442695
    %v3166 = vpow.pop %v3165
    %v3167 = vmul.f32 %v3157, 1.442695
    %v3168 = vpow.pop %v3167
    %v3169 = vmul.f32 %v3158, 1.442695
    %v3170 = vpow.pop %v3169
    %v3171 = vmul.f32 %v3159, 1.442695
    %v3172 = vpow.pop %v3171
    %v3173 = vmul.f32 %v3160, 1.442695
    %v3174 = vpow.pop %v3173
    %v3175 = vmul.f32 %v3161, 1.442695
    %v3176 = vpow.pop %v3175
    %v3177 = vmul.f32 %v3162, 1.442695
    %v3178 = vpow.pop %v3177
    %v3179 = vadd.f32 %v3164, 1.0
    %v3180 = vadd.f32 %v3166, 1.0
    %v3181 = vadd.f32 %v3168, 1.0
    %v3182 = vadd.f32 %v3170, 1.0
    %v3183 = vadd.f32 %v3172, 1.0
    %v3184 = vadd.f32 %v3174, 1.0
    %v3185 = vadd.f32 %v3176, 1.0
    %v3186 = vadd.f32 %v3178, 1.0
    %v3187 = vrcp.pop %v3179
    %v3188 = vmul.f32 %v3179, %v3187
    %v3189 = vsub.f32 1.0, %v3188
    %v3190 = vmul.f32 %v3187, %v3189
    %v3191 = vadd.f32 %v3187, %v3190
    %vm3192 = vweird.f32 %v3179
    %vm3193 = vweird.f32 %v3187
    %vm3194 = vmor %vm3192, %vm3193
    %v3195 = vsel %vm3194, %v3187, %v3191
    %v3196 = vand.u32 2147483647, %v3179
    %vm3197 = vcmp.eq.f32.partialorder %v3196, 8.507059e+37
    %v3198 = vand.u32 %v3179, 2147483648
    %v3199 = vor.u32 1.1754944e-38, %v3198
    %v3200 = vsel %vm3197, %v3199, %v3195
    %v3201 = vmul.f32 1.0, %v3200
    %v3202 = vrcp.pop %v3180
    %v3203 = vmul.f32 %v3180, %v3202
    %v3204 = vsub.f32 1.0, %v3203
    %v3205 = vmul.f32 %v3202, %v3204
    %v3206 = vadd.f32 %v3202, %v3205
    %vm3207 = vweird.f32 %v3180
    %vm3208 = vweird.f32 %v3202
    %vm3209 = vmor %vm3207, %vm3208
    %v3210 = vsel %vm3209, %v3202, %v3206
    %v3211 = vand.u32 2147483647, %v3180
    %vm3212 = vcmp.eq.f32.partialorder %v3211, 8.507059e+37
    %v3213 = vand.u32 %v3180, 2147483648
    %v3214 = vor.u32 1.1754944e-38, %v3213
    %v3215 = vsel %vm3212, %v3214, %v3210
    %v3216 = vmul.f32 1.0, %v3215
    %v3217 = vrcp.pop %v3181
    %v3218 = vmul.f32 %v3181, %v3217
    %v3219 = vsub.f32 1.0, %v3218
    %v3220 = vmul.f32 %v3217, %v3219
    %v3221 = vadd.f32 %v3217, %v3220
    %vm3222 = vweird.f32 %v3181
    %vm3223 = vweird.f32 %v3217
    %vm3224 = vmor %vm3222, %vm3223
    %v3225 = vsel %vm3224, %v3217, %v3221
    %v3226 = vand.u32 2147483647, %v3181
    %vm3227 = vcmp.eq.f32.partialorder %v3226, 8.507059e+37
    %v3228 = vand.u32 %v3181, 2147483648
    %v3229 = vor.u32 1.1754944e-38, %v3228
    %v3230 = vsel %vm3227, %v3229, %v3225
    %v3231 = vmul.f32 1.0, %v3230
    %v3232 = vrcp.pop %v3182
    %v3233 = vmul.f32 %v3182, %v3232
    %v3234 = vsub.f32 1.0, %v3233
    %v3235 = vmul.f32 %v3232, %v3234
    %v3236 = vadd.f32 %v3232, %v3235
    %vm3237 = vweird.f32 %v3182
    %vm3238 = vweird.f32 %v3232
    %vm3239 = vmor %vm3237, %vm3238
    %v3240 = vsel %vm3239, %v3232, %v3236
    %v3241 = vand.u32 2147483647, %v3182
    %vm3242 = vcmp.eq.f32.partialorder %v3241, 8.507059e+37
    %v3243 = vand.u32 %v3182, 2147483648
    %v3244 = vor.u32 1.1754944e-38, %v3243
    %v3245 = vsel %vm3242, %v3244, %v3240
    %v3246 = vmul.f32 1.0, %v3245
    %v3247 = vrcp.pop %v3183
    %v3248 = vmul.f32 %v3183, %v3247
    %v3249 = vsub.f32 1.0, %v3248
    %v3250 = vmul.f32 %v3247, %v3249
    %v3251 = vadd.f32 %v3247, %v3250
    %vm3252 = vweird.f32 %v3183
    %vm3253 = vweird.f32 %v3247
    %vm3254 = vmor %vm3252, %vm3253
    %v3255 = vsel %vm3254, %v3247, %v3251
    %v3256 = vand.u32 2147483647, %v3183
    %vm3257 = vcmp.eq.f32.partialorder %v3256, 8.507059e+37
    %v3258 = vand.u32 %v3183, 2147483648
    %v3259 = vor.u32 1.1754944e-38, %v3258
    %v3260 = vsel %vm3257, %v3259, %v3255
    %v3261 = vmul.f32 1.0, %v3260
    %v3262 = vrcp.pop %v3184
    %v3263 = vmul.f32 %v3184, %v3262
    %v3264 = vsub.f32 1.0, %v3263
    %v3265 = vmul.f32 %v3262, %v3264
    %v3266 = vadd.f32 %v3262, %v3265
    %vm3267 = vweird.f32 %v3184
    %vm3268 = vweird.f32 %v3262
    %vm3269 = vmor %vm3267, %vm3268
    %v3270 = vsel %vm3269, %v3262, %v3266
    %v3271 = vand.u32 2147483647, %v3184
    %vm3272 = vcmp.eq.f32.partialorder %v3271, 8.507059e+37
    %v3273 = vand.u32 %v3184, 2147483648
    %v3274 = vor.u32 1.1754944e-38, %v3273
    %v3275 = vsel %vm3272, %v3274, %v3270
    %v3276 = vmul.f32 1.0, %v3275
    %v3277 = vrcp.pop %v3185
    %v3278 = vmul.f32 %v3185, %v3277
    %v3279 = vsub.f32 1.0, %v3278
    %v3280 = vmul.f32 %v3277, %v3279
    %v3281 = vadd.f32 %v3277, %v3280
    %vm3282 = vweird.f32 %v3185
    %vm3283 = vweird.f32 %v3277
    %vm3284 = vmor %vm3282, %vm3283
    %v3285 = vsel %vm3284, %v3277, %v3281
    %v3286 = vand.u32 2147483647, %v3185
    %vm3287 = vcmp.eq.f32.partialorder %v3286, 8.507059e+37
    %v3288 = vand.u32 %v3185, 2147483648
    %v3289 = vor.u32 1.1754944e-38, %v3288
    %v3290 = vsel %vm3287, %v3289, %v3285
    %v3291 = vmul.f32 1.0, %v3290
    %v3292 = vrcp.pop %v3186
    %v3293 = vmul.f32 %v3186, %v3292
    %v3294 = vsub.f32 1.0, %v3293
    %v3295 = vmul.f32 %v3292, %v3294
    %v3296 = vadd.f32 %v3292, %v3295
    %vm3297 = vweird.f32 %v3186
    %vm3298 = vweird.f32 %v3292
    %vm3299 = vmor %vm3297, %vm3298
    %v3300 = vsel %vm3299, %v3292, %v3296
    %v3301 = vand.u32 2147483647, %v3186
    %vm3302 = vcmp.eq.f32.partialorder %v3301, 8.507059e+37
    %v3303 = vand.u32 %v3186, 2147483648
    %v3304 = vor.u32 1.1754944e-38, %v3303
    %v3305 = vsel %vm3302, %v3304, %v3300
    %v3306 = vmul.f32 1.0, %v3305
    %v3307 = vadd.f32 %v640, %v3083
    %v3308 = vadd.f32 %v643, %v3086
    %v3309 = vadd.f32 %v646, %v3089
    %v3310 = vadd.f32 %v649, %v3092
    %v3311 = vadd.f32 %v652, %v3095
    %v3312 = vadd.f32 %v655, %v3098
    %v3313 = vadd.f32 %v658, %v3101
    %v3314 = vadd.f32 %v661, %v3104
    %v3315 = vxor.u32 %v3307, 2147483648
    %v3316 = vxor.u32 %v3308, 2147483648
    %v3317 = vxor.u32 %v3309, 2147483648
    %v3318 = vxor.u32 %v3310, 2147483648
    %v3319 = vxor.u32 %v3311, 2147483648
    %v3320 = vxor.u32 %v3312, 2147483648
    %v3321 = vxor.u32 %v3313, 2147483648
    %v3322 = vxor.u32 %v3314, 2147483648
    %v3323 = vmul.f32 %v3315, 1.442695
    %v3324 = vpow.pop %v3323
    %v3325 = vmul.f32 %v3316, 1.442695
    %v3326 = vpow.pop %v3325
    %v3327 = vmul.f32 %v3317, 1.442695
    %v3328 = vpow.pop %v3327
    %v3329 = vmul.f32 %v3318, 1.442695
    %v3330 = vpow.pop %v3329
    %v3331 = vmul.f32 %v3319, 1.442695
    %v3332 = vpow.pop %v3331
    %v3333 = vmul.f32 %v3320, 1.442695
    %v3334 = vpow.pop %v3333
    %v3335 = vmul.f32 %v3321, 1.442695
    %v3336 = vpow.pop %v3335
    %v3337 = vmul.f32 %v3322, 1.442695
    %v3338 = vpow.pop %v3337
    %v3339 = vadd.f32 %v3324, 1.0
    %v3340 = vadd.f32 %v3326, 1.0
    %v3341 = vadd.f32 %v3328, 1.0
    %v3342 = vadd.f32 %v3330, 1.0
    %v3343 = vadd.f32 %v3332, 1.0
    %v3344 = vadd.f32 %v3334, 1.0
    %v3345 = vadd.f32 %v3336, 1.0
    %v3346 = vadd.f32 %v3338, 1.0
    %v3347 = vrcp.pop %v3339
    %v3348 = vmul.f32 %v3339, %v3347
    %v3349 = vsub.f32 1.0, %v3348
    %v3350 = vmul.f32 %v3347, %v3349
    %v3351 = vadd.f32 %v3347, %v3350
    %vm3352 = vweird.f32 %v3339
    %vm3353 = vweird.f32 %v3347
    %vm3354 = vmor %vm3352, %vm3353
    %v3355 = vsel %vm3354, %v3347, %v3351
    %v3356 = vand.u32 2147483647, %v3339
    %vm3357 = vcmp.eq.f32.partialorder %v3356, 8.507059e+37
    %v3358 = vand.u32 %v3339, 2147483648
    %v3359 = vor.u32 1.1754944e-38, %v3358
    %v3360 = vsel %vm3357, %v3359, %v3355
    %v3361 = vmul.f32 1.0, %v3360
    %v3362 = vrcp.pop %v3340
    %v3363 = vmul.f32 %v3340, %v3362
    %v3364 = vsub.f32 1.0, %v3363
    %v3365 = vmul.f32 %v3362, %v3364
    %v3366 = vadd.f32 %v3362, %v3365
    %vm3367 = vweird.f32 %v3340
    %vm3368 = vweird.f32 %v3362
    %vm3369 = vmor %vm3367, %vm3368
    %v3370 = vsel %vm3369, %v3362, %v3366
    %v3371 = vand.u32 2147483647, %v3340
    %vm3372 = vcmp.eq.f32.partialorder %v3371, 8.507059e+37
    %v3373 = vand.u32 %v3340, 2147483648
    %v3374 = vor.u32 1.1754944e-38, %v3373
    %v3375 = vsel %vm3372, %v3374, %v3370
    %v3376 = vmul.f32 1.0, %v3375
    %v3377 = vrcp.pop %v3341
    %v3378 = vmul.f32 %v3341, %v3377
    %v3379 = vsub.f32 1.0, %v3378
    %v3380 = vmul.f32 %v3377, %v3379
    %v3381 = vadd.f32 %v3377, %v3380
    %vm3382 = vweird.f32 %v3341
    %vm3383 = vweird.f32 %v3377
    %vm3384 = vmor %vm3382, %vm3383
    %v3385 = vsel %vm3384, %v3377, %v3381
    %v3386 = vand.u32 2147483647, %v3341
    %vm3387 = vcmp.eq.f32.partialorder %v3386, 8.507059e+37
    %v3388 = vand.u32 %v3341, 2147483648
    %v3389 = vor.u32 1.1754944e-38, %v3388
    %v3390 = vsel %vm3387, %v3389, %v3385
    %v3391 = vmul.f32 1.0, %v3390
    %v3392 = vrcp.pop %v3342
    %v3393 = vmul.f32 %v3342, %v3392
    %v3394 = vsub.f32 1.0, %v3393
    %v3395 = vmul.f32 %v3392, %v3394
    %v3396 = vadd.f32 %v3392, %v3395
    %vm3397 = vweird.f32 %v3342
    %vm3398 = vweird.f32 %v3392
    %vm3399 = vmor %vm3397, %vm3398
    %v3400 = vsel %vm3399, %v3392, %v3396
    %v3401 = vand.u32 2147483647, %v3342
    %vm3402 = vcmp.eq.f32.partialorder %v3401, 8.507059e+37
    %v3403 = vand.u32 %v3342, 2147483648
    %v3404 = vor.u32 1.1754944e-38, %v3403
    %v3405 = vsel %vm3402, %v3404, %v3400
    %v3406 = vmul.f32 1.0, %v3405
    %v3407 = vrcp.pop %v3343
    %v3408 = vmul.f32 %v3343, %v3407
    %v3409 = vsub.f32 1.0, %v3408
    %v3410 = vmul.f32 %v3407, %v3409
    %v3411 = vadd.f32 %v3407, %v3410
    %vm3412 = vweird.f32 %v3343
    %vm3413 = vweird.f32 %v3407
    %vm3414 = vmor %vm3412, %vm3413
    %v3415 = vsel %vm3414, %v3407, %v3411
    %v3416 = vand.u32 2147483647, %v3343
    %vm3417 = vcmp.eq.f32.partialorder %v3416, 8.507059e+37
    %v3418 = vand.u32 %v3343, 2147483648
    %v3419 = vor.u32 1.1754944e-38, %v3418
    %v3420 = vsel %vm3417, %v3419, %v3415
    %v3421 = vmul.f32 1.0, %v3420
    %v3422 = vrcp.pop %v3344
    %v3423 = vmul.f32 %v3344, %v3422
    %v3424 = vsub.f32 1.0, %v3423
    %v3425 = vmul.f32 %v3422, %v3424
    %v3426 = vadd.f32 %v3422, %v3425
    %vm3427 = vweird.f32 %v3344
    %vm3428 = vweird.f32 %v3422
    %vm3429 = vmor %vm3427, %vm3428
    %v3430 = vsel %vm3429, %v3422, %v3426
    %v3431 = vand.u32 2147483647, %v3344
    %vm3432 = vcmp.eq.f32.partialorder %v3431, 8.507059e+37
    %v3433 = vand.u32 %v3344, 2147483648
    %v3434 = vor.u32 1.1754944e-38, %v3433
    %v3435 = vsel %vm3432, %v3434, %v3430
    %v3436 = vmul.f32 1.0, %v3435
    %v3437 = vrcp.pop %v3345
    %v3438 = vmul.f32 %v3345, %v3437
    %v3439 = vsub.f32 1.0, %v3438
    %v3440 = vmul.f32 %v3437, %v3439
    %v3441 = vadd.f32 %v3437, %v3440
    %vm3442 = vweird.f32 %v3345
    %vm3443 = vweird.f32 %v3437
    %vm3444 = vmor %vm3442, %vm3443
    %v3445 = vsel %vm3444, %v3437, %v3441
    %v3446 = vand.u32 2147483647, %v3345
    %vm3447 = vcmp.eq.f32.partialorder %v3446, 8.507059e+37
    %v3448 = vand.u32 %v3345, 2147483648
    %v3449 = vor.u32 1.1754944e-38, %v3448
    %v3450 = vsel %vm3447, %v3449, %v3445
    %v3451 = vmul.f32 1.0, %v3450
    %v3452 = vrcp.pop %v3346
    %v3453 = vmul.f32 %v3346, %v3452
    %v3454 = vsub.f32 1.0, %v3453
    %v3455 = vmul.f32 %v3452, %v3454
    %v3456 = vadd.f32 %v3452, %v3455
    %vm3457 = vweird.f32 %v3346
    %vm3458 = vweird.f32 %v3452
    %vm3459 = vmor %vm3457, %vm3458
    %v3460 = vsel %vm3459, %v3452, %v3456
    %v3461 = vand.u32 2147483647, %v3346
    %vm3462 = vcmp.eq.f32.partialorder %v3461, 8.507059e+37
    %v3463 = vand.u32 %v3346, 2147483648
    %v3464 = vor.u32 1.1754944e-38, %v3463
    %v3465 = vsel %vm3462, %v3464, %v3460
    %v3466 = vmul.f32 1.0, %v3465
    %v3467 = vadd.f32 %v3124, %v1437
    %v3468 = vadd.f32 %v3127, %v1437
    %v3469 = vadd.f32 %v3130, %v1437
    %v3470 = vadd.f32 %v3133, %v1437
    %v3471 = vadd.f32 %v3136, %v1437
    %v3472 = vadd.f32 %v3139, %v1437
    %v3473 = vadd.f32 %v3142, %v1437
    %v3474 = vadd.f32 %v3145, %v1437
    %v3475 = vmul.f32 %v3201, %v3467
    %v3476 = vmul.f32 %v3216, %v3468
    %v3477 = vmul.f32 %v3231, %v3469
    %v3478 = vmul.f32 %v3246, %v3470
    %v3479 = vmul.f32 %v3261, %v3471
    %v3480 = vmul.f32 %v3276, %v3472
    %v3481 = vmul.f32 %v3291, %v3473
    %v3482 = vmul.f32 %v3306, %v3474
    %v3483 = vadd.f32 %v849, %v3475
    %v3484 = vadd.f32 %v852, %v3476
    %v3485 = vadd.f32 %v855, %v3477
    %v3486 = vadd.f32 %v858, %v3478
    %v3487 = vadd.f32 %v861, %v3479
    %v3488 = vadd.f32 %v864, %v3480
    %v3489 = vadd.f32 %v867, %v3481
    %v3490 = vadd.f32 %v870, %v3482
    %v3491 = vtanh.pop %v3483
    %v3492 = vtanh.pop %v3484
    %v3493 = vtanh.pop %v3485
    %v3494 = vtanh.pop %v3486
    %v3495 = vtanh.pop %v3487
    %v3496 = vtanh.pop %v3488
    %v3497 = vtanh.pop %v3489
    %v3498 = vtanh.pop %v3490
    %v3499 = vsub.f32 1.0, %v3361
    %v3500 = vsub.f32 1.0, %v3376
    %v3501 = vsub.f32 1.0, %v3391
    %v3502 = vsub.f32 1.0, %v3406
    %v3503 = vsub.f32 1.0, %v3421
    %v3504 = vsub.f32 1.0, %v3436
    %v3505 = vsub.f32 1.0, %v3451
    %v3506 = vsub.f32 1.0, %v3466
    %v3507 = vmul.f32 %v3499, %v3491
    %v3508 = vmul.f32 %v3500, %v3492
    %v3509 = vmul.f32 %v3501, %v3493
    %v3510 = vmul.f32 %v3502, %v3494
    %v3511 = vmul.f32 %v3503, %v3495
    %v3512 = vmul.f32 %v3504, %v3496
    %v3513 = vmul.f32 %v3505, %v3497
    %v3514 = vmul.f32 %v3506, %v3498
    %v3515 = vmul.f32 %v3361, %v3016
    %v3516 = vmul.f32 %v3376, %v3017
    %v3517 = vmul.f32 %v3391, %v3018
    %v3518 = vmul.f32 %v3406, %v3019
    %v3519 = vmul.f32 %v3421, %v3020
    %v3520 = vmul.f32 %v3436, %v3021
    %v3521 = vmul.f32 %v3451, %v3022
    %v3522 = vmul.f32 %v3466, %v3023
    %v3523 = vadd.f32 %v3507, %v3515
    %v3524 = vadd.f32 %v3508, %v3516
    %v3525 = vadd.f32 %v3509, %v3517
    %v3526 = vadd.f32 %v3510, %v3518
    %v3527 = vadd.f32 %v3511, %v3519
    %v3528 = vadd.f32 %v3512, %v3520
    %v3529 = vadd.f32 %v3513, %v3521
    %v3530 = vadd.f32 %v3514, %v3522
    %3531 = vmatpush.msra.mxu0 %v989
    %3532 = vmatpush.msra.mxu0 %v986
    %3533 = vmatpush.msra.mxu0 %v983
    %3534 = vmatpush.msra.mxu0 %v980
    %3535 = vmatpush.msra.mxu0 %v977
    %3536 = vmatpush.msra.mxu0 %v974
    %3537 = vmatpush.msra.mxu0 %v971
    %3538 = vmatpush.msra.mxu0 %v968
    %3539 = vmatpush.msra.mxu0 %v965
    %3540 = vmatpush.msra.mxu0 %v962
    %3541 = vmatpush.msra.mxu0 %v959
    %3542 = vmatpush.msra.mxu0 %v956
    %3543 = vmatpush.msra.mxu0 %v953
    %3544 = vmatpush.msra.mxu0 %v950
    %3545 = vmatpush.msra.mxu0 %v947
    %3546 = vmatpush.msra.mxu0 %v944
    %3547 = vmatmul.f32.gmra.mxu0 %v3523
    %v3548 = vpop.f32.mrf.mxu0
    %v3549 = vadd.f32 0.0, %v3548
    %3550 = vmatmul.f32.gmra.mxu0 %v3524
    %v3551 = vpop.f32.mrf.mxu0
    %v3552 = vadd.f32 0.0, %v3551
    %3553 = vmatmul.f32.gmra.mxu0 %v3525
    %v3554 = vpop.f32.mrf.mxu0
    %v3555 = vadd.f32 0.0, %v3554
    %3556 = vmatmul.f32.gmra.mxu0 %v3526
    %v3557 = vpop.f32.mrf.mxu0
    %v3558 = vadd.f32 0.0, %v3557
    %3559 = vmatmul.f32.gmra.mxu0 %v3527
    %v3560 = vpop.f32.mrf.mxu0
    %v3561 = vadd.f32 0.0, %v3560
    %3562 = vmatmul.f32.gmra.mxu0 %v3528
    %v3563 = vpop.f32.mrf.mxu0
    %v3564 = vadd.f32 0.0, %v3563
    %3565 = vmatmul.f32.gmra.mxu0 %v3529
    %v3566 = vpop.f32.mrf.mxu0
    %v3567 = vadd.f32 0.0, %v3566
    %3568 = vmatmul.f32.gmra.mxu0 %v3530
    %v3569 = vpop.f32.mrf.mxu0
    %v3570 = vadd.f32 0.0, %v3569
    %3571 = vdwg.mxu0
    %3572 = vmatpush.msra.mxu0 %v990
    %3573 = vmatpush.msra.mxu0 %v987
    %3574 = vmatpush.msra.mxu0 %v984
    %3575 = vmatpush.msra.mxu0 %v981
    %3576 = vmatpush.msra.mxu0 %v978
    %3577 = vmatpush.msra.mxu0 %v975
    %3578 = vmatpush.msra.mxu0 %v972
    %3579 = vmatpush.msra.mxu0 %v969
    %3580 = vmatpush.msra.mxu0 %v966
    %3581 = vmatpush.msra.mxu0 %v963
    %3582 = vmatpush.msra.mxu0 %v960
    %3583 = vmatpush.msra.mxu0 %v957
    %3584 = vmatpush.msra.mxu0 %v954
    %3585 = vmatpush.msra.mxu0 %v951
    %3586 = vmatpush.msra.mxu0 %v948
    %3587 = vmatpush.msra.mxu0 %v945
    %3588 = vmatmul.f32.gmra.mxu0 %v3523
    %v3589 = vpop.f32.mrf.mxu0
    %v3590 = vadd.f32 0.0, %v3589
    %3591 = vmatmul.f32.gmra.mxu0 %v3524
    %v3592 = vpop.f32.mrf.mxu0
    %v3593 = vadd.f32 0.0, %v3592
    %3594 = vmatmul.f32.gmra.mxu0 %v3525
    %v3595 = vpop.f32.mrf.mxu0
    %v3596 = vadd.f32 0.0, %v3595
    %3597 = vmatmul.f32.gmra.mxu0 %v3526
    %v3598 = vpop.f32.mrf.mxu0
    %v3599 = vadd.f32 0.0, %v3598
    %3600 = vmatmul.f32.gmra.mxu0 %v3527
    %v3601 = vpop.f32.mrf.mxu0
    %v3602 = vadd.f32 0.0, %v3601
    %3603 = vmatmul.f32.gmra.mxu0 %v3528
    %v3604 = vpop.f32.mrf.mxu0
    %v3605 = vadd.f32 0.0, %v3604
    %3606 = vmatmul.f32.gmra.mxu0 %v3529
    %v3607 = vpop.f32.mrf.mxu0
    %v3608 = vadd.f32 0.0, %v3607
    %3609 = vmatmul.f32.gmra.mxu0 %v3530
    %v3610 = vpop.f32.mrf.mxu0
    %v3611 = vadd.f32 0.0, %v3610
    %3612 = vdwg.mxu0
    %3613 = vmatpush.msra.mxu0 %v991
    %3614 = vmatpush.msra.mxu0 %v988
    %3615 = vmatpush.msra.mxu0 %v985
    %3616 = vmatpush.msra.mxu0 %v982
    %3617 = vmatpush.msra.mxu0 %v979
    %3618 = vmatpush.msra.mxu0 %v976
    %3619 = vmatpush.msra.mxu0 %v973
    %3620 = vmatpush.msra.mxu0 %v970
    %3621 = vmatpush.msra.mxu0 %v967
    %3622 = vmatpush.msra.mxu0 %v964
    %3623 = vmatpush.msra.mxu0 %v961
    %3624 = vmatpush.msra.mxu0 %v958
    %3625 = vmatpush.msra.mxu0 %v955
    %3626 = vmatpush.msra.mxu0 %v952
    %3627 = vmatpush.msra.mxu0 %v949
    %3628 = vmatpush.msra.mxu0 %v946
    %3629 = vmatmul.f32.gmra.mxu0 %v3523
    %v3630 = vpop.f32.mrf.mxu0
    %v3631 = vadd.f32 0.0, %v3630
    %3632 = vmatmul.f32.gmra.mxu0 %v3524
    %v3633 = vpop.f32.mrf.mxu0
    %v3634 = vadd.f32 0.0, %v3633
    %3635 = vmatmul.f32.gmra.mxu0 %v3525
    %v3636 = vpop.f32.mrf.mxu0
    %v3637 = vadd.f32 0.0, %v3636
    %3638 = vmatmul.f32.gmra.mxu0 %v3526
    %v3639 = vpop.f32.mrf.mxu0
    %v3640 = vadd.f32 0.0, %v3639
    %3641 = vmatmul.f32.gmra.mxu0 %v3527
    %v3642 = vpop.f32.mrf.mxu0
    %v3643 = vadd.f32 0.0, %v3642
    %3644 = vmatmul.f32.gmra.mxu0 %v3528
    %v3645 = vpop.f32.mrf.mxu0
    %v3646 = vadd.f32 0.0, %v3645
    %3647 = vmatmul.f32.gmra.mxu0 %v3529
    %v3648 = vpop.f32.mrf.mxu0
    %v3649 = vadd.f32 0.0, %v3648
    %3650 = vmatmul.f32.gmra.mxu0 %v3530
    %v3651 = vpop.f32.mrf.mxu0
    %v3652 = vadd.f32 0.0, %v3651
    %3653 = vdwg.mxu0
    %v3654 = vadd.f32 %v455, %v3549
    %v3655 = vadd.f32 %v458, %v3552
    %v3656 = vadd.f32 %v461, %v3555
    %v3657 = vadd.f32 %v464, %v3558
    %v3658 = vadd.f32 %v467, %v3561
    %v3659 = vadd.f32 %v470, %v3564
    %v3660 = vadd.f32 %v473, %v3567
    %v3661 = vadd.f32 %v476, %v3570
    %v3662 = vxor.u32 %v3654, 2147483648
    %v3663 = vxor.u32 %v3655, 2147483648
    %v3664 = vxor.u32 %v3656, 2147483648
    %v3665 = vxor.u32 %v3657, 2147483648
    %v3666 = vxor.u32 %v3658, 2147483648
    %v3667 = vxor.u32 %v3659, 2147483648
    %v3668 = vxor.u32 %v3660, 2147483648
    %v3669 = vxor.u32 %v3661, 2147483648
    %v3670 = vmul.f32 %v3662, 1.442695
    %v3671 = vpow.pop %v3670
    %v3672 = vmul.f32 %v3663, 1.442695
    %v3673 = vpow.pop %v3672
    %v3674 = vmul.f32 %v3664, 1.442695
    %v3675 = vpow.pop %v3674
    %v3676 = vmul.f32 %v3665, 1.442695
    %v3677 = vpow.pop %v3676
    %v3678 = vmul.f32 %v3666, 1.442695
    %v3679 = vpow.pop %v3678
    %v3680 = vmul.f32 %v3667, 1.442695
    %v3681 = vpow.pop %v3680
    %v3682 = vmul.f32 %v3668, 1.442695
    %v3683 = vpow.pop %v3682
    %v3684 = vmul.f32 %v3669, 1.442695
    %v3685 = vpow.pop %v3684
    %v3686 = vadd.f32 %v3671, 1.0
    %v3687 = vadd.f32 %v3673, 1.0
    %v3688 = vadd.f32 %v3675, 1.0
    %v3689 = vadd.f32 %v3677, 1.0
    %v3690 = vadd.f32 %v3679, 1.0
    %v3691 = vadd.f32 %v3681, 1.0
    %v3692 = vadd.f32 %v3683, 1.0
    %v3693 = vadd.f32 %v3685, 1.0
    %v3694 = vrcp.pop %v3686
    %v3695 = vmul.f32 %v3686, %v3694
    %v3696 = vsub.f32 1.0, %v3695
    %v3697 = vmul.f32 %v3694, %v3696
    %v3698 = vadd.f32 %v3694, %v3697
    %vm3699 = vweird.f32 %v3686
    %vm3700 = vweird.f32 %v3694
    %vm3701 = vmor %vm3699, %vm3700
    %v3702 = vsel %vm3701, %v3694, %v3698
    %v3703 = vand.u32 2147483647, %v3686
    %vm3704 = vcmp.eq.f32.partialorder %v3703, 8.507059e+37
    %v3705 = vand.u32 %v3686, 2147483648
    %v3706 = vor.u32 1.1754944e-38, %v3705
    %v3707 = vsel %vm3704, %v3706, %v3702
    %v3708 = vmul.f32 1.0, %v3707
    %v3709 = vrcp.pop %v3687
    %v3710 = vmul.f32 %v3687, %v3709
    %v3711 = vsub.f32 1.0, %v3710
    %v3712 = vmul.f32 %v3709, %v3711
    %v3713 = vadd.f32 %v3709, %v3712
    %vm3714 = vweird.f32 %v3687
    %vm3715 = vweird.f32 %v3709
    %vm3716 = vmor %vm3714, %vm3715
    %v3717 = vsel %vm3716, %v3709, %v3713
    %v3718 = vand.u32 2147483647, %v3687
    %vm3719 = vcmp.eq.f32.partialorder %v3718, 8.507059e+37
    %v3720 = vand.u32 %v3687, 2147483648
    %v3721 = vor.u32 1.1754944e-38, %v3720
    %v3722 = vsel %vm3719, %v3721, %v3717
    %v3723 = vmul.f32 1.0, %v3722
    %v3724 = vrcp.pop %v3688
    %v3725 = vmul.f32 %v3688, %v3724
    %v3726 = vsub.f32 1.0, %v3725
    %v3727 = vmul.f32 %v3724, %v3726
    %v3728 = vadd.f32 %v3724, %v3727
    %vm3729 = vweird.f32 %v3688
    %vm3730 = vweird.f32 %v3724
    %vm3731 = vmor %vm3729, %vm3730
    %v3732 = vsel %vm3731, %v3724, %v3728
    %v3733 = vand.u32 2147483647, %v3688
    %vm3734 = vcmp.eq.f32.partialorder %v3733, 8.507059e+37
    %v3735 = vand.u32 %v3688, 2147483648
    %v3736 = vor.u32 1.1754944e-38, %v3735
    %v3737 = vsel %vm3734, %v3736, %v3732
    %v3738 = vmul.f32 1.0, %v3737
    %v3739 = vrcp.pop %v3689
    %v3740 = vmul.f32 %v3689, %v3739
    %v3741 = vsub.f32 1.0, %v3740
    %v3742 = vmul.f32 %v3739, %v3741
    %v3743 = vadd.f32 %v3739, %v3742
    %vm3744 = vweird.f32 %v3689
    %vm3745 = vweird.f32 %v3739
    %vm3746 = vmor %vm3744, %vm3745
    %v3747 = vsel %vm3746, %v3739, %v3743
    %v3748 = vand.u32 2147483647, %v3689
    %vm3749 = vcmp.eq.f32.partialorder %v3748, 8.507059e+37
    %v3750 = vand.u32 %v3689, 2147483648
    %v3751 = vor.u32 1.1754944e-38, %v3750
    %v3752 = vsel %vm3749, %v3751, %v3747
    %v3753 = vmul.f32 1.0, %v3752
    %v3754 = vrcp.pop %v3690
    %v3755 = vmul.f32 %v3690, %v3754
    %v3756 = vsub.f32 1.0, %v3755
    %v3757 = vmul.f32 %v3754, %v3756
    %v3758 = vadd.f32 %v3754, %v3757
    %vm3759 = vweird.f32 %v3690
    %vm3760 = vweird.f32 %v3754
    %vm3761 = vmor %vm3759, %vm3760
    %v3762 = vsel %vm3761, %v3754, %v3758
    %v3763 = vand.u32 2147483647, %v3690
    %vm3764 = vcmp.eq.f32.partialorder %v3763, 8.507059e+37
    %v3765 = vand.u32 %v3690, 2147483648
    %v3766 = vor.u32 1.1754944e-38, %v3765
    %v3767 = vsel %vm3764, %v3766, %v3762
    %v3768 = vmul.f32 1.0, %v3767
    %v3769 = vrcp.pop %v3691
    %v3770 = vmul.f32 %v3691, %v3769
    %v3771 = vsub.f32 1.0, %v3770
    %v3772 = vmul.f32 %v3769, %v3771
    %v3773 = vadd.f32 %v3769, %v3772
    %vm3774 = vweird.f32 %v3691
    %vm3775 = vweird.f32 %v3769
    %vm3776 = vmor %vm3774, %vm3775
    %v3777 = vsel %vm3776, %v3769, %v3773
    %v3778 = vand.u32 2147483647, %v3691
    %vm3779 = vcmp.eq.f32.partialorder %v3778, 8.507059e+37
    %v3780 = vand.u32 %v3691, 2147483648
    %v3781 = vor.u32 1.1754944e-38, %v3780
    %v3782 = vsel %vm3779, %v3781, %v3777
    %v3783 = vmul.f32 1.0, %v3782
    %v3784 = vrcp.pop %v3692
    %v3785 = vmul.f32 %v3692, %v3784
    %v3786 = vsub.f32 1.0, %v3785
    %v3787 = vmul.f32 %v3784, %v3786
    %v3788 = vadd.f32 %v3784, %v3787
    %vm3789 = vweird.f32 %v3692
    %vm3790 = vweird.f32 %v3784
    %vm3791 = vmor %vm3789, %vm3790
    %v3792 = vsel %vm3791, %v3784, %v3788
    %v3793 = vand.u32 2147483647, %v3692
    %vm3794 = vcmp.eq.f32.partialorder %v3793, 8.507059e+37
    %v3795 = vand.u32 %v3692, 2147483648
    %v3796 = vor.u32 1.1754944e-38, %v3795
    %v3797 = vsel %vm3794, %v3796, %v3792
    %v3798 = vmul.f32 1.0, %v3797
    %v3799 = vrcp.pop %v3693
    %v3800 = vmul.f32 %v3693, %v3799
    %v3801 = vsub.f32 1.0, %v3800
    %v3802 = vmul.f32 %v3799, %v3801
    %v3803 = vadd.f32 %v3799, %v3802
    %vm3804 = vweird.f32 %v3693
    %vm3805 = vweird.f32 %v3799
    %vm3806 = vmor %vm3804, %vm3805
    %v3807 = vsel %vm3806, %v3799, %v3803
    %v3808 = vand.u32 2147483647, %v3693
    %vm3809 = vcmp.eq.f32.partialorder %v3808, 8.507059e+37
    %v3810 = vand.u32 %v3693, 2147483648
    %v3811 = vor.u32 1.1754944e-38, %v3810
    %v3812 = vsel %vm3809, %v3811, %v3807
    %v3813 = vmul.f32 1.0, %v3812
    %v3814 = vadd.f32 %v664, %v3590
    %v3815 = vadd.f32 %v667, %v3593
    %v3816 = vadd.f32 %v670, %v3596
    %v3817 = vadd.f32 %v673, %v3599
    %v3818 = vadd.f32 %v676, %v3602
    %v3819 = vadd.f32 %v679, %v3605
    %v3820 = vadd.f32 %v682, %v3608
    %v3821 = vadd.f32 %v685, %v3611
    %v3822 = vxor.u32 %v3814, 2147483648
    %v3823 = vxor.u32 %v3815, 2147483648
    %v3824 = vxor.u32 %v3816, 2147483648
    %v3825 = vxor.u32 %v3817, 2147483648
    %v3826 = vxor.u32 %v3818, 2147483648
    %v3827 = vxor.u32 %v3819, 2147483648
    %v3828 = vxor.u32 %v3820, 2147483648
    %v3829 = vxor.u32 %v3821, 2147483648
    %v3830 = vmul.f32 %v3822, 1.442695
    %v3831 = vpow.pop %v3830
    %v3832 = vmul.f32 %v3823, 1.442695
    %v3833 = vpow.pop %v3832
    %v3834 = vmul.f32 %v3824, 1.442695
    %v3835 = vpow.pop %v3834
    %v3836 = vmul.f32 %v3825, 1.442695
    %v3837 = vpow.pop %v3836
    %v3838 = vmul.f32 %v3826, 1.442695
    %v3839 = vpow.pop %v3838
    %v3840 = vmul.f32 %v3827, 1.442695
    %v3841 = vpow.pop %v3840
    %v3842 = vmul.f32 %v3828, 1.442695
    %v3843 = vpow.pop %v3842
    %v3844 = vmul.f32 %v3829, 1.442695
    %v3845 = vpow.pop %v3844
    %v3846 = vadd.f32 %v3831, 1.0
    %v3847 = vadd.f32 %v3833, 1.0
    %v3848 = vadd.f32 %v3835, 1.0
    %v3849 = vadd.f32 %v3837, 1.0
    %v3850 = vadd.f32 %v3839, 1.0
    %v3851 = vadd.f32 %v3841, 1.0
    %v3852 = vadd.f32 %v3843, 1.0
    %v3853 = vadd.f32 %v3845, 1.0
    %v3854 = vrcp.pop %v3846
    %v3855 = vmul.f32 %v3846, %v3854
    %v3856 = vsub.f32 1.0, %v3855
    %v3857 = vmul.f32 %v3854, %v3856
    %v3858 = vadd.f32 %v3854, %v3857
    %vm3859 = vweird.f32 %v3846
    %vm3860 = vweird.f32 %v3854
    %vm3861 = vmor %vm3859, %vm3860
    %v3862 = vsel %vm3861, %v3854, %v3858
    %v3863 = vand.u32 2147483647, %v3846
    %vm3864 = vcmp.eq.f32.partialorder %v3863, 8.507059e+37
    %v3865 = vand.u32 %v3846, 2147483648
    %v3866 = vor.u32 1.1754944e-38, %v3865
    %v3867 = vsel %vm3864, %v3866, %v3862
    %v3868 = vmul.f32 1.0, %v3867
    %v3869 = vrcp.pop %v3847
    %v3870 = vmul.f32 %v3847, %v3869
    %v3871 = vsub.f32 1.0, %v3870
    %v3872 = vmul.f32 %v3869, %v3871
    %v3873 = vadd.f32 %v3869, %v3872
    %vm3874 = vweird.f32 %v3847
    %vm3875 = vweird.f32 %v3869
    %vm3876 = vmor %vm3874, %vm3875
    %v3877 = vsel %vm3876, %v3869, %v3873
    %v3878 = vand.u32 2147483647, %v3847
    %vm3879 = vcmp.eq.f32.partialorder %v3878, 8.507059e+37
    %v3880 = vand.u32 %v3847, 2147483648
    %v3881 = vor.u32 1.1754944e-38, %v3880
    %v3882 = vsel %vm3879, %v3881, %v3877
    %v3883 = vmul.f32 1.0, %v3882
    %v3884 = vrcp.pop %v3848
    %v3885 = vmul.f32 %v3848, %v3884
    %v3886 = vsub.f32 1.0, %v3885
    %v3887 = vmul.f32 %v3884, %v3886
    %v3888 = vadd.f32 %v3884, %v3887
    %vm3889 = vweird.f32 %v3848
    %vm3890 = vweird.f32 %v3884
    %vm3891 = vmor %vm3889, %vm3890
    %v3892 = vsel %vm3891, %v3884, %v3888
    %v3893 = vand.u32 2147483647, %v3848
    %vm3894 = vcmp.eq.f32.partialorder %v3893, 8.507059e+37
    %v3895 = vand.u32 %v3848, 2147483648
    %v3896 = vor.u32 1.1754944e-38, %v3895
    %v3897 = vsel %vm3894, %v3896, %v3892
    %v3898 = vmul.f32 1.0, %v3897
    %v3899 = vrcp.pop %v3849
    %v3900 = vmul.f32 %v3849, %v3899
    %v3901 = vsub.f32 1.0, %v3900
    %v3902 = vmul.f32 %v3899, %v3901
    %v3903 = vadd.f32 %v3899, %v3902
    %vm3904 = vweird.f32 %v3849
    %vm3905 = vweird.f32 %v3899
    %vm3906 = vmor %vm3904, %vm3905
    %v3907 = vsel %vm3906, %v3899, %v3903
    %v3908 = vand.u32 2147483647, %v3849
    %vm3909 = vcmp.eq.f32.partialorder %v3908, 8.507059e+37
    %v3910 = vand.u32 %v3849, 2147483648
    %v3911 = vor.u32 1.1754944e-38, %v3910
    %v3912 = vsel %vm3909, %v3911, %v3907
    %v3913 = vmul.f32 1.0, %v3912
    %v3914 = vrcp.pop %v3850
    %v3915 = vmul.f32 %v3850, %v3914
    %v3916 = vsub.f32 1.0, %v3915
    %v3917 = vmul.f32 %v3914, %v3916
    %v3918 = vadd.f32 %v3914, %v3917
    %vm3919 = vweird.f32 %v3850
    %vm3920 = vweird.f32 %v3914
    %vm3921 = vmor %vm3919, %vm3920
    %v3922 = vsel %vm3921, %v3914, %v3918
    %v3923 = vand.u32 2147483647, %v3850
    %vm3924 = vcmp.eq.f32.partialorder %v3923, 8.507059e+37
    %v3925 = vand.u32 %v3850, 2147483648
    %v3926 = vor.u32 1.1754944e-38, %v3925
    %v3927 = vsel %vm3924, %v3926, %v3922
    %v3928 = vmul.f32 1.0, %v3927
    %v3929 = vrcp.pop %v3851
    %v3930 = vmul.f32 %v3851, %v3929
    %v3931 = vsub.f32 1.0, %v3930
    %v3932 = vmul.f32 %v3929, %v3931
    %v3933 = vadd.f32 %v3929, %v3932
    %vm3934 = vweird.f32 %v3851
    %vm3935 = vweird.f32 %v3929
    %vm3936 = vmor %vm3934, %vm3935
    %v3937 = vsel %vm3936, %v3929, %v3933
    %v3938 = vand.u32 2147483647, %v3851
    %vm3939 = vcmp.eq.f32.partialorder %v3938, 8.507059e+37
    %v3940 = vand.u32 %v3851, 2147483648
    %v3941 = vor.u32 1.1754944e-38, %v3940
    %v3942 = vsel %vm3939, %v3941, %v3937
    %v3943 = vmul.f32 1.0, %v3942
    %v3944 = vrcp.pop %v3852
    %v3945 = vmul.f32 %v3852, %v3944
    %v3946 = vsub.f32 1.0, %v3945
    %v3947 = vmul.f32 %v3944, %v3946
    %v3948 = vadd.f32 %v3944, %v3947
    %vm3949 = vweird.f32 %v3852
    %vm3950 = vweird.f32 %v3944
    %vm3951 = vmor %vm3949, %vm3950
    %v3952 = vsel %vm3951, %v3944, %v3948
    %v3953 = vand.u32 2147483647, %v3852
    %vm3954 = vcmp.eq.f32.partialorder %v3953, 8.507059e+37
    %v3955 = vand.u32 %v3852, 2147483648
    %v3956 = vor.u32 1.1754944e-38, %v3955
    %v3957 = vsel %vm3954, %v3956, %v3952
    %v3958 = vmul.f32 1.0, %v3957
    %v3959 = vrcp.pop %v3853
    %v3960 = vmul.f32 %v3853, %v3959
    %v3961 = vsub.f32 1.0, %v3960
    %v3962 = vmul.f32 %v3959, %v3961
    %v3963 = vadd.f32 %v3959, %v3962
    %vm3964 = vweird.f32 %v3853
    %vm3965 = vweird.f32 %v3959
    %vm3966 = vmor %vm3964, %vm3965
    %v3967 = vsel %vm3966, %v3959, %v3963
    %v3968 = vand.u32 2147483647, %v3853
    %vm3969 = vcmp.eq.f32.partialorder %v3968, 8.507059e+37
    %v3970 = vand.u32 %v3853, 2147483648
    %v3971 = vor.u32 1.1754944e-38, %v3970
    %v3972 = vsel %vm3969, %v3971, %v3967
    %v3973 = vmul.f32 1.0, %v3972
    %v3974 = vadd.f32 %v3631, %v1437
    %v3975 = vadd.f32 %v3634, %v1437
    %v3976 = vadd.f32 %v3637, %v1437
    %v3977 = vadd.f32 %v3640, %v1437
    %v3978 = vadd.f32 %v3643, %v1437
    %v3979 = vadd.f32 %v3646, %v1437
    %v3980 = vadd.f32 %v3649, %v1437
    %v3981 = vadd.f32 %v3652, %v1437
    %v3982 = vmul.f32 %v3708, %v3974
    %v3983 = vmul.f32 %v3723, %v3975
    %v3984 = vmul.f32 %v3738, %v3976
    %v3985 = vmul.f32 %v3753, %v3977
    %v3986 = vmul.f32 %v3768, %v3978
    %v3987 = vmul.f32 %v3783, %v3979
    %v3988 = vmul.f32 %v3798, %v3980
    %v3989 = vmul.f32 %v3813, %v3981
    %v3990 = vadd.f32 %v873, %v3982
    %v3991 = vadd.f32 %v876, %v3983
    %v3992 = vadd.f32 %v879, %v3984
    %v3993 = vadd.f32 %v882, %v3985
    %v3994 = vadd.f32 %v885, %v3986
    %v3995 = vadd.f32 %v888, %v3987
    %v3996 = vadd.f32 %v891, %v3988
    %v3997 = vadd.f32 %v894, %v3989
    %v3998 = vtanh.pop %v3990
    %v3999 = vtanh.pop %v3991
    %v4000 = vtanh.pop %v3992
    %v4001 = vtanh.pop %v3993
    %v4002 = vtanh.pop %v3994
    %v4003 = vtanh.pop %v3995
    %v4004 = vtanh.pop %v3996
    %v4005 = vtanh.pop %v3997
    %v4006 = vsub.f32 1.0, %v3868
    %v4007 = vsub.f32 1.0, %v3883
    %v4008 = vsub.f32 1.0, %v3898
    %v4009 = vsub.f32 1.0, %v3913
    %v4010 = vsub.f32 1.0, %v3928
    %v4011 = vsub.f32 1.0, %v3943
    %v4012 = vsub.f32 1.0, %v3958
    %v4013 = vsub.f32 1.0, %v3973
    %v4014 = vmul.f32 %v4006, %v3998
    %v4015 = vmul.f32 %v4007, %v3999
    %v4016 = vmul.f32 %v4008, %v4000
    %v4017 = vmul.f32 %v4009, %v4001
    %v4018 = vmul.f32 %v4010, %v4002
    %v4019 = vmul.f32 %v4011, %v4003
    %v4020 = vmul.f32 %v4012, %v4004
    %v4021 = vmul.f32 %v4013, %v4005
    %v4022 = vmul.f32 %v3868, %v3523
    %v4023 = vmul.f32 %v3883, %v3524
    %v4024 = vmul.f32 %v3898, %v3525
    %v4025 = vmul.f32 %v3913, %v3526
    %v4026 = vmul.f32 %v3928, %v3527
    %v4027 = vmul.f32 %v3943, %v3528
    %v4028 = vmul.f32 %v3958, %v3529
    %v4029 = vmul.f32 %v3973, %v3530
    %v4030 = vadd.f32 %v4014, %v4022
    %v4031 = vadd.f32 %v4015, %v4023
    %v4032 = vadd.f32 %v4016, %v4024
    %v4033 = vadd.f32 %v4017, %v4025
    %v4034 = vadd.f32 %v4018, %v4026
    %v4035 = vadd.f32 %v4019, %v4027
    %v4036 = vadd.f32 %v4020, %v4028
    %v4037 = vadd.f32 %v4021, %v4029
    %4038 = vmatpush.msra.mxu0 %v989
    %4039 = vmatpush.msra.mxu0 %v986
    %4040 = vmatpush.msra.mxu0 %v983
    %4041 = vmatpush.msra.mxu0 %v980
    %4042 = vmatpush.msra.mxu0 %v977
    %4043 = vmatpush.msra.mxu0 %v974
    %4044 = vmatpush.msra.mxu0 %v971
    %4045 = vmatpush.msra.mxu0 %v968
    %4046 = vmatpush.msra.mxu0 %v965
    %4047 = vmatpush.msra.mxu0 %v962
    %4048 = vmatpush.msra.mxu0 %v959
    %4049 = vmatpush.msra.mxu0 %v956
    %4050 = vmatpush.msra.mxu0 %v953
    %4051 = vmatpush.msra.mxu0 %v950
    %4052 = vmatpush.msra.mxu0 %v947
    %4053 = vmatpush.msra.mxu0 %v944
    %4054 = vmatmul.f32.gmra.mxu0 %v4030
    %v4055 = vpop.f32.mrf.mxu0
    %v4056 = vadd.f32 0.0, %v4055
    %4057 = vmatmul.f32.gmra.mxu0 %v4031
    %v4058 = vpop.f32.mrf.mxu0
    %v4059 = vadd.f32 0.0, %v4058
    %4060 = vmatmul.f32.gmra.mxu0 %v4032
    %v4061 = vpop.f32.mrf.mxu0
    %v4062 = vadd.f32 0.0, %v4061
    %4063 = vmatmul.f32.gmra.mxu0 %v4033
    %v4064 = vpop.f32.mrf.mxu0
    %v4065 = vadd.f32 0.0, %v4064
    %4066 = vmatmul.f32.gmra.mxu0 %v4034
    %v4067 = vpop.f32.mrf.mxu0
    %v4068 = vadd.f32 0.0, %v4067
    %4069 = vmatmul.f32.gmra.mxu0 %v4035
    %v4070 = vpop.f32.mrf.mxu0
    %v4071 = vadd.f32 0.0, %v4070
    %4072 = vmatmul.f32.gmra.mxu0 %v4036
    %v4073 = vpop.f32.mrf.mxu0
    %v4074 = vadd.f32 0.0, %v4073
    %4075 = vmatmul.f32.gmra.mxu0 %v4037
    %v4076 = vpop.f32.mrf.mxu0
    %v4077 = vadd.f32 0.0, %v4076
    %4078 = vdwg.mxu0
    %4079 = vmatpush.msra.mxu0 %v990
    %4080 = vmatpush.msra.mxu0 %v987
    %4081 = vmatpush.msra.mxu0 %v984
    %4082 = vmatpush.msra.mxu0 %v981
    %4083 = vmatpush.msra.mxu0 %v978
    %4084 = vmatpush.msra.mxu0 %v975
    %4085 = vmatpush.msra.mxu0 %v972
    %4086 = vmatpush.msra.mxu0 %v969
    %4087 = vmatpush.msra.mxu0 %v966
    %4088 = vmatpush.msra.mxu0 %v963
    %4089 = vmatpush.msra.mxu0 %v960
    %4090 = vmatpush.msra.mxu0 %v957
    %4091 = vmatpush.msra.mxu0 %v954
    %4092 = vmatpush.msra.mxu0 %v951
    %4093 = vmatpush.msra.mxu0 %v948
    %4094 = vmatpush.msra.mxu0 %v945
    %4095 = vmatmul.f32.gmra.mxu0 %v4030
    %v4096 = vpop.f32.mrf.mxu0
    %v4097 = vadd.f32 0.0, %v4096
    %4098 = vmatmul.f32.gmra.mxu0 %v4031
    %v4099 = vpop.f32.mrf.mxu0
    %v4100 = vadd.f32 0.0, %v4099
    %4101 = vmatmul.f32.gmra.mxu0 %v4032
    %v4102 = vpop.f32.mrf.mxu0
    %v4103 = vadd.f32 0.0, %v4102
    %4104 = vmatmul.f32.gmra.mxu0 %v4033
    %v4105 = vpop.f32.mrf.mxu0
    %v4106 = vadd.f32 0.0, %v4105
    %4107 = vmatmul.f32.gmra.mxu0 %v4034
    %v4108 = vpop.f32.mrf.mxu0
    %v4109 = vadd.f32 0.0, %v4108
    %4110 = vmatmul.f32.gmra.mxu0 %v4035
    %v4111 = vpop.f32.mrf.mxu0
    %v4112 = vadd.f32 0.0, %v4111
    %4113 = vmatmul.f32.gmra.mxu0 %v4036
    %v4114 = vpop.f32.mrf.mxu0
    %v4115 = vadd.f32 0.0, %v4114
    %4116 = vmatmul.f32.gmra.mxu0 %v4037
    %v4117 = vpop.f32.mrf.mxu0
    %v4118 = vadd.f32 0.0, %v4117
    %4119 = vdwg.mxu0
    %4120 = vmatpush.msra.mxu0 %v991
    %4121 = vmatpush.msra.mxu0 %v988
    %4122 = vmatpush.msra.mxu0 %v985
    %4123 = vmatpush.msra.mxu0 %v982
    %4124 = vmatpush.msra.mxu0 %v979
    %4125 = vmatpush.msra.mxu0 %v976
    %4126 = vmatpush.msra.mxu0 %v973
    %4127 = vmatpush.msra.mxu0 %v970
    %4128 = vmatpush.msra.mxu0 %v967
    %4129 = vmatpush.msra.mxu0 %v964
    %4130 = vmatpush.msra.mxu0 %v961
    %4131 = vmatpush.msra.mxu0 %v958
    %4132 = vmatpush.msra.mxu0 %v955
    %4133 = vmatpush.msra.mxu0 %v952
    %4134 = vmatpush.msra.mxu0 %v949
    %4135 = vmatpush.msra.mxu0 %v946
    %4136 = vmatmul.f32.gmra.mxu0 %v4030
    %v4137 = vpop.f32.mrf.mxu0
    %v4138 = vadd.f32 0.0, %v4137
    %4139 = vmatmul.f32.gmra.mxu0 %v4031
    %v4140 = vpop.f32.mrf.mxu0
    %v4141 = vadd.f32 0.0, %v4140
    %4142 = vmatmul.f32.gmra.mxu0 %v4032
    %v4143 = vpop.f32.mrf.mxu0
    %v4144 = vadd.f32 0.0, %v4143
    %4145 = vmatmul.f32.gmra.mxu0 %v4033
    %v4146 = vpop.f32.mrf.mxu0
    %v4147 = vadd.f32 0.0, %v4146
    %4148 = vmatmul.f32.gmra.mxu0 %v4034
    %v4149 = vpop.f32.mrf.mxu0
    %v4150 = vadd.f32 0.0, %v4149
    %4151 = vmatmul.f32.gmra.mxu0 %v4035
    %v4152 = vpop.f32.mrf.mxu0
    %v4153 = vadd.f32 0.0, %v4152
    %4154 = vmatmul.f32.gmra.mxu0 %v4036
    %v4155 = vpop.f32.mrf.mxu0
    %v4156 = vadd.f32 0.0, %v4155
    %4157 = vmatmul.f32.gmra.mxu0 %v4037
    %v4158 = vpop.f32.mrf.mxu0
    %v4159 = vadd.f32 0.0, %v4158
    %4160 = vdwg.mxu0
    %v4161 = vadd.f32 %v479, %v4056
    %v4162 = vadd.f32 %v482, %v4059
    %v4163 = vadd.f32 %v485, %v4062
    %v4164 = vadd.f32 %v488, %v4065
    %v4165 = vadd.f32 %v491, %v4068
    %v4166 = vadd.f32 %v494, %v4071
    %v4167 = vadd.f32 %v497, %v4074
    %v4168 = vadd.f32 %v500, %v4077
    %v4169 = vxor.u32 %v4161, 2147483648
    %v4170 = vxor.u32 %v4162, 2147483648
    %v4171 = vxor.u32 %v4163, 2147483648
    %v4172 = vxor.u32 %v4164, 2147483648
    %v4173 = vxor.u32 %v4165, 2147483648
    %v4174 = vxor.u32 %v4166, 2147483648
    %v4175 = vxor.u32 %v4167, 2147483648
    %v4176 = vxor.u32 %v4168, 2147483648
    %v4177 = vmul.f32 %v4169, 1.442695
    %v4178 = vpow.pop %v4177
    %v4179 = vmul.f32 %v4170, 1.442695
    %v4180 = vpow.pop %v4179
    %v4181 = vmul.f32 %v4171, 1.442695
    %v4182 = vpow.pop %v4181
    %v4183 = vmul.f32 %v4172, 1.442695
    %v4184 = vpow.pop %v4183
    %v4185 = vmul.f32 %v4173, 1.442695
    %v4186 = vpow.pop %v4185
    %v4187 = vmul.f32 %v4174, 1.442695
    %v4188 = vpow.pop %v4187
    %v4189 = vmul.f32 %v4175, 1.442695
    %v4190 = vpow.pop %v4189
    %v4191 = vmul.f32 %v4176, 1.442695
    %v4192 = vpow.pop %v4191
    %v4193 = vadd.f32 %v4178, 1.0
    %v4194 = vadd.f32 %v4180, 1.0
    %v4195 = vadd.f32 %v4182, 1.0
    %v4196 = vadd.f32 %v4184, 1.0
    %v4197 = vadd.f32 %v4186, 1.0
    %v4198 = vadd.f32 %v4188, 1.0
    %v4199 = vadd.f32 %v4190, 1.0
    %v4200 = vadd.f32 %v4192, 1.0
    %v4201 = vrcp.pop %v4193
    %v4202 = vmul.f32 %v4193, %v4201
    %v4203 = vsub.f32 1.0, %v4202
    %v4204 = vmul.f32 %v4201, %v4203
    %v4205 = vadd.f32 %v4201, %v4204
    %vm4206 = vweird.f32 %v4193
    %vm4207 = vweird.f32 %v4201
    %vm4208 = vmor %vm4206, %vm4207
    %v4209 = vsel %vm4208, %v4201, %v4205
    %v4210 = vand.u32 2147483647, %v4193
    %vm4211 = vcmp.eq.f32.partialorder %v4210, 8.507059e+37
    %v4212 = vand.u32 %v4193, 2147483648
    %v4213 = vor.u32 1.1754944e-38, %v4212
    %v4214 = vsel %vm4211, %v4213, %v4209
    %v4215 = vmul.f32 1.0, %v4214
    %v4216 = vrcp.pop %v4194
    %v4217 = vmul.f32 %v4194, %v4216
    %v4218 = vsub.f32 1.0, %v4217
    %v4219 = vmul.f32 %v4216, %v4218
    %v4220 = vadd.f32 %v4216, %v4219
    %vm4221 = vweird.f32 %v4194
    %vm4222 = vweird.f32 %v4216
    %vm4223 = vmor %vm4221, %vm4222
    %v4224 = vsel %vm4223, %v4216, %v4220
    %v4225 = vand.u32 2147483647, %v4194
    %vm4226 = vcmp.eq.f32.partialorder %v4225, 8.507059e+37
    %v4227 = vand.u32 %v4194, 2147483648
    %v4228 = vor.u32 1.1754944e-38, %v4227
    %v4229 = vsel %vm4226, %v4228, %v4224
    %v4230 = vmul.f32 1.0, %v4229
    %v4231 = vrcp.pop %v4195
    %v4232 = vmul.f32 %v4195, %v4231
    %v4233 = vsub.f32 1.0, %v4232
    %v4234 = vmul.f32 %v4231, %v4233
    %v4235 = vadd.f32 %v4231, %v4234
    %vm4236 = vweird.f32 %v4195
    %vm4237 = vweird.f32 %v4231
    %vm4238 = vmor %vm4236, %vm4237
    %v4239 = vsel %vm4238, %v4231, %v4235
    %v4240 = vand.u32 2147483647, %v4195
    %vm4241 = vcmp.eq.f32.partialorder %v4240, 8.507059e+37
    %v4242 = vand.u32 %v4195, 2147483648
    %v4243 = vor.u32 1.1754944e-38, %v4242
    %v4244 = vsel %vm4241, %v4243, %v4239
    %v4245 = vmul.f32 1.0, %v4244
    %v4246 = vrcp.pop %v4196
    %v4247 = vmul.f32 %v4196, %v4246
    %v4248 = vsub.f32 1.0, %v4247
    %v4249 = vmul.f32 %v4246, %v4248
    %v4250 = vadd.f32 %v4246, %v4249
    %vm4251 = vweird.f32 %v4196
    %vm4252 = vweird.f32 %v4246
    %vm4253 = vmor %vm4251, %vm4252
    %v4254 = vsel %vm4253, %v4246, %v4250
    %v4255 = vand.u32 2147483647, %v4196
    %vm4256 = vcmp.eq.f32.partialorder %v4255, 8.507059e+37
    %v4257 = vand.u32 %v4196, 2147483648
    %v4258 = vor.u32 1.1754944e-38, %v4257
    %v4259 = vsel %vm4256, %v4258, %v4254
    %v4260 = vmul.f32 1.0, %v4259
    %v4261 = vrcp.pop %v4197
    %v4262 = vmul.f32 %v4197, %v4261
    %v4263 = vsub.f32 1.0, %v4262
    %v4264 = vmul.f32 %v4261, %v4263
    %v4265 = vadd.f32 %v4261, %v4264
    %vm4266 = vweird.f32 %v4197
    %vm4267 = vweird.f32 %v4261
    %vm4268 = vmor %vm4266, %vm4267
    %v4269 = vsel %vm4268, %v4261, %v4265
    %v4270 = vand.u32 2147483647, %v4197
    %vm4271 = vcmp.eq.f32.partialorder %v4270, 8.507059e+37
    %v4272 = vand.u32 %v4197, 2147483648
    %v4273 = vor.u32 1.1754944e-38, %v4272
    %v4274 = vsel %vm4271, %v4273, %v4269
    %v4275 = vmul.f32 1.0, %v4274
    %v4276 = vrcp.pop %v4198
    %v4277 = vmul.f32 %v4198, %v4276
    %v4278 = vsub.f32 1.0, %v4277
    %v4279 = vmul.f32 %v4276, %v4278
    %v4280 = vadd.f32 %v4276, %v4279
    %vm4281 = vweird.f32 %v4198
    %vm4282 = vweird.f32 %v4276
    %vm4283 = vmor %vm4281, %vm4282
    %v4284 = vsel %vm4283, %v4276, %v4280
    %v4285 = vand.u32 2147483647, %v4198
    %vm4286 = vcmp.eq.f32.partialorder %v4285, 8.507059e+37
    %v4287 = vand.u32 %v4198, 2147483648
    %v4288 = vor.u32 1.1754944e-38, %v4287
    %v4289 = vsel %vm4286, %v4288, %v4284
    %v4290 = vmul.f32 1.0, %v4289
    %v4291 = vrcp.pop %v4199
    %v4292 = vmul.f32 %v4199, %v4291
    %v4293 = vsub.f32 1.0, %v4292
    %v4294 = vmul.f32 %v4291, %v4293
    %v4295 = vadd.f32 %v4291, %v4294
    %vm4296 = vweird.f32 %v4199
    %vm4297 = vweird.f32 %v4291
    %vm4298 = vmor %vm4296, %vm4297
    %v4299 = vsel %vm4298, %v4291, %v4295
    %v4300 = vand.u32 2147483647, %v4199
    %vm4301 = vcmp.eq.f32.partialorder %v4300, 8.507059e+37
    %v4302 = vand.u32 %v4199, 2147483648
    %v4303 = vor.u32 1.1754944e-38, %v4302
    %v4304 = vsel %vm4301, %v4303, %v4299
    %v4305 = vmul.f32 1.0, %v4304
    %v4306 = vrcp.pop %v4200
    %v4307 = vmul.f32 %v4200, %v4306
    %v4308 = vsub.f32 1.0, %v4307
    %v4309 = vmul.f32 %v4306, %v4308
    %v4310 = vadd.f32 %v4306, %v4309
    %vm4311 = vweird.f32 %v4200
    %vm4312 = vweird.f32 %v4306
    %vm4313 = vmor %vm4311, %vm4312
    %v4314 = vsel %vm4313, %v4306, %v4310
    %v4315 = vand.u32 2147483647, %v4200
    %vm4316 = vcmp.eq.f32.partialorder %v4315, 8.507059e+37
    %v4317 = vand.u32 %v4200, 2147483648
    %v4318 = vor.u32 1.1754944e-38, %v4317
    %v4319 = vsel %vm4316, %v4318, %v4314
    %v4320 = vmul.f32 1.0, %v4319
    %v4321 = vadd.f32 %v688, %v4097
    %v4322 = vadd.f32 %v691, %v4100
    %v4323 = vadd.f32 %v694, %v4103
    %v4324 = vadd.f32 %v697, %v4106
    %v4325 = vadd.f32 %v700, %v4109
    %v4326 = vadd.f32 %v703, %v4112
    %v4327 = vadd.f32 %v706, %v4115
    %v4328 = vadd.f32 %v709, %v4118
    %v4329 = vxor.u32 %v4321, 2147483648
    %v4330 = vxor.u32 %v4322, 2147483648
    %v4331 = vxor.u32 %v4323, 2147483648
    %v4332 = vxor.u32 %v4324, 2147483648
    %v4333 = vxor.u32 %v4325, 2147483648
    %v4334 = vxor.u32 %v4326, 2147483648
    %v4335 = vxor.u32 %v4327, 2147483648
    %v4336 = vxor.u32 %v4328, 2147483648
    %v4337 = vmul.f32 %v4329, 1.442695
    %v4338 = vpow.pop %v4337
    %v4339 = vmul.f32 %v4330, 1.442695
    %v4340 = vpow.pop %v4339
    %v4341 = vmul.f32 %v4331, 1.442695
    %v4342 = vpow.pop %v4341
    %v4343 = vmul.f32 %v4332, 1.442695
    %v4344 = vpow.pop %v4343
    %v4345 = vmul.f32 %v4333, 1.442695
    %v4346 = vpow.pop %v4345
    %v4347 = vmul.f32 %v4334, 1.442695
    %v4348 = vpow.pop %v4347
    %v4349 = vmul.f32 %v4335, 1.442695
    %v4350 = vpow.pop %v4349
    %v4351 = vmul.f32 %v4336, 1.442695
    %v4352 = vpow.pop %v4351
    %v4353 = vadd.f32 %v4338, 1.0
    %v4354 = vadd.f32 %v4340, 1.0
    %v4355 = vadd.f32 %v4342, 1.0
    %v4356 = vadd.f32 %v4344, 1.0
    %v4357 = vadd.f32 %v4346, 1.0
    %v4358 = vadd.f32 %v4348, 1.0
    %v4359 = vadd.f32 %v4350, 1.0
    %v4360 = vadd.f32 %v4352, 1.0
    %v4361 = vrcp.pop %v4353
    %v4362 = vmul.f32 %v4353, %v4361
    %v4363 = vsub.f32 1.0, %v4362
    %v4364 = vmul.f32 %v4361, %v4363
    %v4365 = vadd.f32 %v4361, %v4364
    %vm4366 = vweird.f32 %v4353
    %vm4367 = vweird.f32 %v4361
    %vm4368 = vmor %vm4366, %vm4367
    %v4369 = vsel %vm4368, %v4361, %v4365
    %v4370 = vand.u32 2147483647, %v4353
    %vm4371 = vcmp.eq.f32.partialorder %v4370, 8.507059e+37
    %v4372 = vand.u32 %v4353, 2147483648
    %v4373 = vor.u32 1.1754944e-38, %v4372
    %v4374 = vsel %vm4371, %v4373, %v4369
    %v4375 = vmul.f32 1.0, %v4374
    %v4376 = vrcp.pop %v4354
    %v4377 = vmul.f32 %v4354, %v4376
    %v4378 = vsub.f32 1.0, %v4377
    %v4379 = vmul.f32 %v4376, %v4378
    %v4380 = vadd.f32 %v4376, %v4379
    %vm4381 = vweird.f32 %v4354
    %vm4382 = vweird.f32 %v4376
    %vm4383 = vmor %vm4381, %vm4382
    %v4384 = vsel %vm4383, %v4376, %v4380
    %v4385 = vand.u32 2147483647, %v4354
    %vm4386 = vcmp.eq.f32.partialorder %v4385, 8.507059e+37
    %v4387 = vand.u32 %v4354, 2147483648
    %v4388 = vor.u32 1.1754944e-38, %v4387
    %v4389 = vsel %vm4386, %v4388, %v4384
    %v4390 = vmul.f32 1.0, %v4389
    %v4391 = vrcp.pop %v4355
    %v4392 = vmul.f32 %v4355, %v4391
    %v4393 = vsub.f32 1.0, %v4392
    %v4394 = vmul.f32 %v4391, %v4393
    %v4395 = vadd.f32 %v4391, %v4394
    %vm4396 = vweird.f32 %v4355
    %vm4397 = vweird.f32 %v4391
    %vm4398 = vmor %vm4396, %vm4397
    %v4399 = vsel %vm4398, %v4391, %v4395
    %v4400 = vand.u32 2147483647, %v4355
    %vm4401 = vcmp.eq.f32.partialorder %v4400, 8.507059e+37
    %v4402 = vand.u32 %v4355, 2147483648
    %v4403 = vor.u32 1.1754944e-38, %v4402
    %v4404 = vsel %vm4401, %v4403, %v4399
    %v4405 = vmul.f32 1.0, %v4404
    %v4406 = vrcp.pop %v4356
    %v4407 = vmul.f32 %v4356, %v4406
    %v4408 = vsub.f32 1.0, %v4407
    %v4409 = vmul.f32 %v4406, %v4408
    %v4410 = vadd.f32 %v4406, %v4409
    %vm4411 = vweird.f32 %v4356
    %vm4412 = vweird.f32 %v4406
    %vm4413 = vmor %vm4411, %vm4412
    %v4414 = vsel %vm4413, %v4406, %v4410
    %v4415 = vand.u32 2147483647, %v4356
    %vm4416 = vcmp.eq.f32.partialorder %v4415, 8.507059e+37
    %v4417 = vand.u32 %v4356, 2147483648
    %v4418 = vor.u32 1.1754944e-38, %v4417
    %v4419 = vsel %vm4416, %v4418, %v4414
    %v4420 = vmul.f32 1.0, %v4419
    %v4421 = vrcp.pop %v4357
    %v4422 = vmul.f32 %v4357, %v4421
    %v4423 = vsub.f32 1.0, %v4422
    %v4424 = vmul.f32 %v4421, %v4423
    %v4425 = vadd.f32 %v4421, %v4424
    %vm4426 = vweird.f32 %v4357
    %vm4427 = vweird.f32 %v4421
    %vm4428 = vmor %vm4426, %vm4427
    %v4429 = vsel %vm4428, %v4421, %v4425
    %v4430 = vand.u32 2147483647, %v4357
    %vm4431 = vcmp.eq.f32.partialorder %v4430, 8.507059e+37
    %v4432 = vand.u32 %v4357, 2147483648
    %v4433 = vor.u32 1.1754944e-38, %v4432
    %v4434 = vsel %vm4431, %v4433, %v4429
    %v4435 = vmul.f32 1.0, %v4434
    %v4436 = vrcp.pop %v4358
    %v4437 = vmul.f32 %v4358, %v4436
    %v4438 = vsub.f32 1.0, %v4437
    %v4439 = vmul.f32 %v4436, %v4438
    %v4440 = vadd.f32 %v4436, %v4439
    %vm4441 = vweird.f32 %v4358
    %vm4442 = vweird.f32 %v4436
    %vm4443 = vmor %vm4441, %vm4442
    %v4444 = vsel %vm4443, %v4436, %v4440
    %v4445 = vand.u32 2147483647, %v4358
    %vm4446 = vcmp.eq.f32.partialorder %v4445, 8.507059e+37
    %v4447 = vand.u32 %v4358, 2147483648
    %v4448 = vor.u32 1.1754944e-38, %v4447
    %v4449 = vsel %vm4446, %v4448, %v4444
    %v4450 = vmul.f32 1.0, %v4449
    %v4451 = vrcp.pop %v4359
    %v4452 = vmul.f32 %v4359, %v4451
    %v4453 = vsub.f32 1.0, %v4452
    %v4454 = vmul.f32 %v4451, %v4453
    %v4455 = vadd.f32 %v4451, %v4454
    %vm4456 = vweird.f32 %v4359
    %vm4457 = vweird.f32 %v4451
    %vm4458 = vmor %vm4456, %vm4457
    %v4459 = vsel %vm4458, %v4451, %v4455
    %v4460 = vand.u32 2147483647, %v4359
    %vm4461 = vcmp.eq.f32.partialorder %v4460, 8.507059e+37
    %v4462 = vand.u32 %v4359, 2147483648
    %v4463 = vor.u32 1.1754944e-38, %v4462
    %v4464 = vsel %vm4461, %v4463, %v4459
    %v4465 = vmul.f32 1.0, %v4464
    %v4466 = vrcp.pop %v4360
    %v4467 = vmul.f32 %v4360, %v4466
    %v4468 = vsub.f32 1.0, %v4467
    %v4469 = vmul.f32 %v4466, %v4468
    %v4470 = vadd.f32 %v4466, %v4469
    %vm4471 = vweird.f32 %v4360
    %vm4472 = vweird.f32 %v4466
    %vm4473 = vmor %vm4471, %vm4472
    %v4474 = vsel %vm4473, %v4466, %v4470
    %v4475 = vand.u32 2147483647, %v4360
    %vm4476 = vcmp.eq.f32.partialorder %v4475, 8.507059e+37
    %v4477 = vand.u32 %v4360, 2147483648
    %v4478 = vor.u32 1.1754944e-38, %v4477
    %v4479 = vsel %vm4476, %v4478, %v4474
    %v4480 = vmul.f32 1.0, %v4479
    %v4481 = vadd.f32 %v4138, %v1437
    %v4482 = vadd.f32 %v4141, %v1437
    %v4483 = vadd.f32 %v4144, %v1437
    %v4484 = vadd.f32 %v4147, %v1437
    %v4485 = vadd.f32 %v4150, %v1437
    %v4486 = vadd.f32 %v4153, %v1437
    %v4487 = vadd.f32 %v4156, %v1437
    %v4488 = vadd.f32 %v4159, %v1437
    %v4489 = vmul.f32 %v4215, %v4481
    %v4490 = vmul.f32 %v4230, %v4482
    %v4491 = vmul.f32 %v4245, %v4483
    %v4492 = vmul.f32 %v4260, %v4484
    %v4493 = vmul.f32 %v4275, %v4485
    %v4494 = vmul.f32 %v4290, %v4486
    %v4495 = vmul.f32 %v4305, %v4487
    %v4496 = vmul.f32 %v4320, %v4488
    %v4497 = vadd.f32 %v897, %v4489
    %v4498 = vadd.f32 %v900, %v4490
    %v4499 = vadd.f32 %v903, %v4491
    %v4500 = vadd.f32 %v906, %v4492
    %v4501 = vadd.f32 %v909, %v4493
    %v4502 = vadd.f32 %v912, %v4494
    %v4503 = vadd.f32 %v915, %v4495
    %v4504 = vadd.f32 %v918, %v4496
    %v4505 = vtanh.pop %v4497
    %v4506 = vtanh.pop %v4498
    %v4507 = vtanh.pop %v4499
    %v4508 = vtanh.pop %v4500
    %v4509 = vtanh.pop %v4501
    %v4510 = vtanh.pop %v4502
    %v4511 = vtanh.pop %v4503
    %v4512 = vtanh.pop %v4504
    %v4513 = vsub.f32 1.0, %v4375
    %v4514 = vsub.f32 1.0, %v4390
    %v4515 = vsub.f32 1.0, %v4405
    %v4516 = vsub.f32 1.0, %v4420
    %v4517 = vsub.f32 1.0, %v4435
    %v4518 = vsub.f32 1.0, %v4450
    %v4519 = vsub.f32 1.0, %v4465
    %v4520 = vsub.f32 1.0, %v4480
    %v4521 = vmul.f32 %v4513, %v4505
    %v4522 = vmul.f32 %v4514, %v4506
    %v4523 = vmul.f32 %v4515, %v4507
    %v4524 = vmul.f32 %v4516, %v4508
    %v4525 = vmul.f32 %v4517, %v4509
    %v4526 = vmul.f32 %v4518, %v4510
    %v4527 = vmul.f32 %v4519, %v4511
    %v4528 = vmul.f32 %v4520, %v4512
    %v4529 = vmul.f32 %v4375, %v4030
    %v4530 = vmul.f32 %v4390, %v4031
    %v4531 = vmul.f32 %v4405, %v4032
    %v4532 = vmul.f32 %v4420, %v4033
    %v4533 = vmul.f32 %v4435, %v4034
    %v4534 = vmul.f32 %v4450, %v4035
    %v4535 = vmul.f32 %v4465, %v4036
    %v4536 = vmul.f32 %v4480, %v4037
    %v4537 = vadd.f32 %v4521, %v4529
    %v4538 = vadd.f32 %v4522, %v4530
    %v4539 = vadd.f32 %v4523, %v4531
    %v4540 = vadd.f32 %v4524, %v4532
    %v4541 = vadd.f32 %v4525, %v4533
    %v4542 = vadd.f32 %v4526, %v4534
    %v4543 = vadd.f32 %v4527, %v4535
    %v4544 = vadd.f32 %v4528, %v4536
    %4545 = vmatpush.msra.mxu0 %v989
    %4546 = vmatpush.msra.mxu0 %v986
    %4547 = vmatpush.msra.mxu0 %v983
    %4548 = vmatpush.msra.mxu0 %v980
    %4549 = vmatpush.msra.mxu0 %v977
    %4550 = vmatpush.msra.mxu0 %v974
    %4551 = vmatpush.msra.mxu0 %v971
    %4552 = vmatpush.msra.mxu0 %v968
    %4553 = vmatpush.msra.mxu0 %v965
    %4554 = vmatpush.msra.mxu0 %v962
    %4555 = vmatpush.msra.mxu0 %v959
    %4556 = vmatpush.msra.mxu0 %v956
    %4557 = vmatpush.msra.mxu0 %v953
    %4558 = vmatpush.msra.mxu0 %v950
    %4559 = vmatpush.msra.mxu0 %v947
    %4560 = vmatpush.msra.mxu0 %v944
    %4561 = vmatmul.f32.gmra.mxu0 %v4537
    %v4562 = vpop.f32.mrf.mxu0
    %v4563 = vadd.f32 0.0, %v4562
    %4564 = vmatmul.f32.gmra.mxu0 %v4538
    %v4565 = vpop.f32.mrf.mxu0
    %v4566 = vadd.f32 0.0, %v4565
    %4567 = vmatmul.f32.gmra.mxu0 %v4539
    %v4568 = vpop.f32.mrf.mxu0
    %v4569 = vadd.f32 0.0, %v4568
    %4570 = vmatmul.f32.gmra.mxu0 %v4540
    %v4571 = vpop.f32.mrf.mxu0
    %v4572 = vadd.f32 0.0, %v4571
    %4573 = vmatmul.f32.gmra.mxu0 %v4541
    %v4574 = vpop.f32.mrf.mxu0
    %v4575 = vadd.f32 0.0, %v4574
    %4576 = vmatmul.f32.gmra.mxu0 %v4542
    %v4577 = vpop.f32.mrf.mxu0
    %v4578 = vadd.f32 0.0, %v4577
    %4579 = vmatmul.f32.gmra.mxu0 %v4543
    %v4580 = vpop.f32.mrf.mxu0
    %v4581 = vadd.f32 0.0, %v4580
    %4582 = vmatmul.f32.gmra.mxu0 %v4544
    %v4583 = vpop.f32.mrf.mxu0
    %v4584 = vadd.f32 0.0, %v4583
    %4585 = vdwg.mxu0
    %4586 = vmatpush.msra.mxu0 %v990
    %4587 = vmatpush.msra.mxu0 %v987
    %4588 = vmatpush.msra.mxu0 %v984
    %4589 = vmatpush.msra.mxu0 %v981
    %4590 = vmatpush.msra.mxu0 %v978
    %4591 = vmatpush.msra.mxu0 %v975
    %4592 = vmatpush.msra.mxu0 %v972
    %4593 = vmatpush.msra.mxu0 %v969
    %4594 = vmatpush.msra.mxu0 %v966
    %4595 = vmatpush.msra.mxu0 %v963
    %4596 = vmatpush.msra.mxu0 %v960
    %4597 = vmatpush.msra.mxu0 %v957
    %4598 = vmatpush.msra.mxu0 %v954
    %4599 = vmatpush.msra.mxu0 %v951
    %4600 = vmatpush.msra.mxu0 %v948
    %4601 = vmatpush.msra.mxu0 %v945
    %4602 = vmatmul.f32.gmra.mxu0 %v4537
    %v4603 = vpop.f32.mrf.mxu0
    %v4604 = vadd.f32 0.0, %v4603
    %4605 = vmatmul.f32.gmra.mxu0 %v4538
    %v4606 = vpop.f32.mrf.mxu0
    %v4607 = vadd.f32 0.0, %v4606
    %4608 = vmatmul.f32.gmra.mxu0 %v4539
    %v4609 = vpop.f32.mrf.mxu0
    %v4610 = vadd.f32 0.0, %v4609
    %4611 = vmatmul.f32.gmra.mxu0 %v4540
    %v4612 = vpop.f32.mrf.mxu0
    %v4613 = vadd.f32 0.0, %v4612
    %4614 = vmatmul.f32.gmra.mxu0 %v4541
    %v4615 = vpop.f32.mrf.mxu0
    %v4616 = vadd.f32 0.0, %v4615
    %4617 = vmatmul.f32.gmra.mxu0 %v4542
    %v4618 = vpop.f32.mrf.mxu0
    %v4619 = vadd.f32 0.0, %v4618
    %4620 = vmatmul.f32.gmra.mxu0 %v4543
    %v4621 = vpop.f32.mrf.mxu0
    %v4622 = vadd.f32 0.0, %v4621
    %4623 = vmatmul.f32.gmra.mxu0 %v4544
    %v4624 = vpop.f32.mrf.mxu0
    %v4625 = vadd.f32 0.0, %v4624
    %4626 = vdwg.mxu0
    %4627 = vmatpush.msra.mxu0 %v991
    %4628 = vmatpush.msra.mxu0 %v988
    %4629 = vmatpush.msra.mxu0 %v985
    %4630 = vmatpush.msra.mxu0 %v982
    %4631 = vmatpush.msra.mxu0 %v979
    %4632 = vmatpush.msra.mxu0 %v976
    %4633 = vmatpush.msra.mxu0 %v973
    %4634 = vmatpush.msra.mxu0 %v970
    %4635 = vmatpush.msra.mxu0 %v967
    %4636 = vmatpush.msra.mxu0 %v964
    %4637 = vmatpush.msra.mxu0 %v961
    %4638 = vmatpush.msra.mxu0 %v958
    %4639 = vmatpush.msra.mxu0 %v955
    %4640 = vmatpush.msra.mxu0 %v952
    %4641 = vmatpush.msra.mxu0 %v949
    %4642 = vmatpush.msra.mxu0 %v946
    %4643 = vmatmul.f32.gmra.mxu0 %v4537
    %v4644 = vpop.f32.mrf.mxu0
    %v4645 = vadd.f32 0.0, %v4644
    %4646 = vmatmul.f32.gmra.mxu0 %v4538
    %v4647 = vpop.f32.mrf.mxu0
    %v4648 = vadd.f32 0.0, %v4647
    %4649 = vmatmul.f32.gmra.mxu0 %v4539
    %v4650 = vpop.f32.mrf.mxu0
    %v4651 = vadd.f32 0.0, %v4650
    %4652 = vmatmul.f32.gmra.mxu0 %v4540
    %v4653 = vpop.f32.mrf.mxu0
    %v4654 = vadd.f32 0.0, %v4653
    %4655 = vmatmul.f32.gmra.mxu0 %v4541
    %v4656 = vpop.f32.mrf.mxu0
    %v4657 = vadd.f32 0.0, %v4656
    %4658 = vmatmul.f32.gmra.mxu0 %v4542
    %v4659 = vpop.f32.mrf.mxu0
    %v4660 = vadd.f32 0.0, %v4659
    %4661 = vmatmul.f32.gmra.mxu0 %v4543
    %v4662 = vpop.f32.mrf.mxu0
    %v4663 = vadd.f32 0.0, %v4662
    %4664 = vmatmul.f32.gmra.mxu0 %v4544
    %v4665 = vpop.f32.mrf.mxu0
    %v4666 = vadd.f32 0.0, %v4665
    %4667 = vdwg.mxu0
    %v4668 = vadd.f32 %v503, %v4563
    %v4669 = vadd.f32 %v506, %v4566
    %v4670 = vadd.f32 %v509, %v4569
    %v4671 = vadd.f32 %v512, %v4572
    %v4672 = vadd.f32 %v515, %v4575
    %v4673 = vadd.f32 %v518, %v4578
    %v4674 = vadd.f32 %v521, %v4581
    %v4675 = vadd.f32 %v524, %v4584
    %v4676 = vxor.u32 %v4668, 2147483648
    %v4677 = vxor.u32 %v4669, 2147483648
    %v4678 = vxor.u32 %v4670, 2147483648
    %v4679 = vxor.u32 %v4671, 2147483648
    %v4680 = vxor.u32 %v4672, 2147483648
    %v4681 = vxor.u32 %v4673, 2147483648
    %v4682 = vxor.u32 %v4674, 2147483648
    %v4683 = vxor.u32 %v4675, 2147483648
    %v4684 = vmul.f32 %v4676, 1.442695
    %v4685 = vpow.pop %v4684
    %v4686 = vmul.f32 %v4677, 1.442695
    %v4687 = vpow.pop %v4686
    %v4688 = vmul.f32 %v4678, 1.442695
    %v4689 = vpow.pop %v4688
    %v4690 = vmul.f32 %v4679, 1.442695
    %v4691 = vpow.pop %v4690
    %v4692 = vmul.f32 %v4680, 1.442695
    %v4693 = vpow.pop %v4692
    %v4694 = vmul.f32 %v4681, 1.442695
    %v4695 = vpow.pop %v4694
    %v4696 = vmul.f32 %v4682, 1.442695
    %v4697 = vpow.pop %v4696
    %v4698 = vmul.f32 %v4683, 1.442695
    %v4699 = vpow.pop %v4698
    %v4700 = vadd.f32 %v4685, 1.0
    %v4701 = vadd.f32 %v4687, 1.0
    %v4702 = vadd.f32 %v4689, 1.0
    %v4703 = vadd.f32 %v4691, 1.0
    %v4704 = vadd.f32 %v4693, 1.0
    %v4705 = vadd.f32 %v4695, 1.0
    %v4706 = vadd.f32 %v4697, 1.0
    %v4707 = vadd.f32 %v4699, 1.0
    %v4708 = vrcp.pop %v4700
    %v4709 = vmul.f32 %v4700, %v4708
    %v4710 = vsub.f32 1.0, %v4709
    %v4711 = vmul.f32 %v4708, %v4710
    %v4712 = vadd.f32 %v4708, %v4711
    %vm4713 = vweird.f32 %v4700
    %vm4714 = vweird.f32 %v4708
    %vm4715 = vmor %vm4713, %vm4714
    %v4716 = vsel %vm4715, %v4708, %v4712
    %v4717 = vand.u32 2147483647, %v4700
    %vm4718 = vcmp.eq.f32.partialorder %v4717, 8.507059e+37
    %v4719 = vand.u32 %v4700, 2147483648
    %v4720 = vor.u32 1.1754944e-38, %v4719
    %v4721 = vsel %vm4718, %v4720, %v4716
    %v4722 = vmul.f32 1.0, %v4721
    %v4723 = vrcp.pop %v4701
    %v4724 = vmul.f32 %v4701, %v4723
    %v4725 = vsub.f32 1.0, %v4724
    %v4726 = vmul.f32 %v4723, %v4725
    %v4727 = vadd.f32 %v4723, %v4726
    %vm4728 = vweird.f32 %v4701
    %vm4729 = vweird.f32 %v4723
    %vm4730 = vmor %vm4728, %vm4729
    %v4731 = vsel %vm4730, %v4723, %v4727
    %v4732 = vand.u32 2147483647, %v4701
    %vm4733 = vcmp.eq.f32.partialorder %v4732, 8.507059e+37
    %v4734 = vand.u32 %v4701, 2147483648
    %v4735 = vor.u32 1.1754944e-38, %v4734
    %v4736 = vsel %vm4733, %v4735, %v4731
    %v4737 = vmul.f32 1.0, %v4736
    %v4738 = vrcp.pop %v4702
    %v4739 = vmul.f32 %v4702, %v4738
    %v4740 = vsub.f32 1.0, %v4739
    %v4741 = vmul.f32 %v4738, %v4740
    %v4742 = vadd.f32 %v4738, %v4741
    %vm4743 = vweird.f32 %v4702
    %vm4744 = vweird.f32 %v4738
    %vm4745 = vmor %vm4743, %vm4744
    %v4746 = vsel %vm4745, %v4738, %v4742
    %v4747 = vand.u32 2147483647, %v4702
    %vm4748 = vcmp.eq.f32.partialorder %v4747, 8.507059e+37
    %v4749 = vand.u32 %v4702, 2147483648
    %v4750 = vor.u32 1.1754944e-38, %v4749
    %v4751 = vsel %vm4748, %v4750, %v4746
    %v4752 = vmul.f32 1.0, %v4751
    %v4753 = vrcp.pop %v4703
    %v4754 = vmul.f32 %v4703, %v4753
    %v4755 = vsub.f32 1.0, %v4754
    %v4756 = vmul.f32 %v4753, %v4755
    %v4757 = vadd.f32 %v4753, %v4756
    %vm4758 = vweird.f32 %v4703
    %vm4759 = vweird.f32 %v4753
    %vm4760 = vmor %vm4758, %vm4759
    %v4761 = vsel %vm4760, %v4753, %v4757
    %v4762 = vand.u32 2147483647, %v4703
    %vm4763 = vcmp.eq.f32.partialorder %v4762, 8.507059e+37
    %v4764 = vand.u32 %v4703, 2147483648
    %v4765 = vor.u32 1.1754944e-38, %v4764
    %v4766 = vsel %vm4763, %v4765, %v4761
    %v4767 = vmul.f32 1.0, %v4766
    %v4768 = vrcp.pop %v4704
    %v4769 = vmul.f32 %v4704, %v4768
    %v4770 = vsub.f32 1.0, %v4769
    %v4771 = vmul.f32 %v4768, %v4770
    %v4772 = vadd.f32 %v4768, %v4771
    %vm4773 = vweird.f32 %v4704
    %vm4774 = vweird.f32 %v4768
    %vm4775 = vmor %vm4773, %vm4774
    %v4776 = vsel %vm4775, %v4768, %v4772
    %v4777 = vand.u32 2147483647, %v4704
    %vm4778 = vcmp.eq.f32.partialorder %v4777, 8.507059e+37
    %v4779 = vand.u32 %v4704, 2147483648
    %v4780 = vor.u32 1.1754944e-38, %v4779
    %v4781 = vsel %vm4778, %v4780, %v4776
    %v4782 = vmul.f32 1.0, %v4781
    %v4783 = vrcp.pop %v4705
    %v4784 = vmul.f32 %v4705, %v4783
    %v4785 = vsub.f32 1.0, %v4784
    %v4786 = vmul.f32 %v4783, %v4785
    %v4787 = vadd.f32 %v4783, %v4786
    %vm4788 = vweird.f32 %v4705
    %vm4789 = vweird.f32 %v4783
    %vm4790 = vmor %vm4788, %vm4789
    %v4791 = vsel %vm4790, %v4783, %v4787
    %v4792 = vand.u32 2147483647, %v4705
    %vm4793 = vcmp.eq.f32.partialorder %v4792, 8.507059e+37
    %v4794 = vand.u32 %v4705, 2147483648
    %v4795 = vor.u32 1.1754944e-38, %v4794
    %v4796 = vsel %vm4793, %v4795, %v4791
    %v4797 = vmul.f32 1.0, %v4796
    %v4798 = vrcp.pop %v4706
    %v4799 = vmul.f32 %v4706, %v4798
    %v4800 = vsub.f32 1.0, %v4799
    %v4801 = vmul.f32 %v4798, %v4800
    %v4802 = vadd.f32 %v4798, %v4801
    %vm4803 = vweird.f32 %v4706
    %vm4804 = vweird.f32 %v4798
    %vm4805 = vmor %vm4803, %vm4804
    %v4806 = vsel %vm4805, %v4798, %v4802
    %v4807 = vand.u32 2147483647, %v4706
    %vm4808 = vcmp.eq.f32.partialorder %v4807, 8.507059e+37
    %v4809 = vand.u32 %v4706, 2147483648
    %v4810 = vor.u32 1.1754944e-38, %v4809
    %v4811 = vsel %vm4808, %v4810, %v4806
    %v4812 = vmul.f32 1.0, %v4811
    %v4813 = vrcp.pop %v4707
    %v4814 = vmul.f32 %v4707, %v4813
    %v4815 = vsub.f32 1.0, %v4814
    %v4816 = vmul.f32 %v4813, %v4815
    %v4817 = vadd.f32 %v4813, %v4816
    %vm4818 = vweird.f32 %v4707
    %vm4819 = vweird.f32 %v4813
    %vm4820 = vmor %vm4818, %vm4819
    %v4821 = vsel %vm4820, %v4813, %v4817
    %v4822 = vand.u32 2147483647, %v4707
    %vm4823 = vcmp.eq.f32.partialorder %v4822, 8.507059e+37
    %v4824 = vand.u32 %v4707, 2147483648
    %v4825 = vor.u32 1.1754944e-38, %v4824
    %v4826 = vsel %vm4823, %v4825, %v4821
    %v4827 = vmul.f32 1.0, %v4826
    %v4828 = vadd.f32 %v712, %v4604
    %v4829 = vadd.f32 %v715, %v4607
    %v4830 = vadd.f32 %v718, %v4610
    %v4831 = vadd.f32 %v721, %v4613
    %v4832 = vadd.f32 %v724, %v4616
    %v4833 = vadd.f32 %v727, %v4619
    %v4834 = vadd.f32 %v730, %v4622
    %v4835 = vadd.f32 %v733, %v4625
    %v4836 = vxor.u32 %v4828, 2147483648
    %v4837 = vxor.u32 %v4829, 2147483648
    %v4838 = vxor.u32 %v4830, 2147483648
    %v4839 = vxor.u32 %v4831, 2147483648
    %v4840 = vxor.u32 %v4832, 2147483648
    %v4841 = vxor.u32 %v4833, 2147483648
    %v4842 = vxor.u32 %v4834, 2147483648
    %v4843 = vxor.u32 %v4835, 2147483648
    %v4844 = vmul.f32 %v4836, 1.442695
    %v4845 = vpow.pop %v4844
    %v4846 = vmul.f32 %v4837, 1.442695
    %v4847 = vpow.pop %v4846
    %v4848 = vmul.f32 %v4838, 1.442695
    %v4849 = vpow.pop %v4848
    %v4850 = vmul.f32 %v4839, 1.442695
    %v4851 = vpow.pop %v4850
    %v4852 = vmul.f32 %v4840, 1.442695
    %v4853 = vpow.pop %v4852
    %v4854 = vmul.f32 %v4841, 1.442695
    %v4855 = vpow.pop %v4854
    %v4856 = vmul.f32 %v4842, 1.442695
    %v4857 = vpow.pop %v4856
    %v4858 = vmul.f32 %v4843, 1.442695
    %v4859 = vpow.pop %v4858
    %v4860 = vadd.f32 %v4845, 1.0
    %v4861 = vadd.f32 %v4847, 1.0
    %v4862 = vadd.f32 %v4849, 1.0
    %v4863 = vadd.f32 %v4851, 1.0
    %v4864 = vadd.f32 %v4853, 1.0
    %v4865 = vadd.f32 %v4855, 1.0
    %v4866 = vadd.f32 %v4857, 1.0
    %v4867 = vadd.f32 %v4859, 1.0
    %v4868 = vrcp.pop %v4860
    %v4869 = vmul.f32 %v4860, %v4868
    %v4870 = vsub.f32 1.0, %v4869
    %v4871 = vmul.f32 %v4868, %v4870
    %v4872 = vadd.f32 %v4868, %v4871
    %vm4873 = vweird.f32 %v4860
    %vm4874 = vweird.f32 %v4868
    %vm4875 = vmor %vm4873, %vm4874
    %v4876 = vsel %vm4875, %v4868, %v4872
    %v4877 = vand.u32 2147483647, %v4860
    %vm4878 = vcmp.eq.f32.partialorder %v4877, 8.507059e+37
    %v4879 = vand.u32 %v4860, 2147483648
    %v4880 = vor.u32 1.1754944e-38, %v4879
    %v4881 = vsel %vm4878, %v4880, %v4876
    %v4882 = vmul.f32 1.0, %v4881
    %v4883 = vrcp.pop %v4861
    %v4884 = vmul.f32 %v4861, %v4883
    %v4885 = vsub.f32 1.0, %v4884
    %v4886 = vmul.f32 %v4883, %v4885
    %v4887 = vadd.f32 %v4883, %v4886
    %vm4888 = vweird.f32 %v4861
    %vm4889 = vweird.f32 %v4883
    %vm4890 = vmor %vm4888, %vm4889
    %v4891 = vsel %vm4890, %v4883, %v4887
    %v4892 = vand.u32 2147483647, %v4861
    %vm4893 = vcmp.eq.f32.partialorder %v4892, 8.507059e+37
    %v4894 = vand.u32 %v4861, 2147483648
    %v4895 = vor.u32 1.1754944e-38, %v4894
    %v4896 = vsel %vm4893, %v4895, %v4891
    %v4897 = vmul.f32 1.0, %v4896
    %v4898 = vrcp.pop %v4862
    %v4899 = vmul.f32 %v4862, %v4898
    %v4900 = vsub.f32 1.0, %v4899
    %v4901 = vmul.f32 %v4898, %v4900
    %v4902 = vadd.f32 %v4898, %v4901
    %vm4903 = vweird.f32 %v4862
    %vm4904 = vweird.f32 %v4898
    %vm4905 = vmor %vm4903, %vm4904
    %v4906 = vsel %vm4905, %v4898, %v4902
    %v4907 = vand.u32 2147483647, %v4862
    %vm4908 = vcmp.eq.f32.partialorder %v4907, 8.507059e+37
    %v4909 = vand.u32 %v4862, 2147483648
    %v4910 = vor.u32 1.1754944e-38, %v4909
    %v4911 = vsel %vm4908, %v4910, %v4906
    %v4912 = vmul.f32 1.0, %v4911
    %v4913 = vrcp.pop %v4863
    %v4914 = vmul.f32 %v4863, %v4913
    %v4915 = vsub.f32 1.0, %v4914
    %v4916 = vmul.f32 %v4913, %v4915
    %v4917 = vadd.f32 %v4913, %v4916
    %vm4918 = vweird.f32 %v4863
    %vm4919 = vweird.f32 %v4913
    %vm4920 = vmor %vm4918, %vm4919
    %v4921 = vsel %vm4920, %v4913, %v4917
    %v4922 = vand.u32 2147483647, %v4863
    %vm4923 = vcmp.eq.f32.partialorder %v4922, 8.507059e+37
    %v4924 = vand.u32 %v4863, 2147483648
    %v4925 = vor.u32 1.1754944e-38, %v4924
    %v4926 = vsel %vm4923, %v4925, %v4921
    %v4927 = vmul.f32 1.0, %v4926
    %v4928 = vrcp.pop %v4864
    %v4929 = vmul.f32 %v4864, %v4928
    %v4930 = vsub.f32 1.0, %v4929
    %v4931 = vmul.f32 %v4928, %v4930
    %v4932 = vadd.f32 %v4928, %v4931
    %vm4933 = vweird.f32 %v4864
    %vm4934 = vweird.f32 %v4928
    %vm4935 = vmor %vm4933, %vm4934
    %v4936 = vsel %vm4935, %v4928, %v4932
    %v4937 = vand.u32 2147483647, %v4864
    %vm4938 = vcmp.eq.f32.partialorder %v4937, 8.507059e+37
    %v4939 = vand.u32 %v4864, 2147483648
    %v4940 = vor.u32 1.1754944e-38, %v4939
    %v4941 = vsel %vm4938, %v4940, %v4936
    %v4942 = vmul.f32 1.0, %v4941
    %v4943 = vrcp.pop %v4865
    %v4944 = vmul.f32 %v4865, %v4943
    %v4945 = vsub.f32 1.0, %v4944
    %v4946 = vmul.f32 %v4943, %v4945
    %v4947 = vadd.f32 %v4943, %v4946
    %vm4948 = vweird.f32 %v4865
    %vm4949 = vweird.f32 %v4943
    %vm4950 = vmor %vm4948, %vm4949
    %v4951 = vsel %vm4950, %v4943, %v4947
    %v4952 = vand.u32 2147483647, %v4865
    %vm4953 = vcmp.eq.f32.partialorder %v4952, 8.507059e+37
    %v4954 = vand.u32 %v4865, 2147483648
    %v4955 = vor.u32 1.1754944e-38, %v4954
    %v4956 = vsel %vm4953, %v4955, %v4951
    %v4957 = vmul.f32 1.0, %v4956
    %v4958 = vrcp.pop %v4866
    %v4959 = vmul.f32 %v4866, %v4958
    %v4960 = vsub.f32 1.0, %v4959
    %v4961 = vmul.f32 %v4958, %v4960
    %v4962 = vadd.f32 %v4958, %v4961
    %vm4963 = vweird.f32 %v4866
    %vm4964 = vweird.f32 %v4958
    %vm4965 = vmor %vm4963, %vm4964
    %v4966 = vsel %vm4965, %v4958, %v4962
    %v4967 = vand.u32 2147483647, %v4866
    %vm4968 = vcmp.eq.f32.partialorder %v4967, 8.507059e+37
    %v4969 = vand.u32 %v4866, 2147483648
    %v4970 = vor.u32 1.1754944e-38, %v4969
    %v4971 = vsel %vm4968, %v4970, %v4966
    %v4972 = vmul.f32 1.0, %v4971
    %v4973 = vrcp.pop %v4867
    %v4974 = vmul.f32 %v4867, %v4973
    %v4975 = vsub.f32 1.0, %v4974
    %v4976 = vmul.f32 %v4973, %v4975
    %v4977 = vadd.f32 %v4973, %v4976
    %vm4978 = vweird.f32 %v4867
    %vm4979 = vweird.f32 %v4973
    %vm4980 = vmor %vm4978, %vm4979
    %v4981 = vsel %vm4980, %v4973, %v4977
    %v4982 = vand.u32 2147483647, %v4867
    %vm4983 = vcmp.eq.f32.partialorder %v4982, 8.507059e+37
    %v4984 = vand.u32 %v4867, 2147483648
    %v4985 = vor.u32 1.1754944e-38, %v4984
    %v4986 = vsel %vm4983, %v4985, %v4981
    %v4987 = vmul.f32 1.0, %v4986
    %v4988 = vadd.f32 %v4645, %v1437
    %v4989 = vadd.f32 %v4648, %v1437
    %v4990 = vadd.f32 %v4651, %v1437
    %v4991 = vadd.f32 %v4654, %v1437
    %v4992 = vadd.f32 %v4657, %v1437
    %v4993 = vadd.f32 %v4660, %v1437
    %v4994 = vadd.f32 %v4663, %v1437
    %v4995 = vadd.f32 %v4666, %v1437
    %v4996 = vmul.f32 %v4722, %v4988
    %v4997 = vmul.f32 %v4737, %v4989
    %v4998 = vmul.f32 %v4752, %v4990
    %v4999 = vmul.f32 %v4767, %v4991
    %v5000 = vmul.f32 %v4782, %v4992
    %v5001 = vmul.f32 %v4797, %v4993
    %v5002 = vmul.f32 %v4812, %v4994
    %v5003 = vmul.f32 %v4827, %v4995
    %v5004 = vadd.f32 %v921, %v4996
    %v5005 = vadd.f32 %v924, %v4997
    %v5006 = vadd.f32 %v927, %v4998
    %v5007 = vadd.f32 %v930, %v4999
    %v5008 = vadd.f32 %v933, %v5000
    %v5009 = vadd.f32 %v936, %v5001
    %v5010 = vadd.f32 %v939, %v5002
    %v5011 = vadd.f32 %v942, %v5003
    %v5012 = vtanh.pop %v5004
    %v5013 = vtanh.pop %v5005
    %v5014 = vtanh.pop %v5006
    %v5015 = vtanh.pop %v5007
    %v5016 = vtanh.pop %v5008
    %v5017 = vtanh.pop %v5009
    %v5018 = vtanh.pop %v5010
    %v5019 = vtanh.pop %v5011
    %v5020 = vsub.f32 1.0, %v4882
    %v5021 = vsub.f32 1.0, %v4897
    %v5022 = vsub.f32 1.0, %v4912
    %v5023 = vsub.f32 1.0, %v4927
    %v5024 = vsub.f32 1.0, %v4942
    %v5025 = vsub.f32 1.0, %v4957
    %v5026 = vsub.f32 1.0, %v4972
    %v5027 = vsub.f32 1.0, %v4987
    %v5028 = vmul.f32 %v5020, %v5012
    %v5029 = vmul.f32 %v5021, %v5013
    %v5030 = vmul.f32 %v5022, %v5014
    %v5031 = vmul.f32 %v5023, %v5015
    %v5032 = vmul.f32 %v5024, %v5016
    %v5033 = vmul.f32 %v5025, %v5017
    %v5034 = vmul.f32 %v5026, %v5018
    %v5035 = vmul.f32 %v5027, %v5019
    %v5036 = vmul.f32 %v4882, %v4537
    %v5037 = vmul.f32 %v4897, %v4538
    %v5038 = vmul.f32 %v4912, %v4539
    %v5039 = vmul.f32 %v4927, %v4540
    %v5040 = vmul.f32 %v4942, %v4541
    %v5041 = vmul.f32 %v4957, %v4542
    %v5042 = vmul.f32 %v4972, %v4543
    %v5043 = vmul.f32 %v4987, %v4544
    %v5044 = vadd.f32 %v5028, %v5036
    %v5045 = vadd.f32 %v5029, %v5037
    %v5046 = vadd.f32 %v5030, %v5038
    %v5047 = vadd.f32 %v5031, %v5039
    %v5048 = vadd.f32 %v5032, %v5040
    %v5049 = vadd.f32 %v5033, %v5041
    %v5050 = vadd.f32 %v5034, %v5042
    %v5051 = vadd.f32 %v5035, %v5043
    %v5052 = vxor.u32 %v5044, 2147483648
    %v5053 = vxor.u32 %v5045, 2147483648
    %v5054 = vxor.u32 %v5046, 2147483648
    %v5055 = vxor.u32 %v5047, 2147483648
    %v5056 = vxor.u32 %v5048, 2147483648
    %v5057 = vxor.u32 %v5049, 2147483648
    %v5058 = vxor.u32 %v5050, 2147483648
    %v5059 = vxor.u32 %v5051, 2147483648
    %v5060 = vmul.f32 %v5052, 1.442695
    %v5061 = vpow.pop %v5060
    %v5062 = vmul.f32 %v5053, 1.442695
    %v5063 = vpow.pop %v5062
    %v5064 = vmul.f32 %v5054, 1.442695
    %v5065 = vpow.pop %v5064
    %v5066 = vmul.f32 %v5055, 1.442695
    %v5067 = vpow.pop %v5066
    %v5068 = vmul.f32 %v5056, 1.442695
    %v5069 = vpow.pop %v5068
    %v5070 = vmul.f32 %v5057, 1.442695
    %v5071 = vpow.pop %v5070
    %v5072 = vmul.f32 %v5058, 1.442695
    %v5073 = vpow.pop %v5072
    %v5074 = vmul.f32 %v5059, 1.442695
    %v5075 = vpow.pop %v5074
    %v5076 = vadd.f32 %v5061, 1.0
    %v5077 = vadd.f32 %v5063, 1.0
    %v5078 = vadd.f32 %v5065, 1.0
    %v5079 = vadd.f32 %v5067, 1.0
    %v5080 = vadd.f32 %v5069, 1.0
    %v5081 = vadd.f32 %v5071, 1.0
    %v5082 = vadd.f32 %v5073, 1.0
    %v5083 = vadd.f32 %v5075, 1.0
    %v5084 = vrcp.pop %v5076
    %v5085 = vmul.f32 %v5076, %v5084
    %v5086 = vsub.f32 1.0, %v5085
    %v5087 = vmul.f32 %v5084, %v5086
    %v5088 = vadd.f32 %v5084, %v5087
    %vm5089 = vweird.f32 %v5076
    %vm5090 = vweird.f32 %v5084
    %vm5091 = vmor %vm5089, %vm5090
    %v5092 = vsel %vm5091, %v5084, %v5088
    %v5093 = vand.u32 2147483647, %v5076
    %vm5094 = vcmp.eq.f32.partialorder %v5093, 8.507059e+37
    %v5095 = vand.u32 %v5076, 2147483648
    %v5096 = vor.u32 1.1754944e-38, %v5095
    %v5097 = vsel %vm5094, %v5096, %v5092
    %v5098 = vmul.f32 1.0, %v5097
    %v5099 = vrcp.pop %v5077
    %v5100 = vmul.f32 %v5077, %v5099
    %v5101 = vsub.f32 1.0, %v5100
    %v5102 = vmul.f32 %v5099, %v5101
    %v5103 = vadd.f32 %v5099, %v5102
    %vm5104 = vweird.f32 %v5077
    %vm5105 = vweird.f32 %v5099
    %vm5106 = vmor %vm5104, %vm5105
    %v5107 = vsel %vm5106, %v5099, %v5103
    %v5108 = vand.u32 2147483647, %v5077
    %vm5109 = vcmp.eq.f32.partialorder %v5108, 8.507059e+37
    %v5110 = vand.u32 %v5077, 2147483648
    %v5111 = vor.u32 1.1754944e-38, %v5110
    %v5112 = vsel %vm5109, %v5111, %v5107
    %v5113 = vmul.f32 1.0, %v5112
    %v5114 = vrcp.pop %v5078
    %v5115 = vmul.f32 %v5078, %v5114
    %v5116 = vsub.f32 1.0, %v5115
    %v5117 = vmul.f32 %v5114, %v5116
    %v5118 = vadd.f32 %v5114, %v5117
    %vm5119 = vweird.f32 %v5078
    %vm5120 = vweird.f32 %v5114
    %vm5121 = vmor %vm5119, %vm5120
    %v5122 = vsel %vm5121, %v5114, %v5118
    %v5123 = vand.u32 2147483647, %v5078
    %vm5124 = vcmp.eq.f32.partialorder %v5123, 8.507059e+37
    %v5125 = vand.u32 %v5078, 2147483648
    %v5126 = vor.u32 1.1754944e-38, %v5125
    %v5127 = vsel %vm5124, %v5126, %v5122
    %v5128 = vmul.f32 1.0, %v5127
    %v5129 = vrcp.pop %v5079
    %v5130 = vmul.f32 %v5079, %v5129
    %v5131 = vsub.f32 1.0, %v5130
    %v5132 = vmul.f32 %v5129, %v5131
    %v5133 = vadd.f32 %v5129, %v5132
    %vm5134 = vweird.f32 %v5079
    %vm5135 = vweird.f32 %v5129
    %vm5136 = vmor %vm5134, %vm5135
    %v5137 = vsel %vm5136, %v5129, %v5133
    %v5138 = vand.u32 2147483647, %v5079
    %vm5139 = vcmp.eq.f32.partialorder %v5138, 8.507059e+37
    %v5140 = vand.u32 %v5079, 2147483648
    %v5141 = vor.u32 1.1754944e-38, %v5140
    %v5142 = vsel %vm5139, %v5141, %v5137
    %v5143 = vmul.f32 1.0, %v5142
    %v5144 = vrcp.pop %v5080
    %v5145 = vmul.f32 %v5080, %v5144
    %v5146 = vsub.f32 1.0, %v5145
    %v5147 = vmul.f32 %v5144, %v5146
    %v5148 = vadd.f32 %v5144, %v5147
    %vm5149 = vweird.f32 %v5080
    %vm5150 = vweird.f32 %v5144
    %vm5151 = vmor %vm5149, %vm5150
    %v5152 = vsel %vm5151, %v5144, %v5148
    %v5153 = vand.u32 2147483647, %v5080
    %vm5154 = vcmp.eq.f32.partialorder %v5153, 8.507059e+37
    %v5155 = vand.u32 %v5080, 2147483648
    %v5156 = vor.u32 1.1754944e-38, %v5155
    %v5157 = vsel %vm5154, %v5156, %v5152
    %v5158 = vmul.f32 1.0, %v5157
    %v5159 = vrcp.pop %v5081
    %v5160 = vmul.f32 %v5081, %v5159
    %v5161 = vsub.f32 1.0, %v5160
    %v5162 = vmul.f32 %v5159, %v5161
    %v5163 = vadd.f32 %v5159, %v5162
    %vm5164 = vweird.f32 %v5081
    %vm5165 = vweird.f32 %v5159
    %vm5166 = vmor %vm5164, %vm5165
    %v5167 = vsel %vm5166, %v5159, %v5163
    %v5168 = vand.u32 2147483647, %v5081
    %vm5169 = vcmp.eq.f32.partialorder %v5168, 8.507059e+37
    %v5170 = vand.u32 %v5081, 2147483648
    %v5171 = vor.u32 1.1754944e-38, %v5170
    %v5172 = vsel %vm5169, %v5171, %v5167
    %v5173 = vmul.f32 1.0, %v5172
    %v5174 = vrcp.pop %v5082
    %v5175 = vmul.f32 %v5082, %v5174
    %v5176 = vsub.f32 1.0, %v5175
    %v5177 = vmul.f32 %v5174, %v5176
    %v5178 = vadd.f32 %v5174, %v5177
    %vm5179 = vweird.f32 %v5082
    %vm5180 = vweird.f32 %v5174
    %vm5181 = vmor %vm5179, %vm5180
    %v5182 = vsel %vm5181, %v5174, %v5178
    %v5183 = vand.u32 2147483647, %v5082
    %vm5184 = vcmp.eq.f32.partialorder %v5183, 8.507059e+37
    %v5185 = vand.u32 %v5082, 2147483648
    %v5186 = vor.u32 1.1754944e-38, %v5185
    %v5187 = vsel %vm5184, %v5186, %v5182
    %v5188 = vmul.f32 1.0, %v5187
    %v5189 = vrcp.pop %v5083
    %v5190 = vmul.f32 %v5083, %v5189
    %v5191 = vsub.f32 1.0, %v5190
    %v5192 = vmul.f32 %v5189, %v5191
    %v5193 = vadd.f32 %v5189, %v5192
    %vm5194 = vweird.f32 %v5083
    %vm5195 = vweird.f32 %v5189
    %vm5196 = vmor %vm5194, %vm5195
    %v5197 = vsel %vm5196, %v5189, %v5193
    %v5198 = vand.u32 2147483647, %v5083
    %vm5199 = vcmp.eq.f32.partialorder %v5198, 8.507059e+37
    %v5200 = vand.u32 %v5083, 2147483648
    %v5201 = vor.u32 1.1754944e-38, %v5200
    %v5202 = vsel %vm5199, %v5201, %v5197
    %v5203 = vmul.f32 1.0, %v5202
    %v5204 = vmul.f32 %v5044, %v5098
    %v5205 = vmul.f32 %v5045, %v5113
    %v5206 = vmul.f32 %v5046, %v5128
    %v5207 = vmul.f32 %v5047, %v5143
    %v5208 = vmul.f32 %v5048, %v5158
    %v5209 = vmul.f32 %v5049, %v5173
    %v5210 = vmul.f32 %v5050, %v5188
    %v5211 = vmul.f32 %v5051, %v5203
    %v5212 = vld [vmem:[%s5] sm:$0xff]
    %v5213 = vld [vmem:[%s5 + $0x8] sm:$0xff]
    %v5214 = vld [vmem:[%s5 + $0x10] sm:$0xff]
    %v5215 = vld [vmem:[%s5 + $0x18] sm:$0xff]
    %v5216 = vld [vmem:[%s5 + $0x20] sm:$0xff]
    %v5217 = vld [vmem:[%s5 + $0x28] sm:$0xff]
    %v5218 = vld [vmem:[%s5 + $0x30] sm:$0xff]
    %v5219 = vld [vmem:[%s5 + $0x38] sm:$0xff]
    %v5220 = vld [vmem:[%s5 + $0x40] sm:$0xff]
    %v5221 = vld [vmem:[%s5 + $0x48] sm:$0xff]
    %v5222 = vld [vmem:[%s5 + $0x50] sm:$0xff]
    %v5223 = vld [vmem:[%s5 + $0x58] sm:$0xff]
    %v5224 = vld [vmem:[%s5 + $0x60] sm:$0xff]
    %v5225 = vld [vmem:[%s5 + $0x68] sm:$0xff]
    %v5226 = vld [vmem:[%s5 + $0x70] sm:$0xff]
    %v5227 = vld [vmem:[%s5 + $0x78] sm:$0xff]
    %v5228 = vld [vmem:[%s6] sm:$0x1]
    %v5230 = vperm.slane %v5228, 0
    %5232 = vmatpush.msra.mxu0 %v5227
    %5233 = vmatpush.msra.mxu0 %v5226
    %5234 = vmatpush.msra.mxu0 %v5225
    %5235 = vmatpush.msra.mxu0 %v5224
    %5236 = vmatpush.msra.mxu0 %v5223
    %5237 = vmatpush.msra.mxu0 %v5222
    %5238 = vmatpush.msra.mxu0 %v5221
    %5239 = vmatpush.msra.mxu0 %v5220
    %5240 = vmatpush.msra.mxu0 %v5219
    %5241 = vmatpush.msra.mxu0 %v5218
    %5242 = vmatpush.msra.mxu0 %v5217
    %5243 = vmatpush.msra.mxu0 %v5216
    %5244 = vmatpush.msra.mxu0 %v5215
    %5245 = vmatpush.msra.mxu0 %v5214
    %5246 = vmatpush.msra.mxu0 %v5213
    %5247 = vmatpush.msra.mxu0 %v5212
    %5248 = vmatmul.f32.gmra.mxu0 %v5204
    %v5249 = vpop.f32.mrf.mxu0
    %v5250 = vadd.f32 %v5230, %v5249
    %5251 = vmatmul.f32.gmra.mxu0 %v5205
    %v5252 = vpop.f32.mrf.mxu0
    %v5253 = vadd.f32 %v5230, %v5252
    %5254 = vmatmul.f32.gmra.mxu0 %v5206
    %v5255 = vpop.f32.mrf.mxu0
    %v5256 = vadd.f32 %v5230, %v5255
    %5257 = vmatmul.f32.gmra.mxu0 %v5207
    %v5258 = vpop.f32.mrf.mxu0
    %v5259 = vadd.f32 %v5230, %v5258
    %5260 = vmatmul.f32.gmra.mxu0 %v5208
    %v5261 = vpop.f32.mrf.mxu0
    %v5262 = vadd.f32 %v5230, %v5261
    %5263 = vmatmul.f32.gmra.mxu0 %v5209
    %v5264 = vpop.f32.mrf.mxu0
    %v5265 = vadd.f32 %v5230, %v5264
    %5266 = vmatmul.f32.gmra.mxu0 %v5210
    %v5267 = vpop.f32.mrf.mxu0
    %v5268 = vadd.f32 %v5230, %v5267
    %5269 = vmatmul.f32.gmra.mxu0 %v5211
    %v5270 = vpop.f32.mrf.mxu0
    %v5271 = vadd.f32 %v5230, %v5270
    %5272 = vdwg.mxu0
    %v5273 = vxor.u32 %v5250, 2147483648
    %v5274 = vxor.u32 %v5253, 2147483648
    %v5275 = vxor.u32 %v5256, 2147483648
    %v5276 = vxor.u32 %v5259, 2147483648
    %v5277 = vxor.u32 %v5262, 2147483648
    %v5278 = vxor.u32 %v5265, 2147483648
    %v5279 = vxor.u32 %v5268, 2147483648
    %v5280 = vxor.u32 %v5271, 2147483648
    %v5281 = vmul.f32 %v5273, 1.442695
    %v5282 = vpow.pop %v5281
    %v5283 = vmul.f32 %v5274, 1.442695
    %v5284 = vpow.pop %v5283
    %v5285 = vmul.f32 %v5275, 1.442695
    %v5286 = vpow.pop %v5285
    %v5287 = vmul.f32 %v5276, 1.442695
    %v5288 = vpow.pop %v5287
    %v5289 = vmul.f32 %v5277, 1.442695
    %v5290 = vpow.pop %v5289
    %v5291 = vmul.f32 %v5278, 1.442695
    %v5292 = vpow.pop %v5291
    %v5293 = vmul.f32 %v5279, 1.442695
    %v5294 = vpow.pop %v5293
    %v5295 = vmul.f32 %v5280, 1.442695
    %v5296 = vpow.pop %v5295
    %v5297 = vadd.f32 %v5282, 1.0
    %v5298 = vadd.f32 %v5284, 1.0
    %v5299 = vadd.f32 %v5286, 1.0
    %v5300 = vadd.f32 %v5288, 1.0
    %v5301 = vadd.f32 %v5290, 1.0
    %v5302 = vadd.f32 %v5292, 1.0
    %v5303 = vadd.f32 %v5294, 1.0
    %v5304 = vadd.f32 %v5296, 1.0
    %v5305 = vrcp.pop %v5297
    %v5306 = vmul.f32 %v5297, %v5305
    %v5307 = vsub.f32 1.0, %v5306
    %v5308 = vmul.f32 %v5305, %v5307
    %v5309 = vadd.f32 %v5305, %v5308
    %vm5310 = vweird.f32 %v5297
    %vm5311 = vweird.f32 %v5305
    %vm5312 = vmor %vm5310, %vm5311
    %v5313 = vsel %vm5312, %v5305, %v5309
    %v5314 = vand.u32 2147483647, %v5297
    %vm5315 = vcmp.eq.f32.partialorder %v5314, 8.507059e+37
    %v5316 = vand.u32 %v5297, 2147483648
    %v5317 = vor.u32 1.1754944e-38, %v5316
    %v5318 = vsel %vm5315, %v5317, %v5313
    %v5319 = vmul.f32 1.0, %v5318
    %v5320 = vrcp.pop %v5298
    %v5321 = vmul.f32 %v5298, %v5320
    %v5322 = vsub.f32 1.0, %v5321
    %v5323 = vmul.f32 %v5320, %v5322
    %v5324 = vadd.f32 %v5320, %v5323
    %vm5325 = vweird.f32 %v5298
    %vm5326 = vweird.f32 %v5320
    %vm5327 = vmor %vm5325, %vm5326
    %v5328 = vsel %vm5327, %v5320, %v5324
    %v5329 = vand.u32 2147483647, %v5298
    %vm5330 = vcmp.eq.f32.partialorder %v5329, 8.507059e+37
    %v5331 = vand.u32 %v5298, 2147483648
    %v5332 = vor.u32 1.1754944e-38, %v5331
    %v5333 = vsel %vm5330, %v5332, %v5328
    %v5334 = vmul.f32 1.0, %v5333
    %v5335 = vrcp.pop %v5299
    %v5336 = vmul.f32 %v5299, %v5335
    %v5337 = vsub.f32 1.0, %v5336
    %v5338 = vmul.f32 %v5335, %v5337
    %v5339 = vadd.f32 %v5335, %v5338
    %vm5340 = vweird.f32 %v5299
    %vm5341 = vweird.f32 %v5335
    %vm5342 = vmor %vm5340, %vm5341
    %v5343 = vsel %vm5342, %v5335, %v5339
    %v5344 = vand.u32 2147483647, %v5299
    %vm5345 = vcmp.eq.f32.partialorder %v5344, 8.507059e+37
    %v5346 = vand.u32 %v5299, 2147483648
    %v5347 = vor.u32 1.1754944e-38, %v5346
    %v5348 = vsel %vm5345, %v5347, %v5343
    %v5349 = vmul.f32 1.0, %v5348
    %v5350 = vrcp.pop %v5300
    %v5351 = vmul.f32 %v5300, %v5350
    %v5352 = vsub.f32 1.0, %v5351
    %v5353 = vmul.f32 %v5350, %v5352
    %v5354 = vadd.f32 %v5350, %v5353
    %vm5355 = vweird.f32 %v5300
    %vm5356 = vweird.f32 %v5350
    %vm5357 = vmor %vm5355, %vm5356
    %v5358 = vsel %vm5357, %v5350, %v5354
    %v5359 = vand.u32 2147483647, %v5300
    %vm5360 = vcmp.eq.f32.partialorder %v5359, 8.507059e+37
    %v5361 = vand.u32 %v5300, 2147483648
    %v5362 = vor.u32 1.1754944e-38, %v5361
    %v5363 = vsel %vm5360, %v5362, %v5358
    %v5364 = vmul.f32 1.0, %v5363
    %v5365 = vrcp.pop %v5301
    %v5366 = vmul.f32 %v5301, %v5365
    %v5367 = vsub.f32 1.0, %v5366
    %v5368 = vmul.f32 %v5365, %v5367
    %v5369 = vadd.f32 %v5365, %v5368
    %vm5370 = vweird.f32 %v5301
    %vm5371 = vweird.f32 %v5365
    %vm5372 = vmor %vm5370, %vm5371
    %v5373 = vsel %vm5372, %v5365, %v5369
    %v5374 = vand.u32 2147483647, %v5301
    %vm5375 = vcmp.eq.f32.partialorder %v5374, 8.507059e+37
    %v5376 = vand.u32 %v5301, 2147483648
    %v5377 = vor.u32 1.1754944e-38, %v5376
    %v5378 = vsel %vm5375, %v5377, %v5373
    %v5379 = vmul.f32 1.0, %v5378
    %v5380 = vrcp.pop %v5302
    %v5381 = vmul.f32 %v5302, %v5380
    %v5382 = vsub.f32 1.0, %v5381
    %v5383 = vmul.f32 %v5380, %v5382
    %v5384 = vadd.f32 %v5380, %v5383
    %vm5385 = vweird.f32 %v5302
    %vm5386 = vweird.f32 %v5380
    %vm5387 = vmor %vm5385, %vm5386
    %v5388 = vsel %vm5387, %v5380, %v5384
    %v5389 = vand.u32 2147483647, %v5302
    %vm5390 = vcmp.eq.f32.partialorder %v5389, 8.507059e+37
    %v5391 = vand.u32 %v5302, 2147483648
    %v5392 = vor.u32 1.1754944e-38, %v5391
    %v5393 = vsel %vm5390, %v5392, %v5388
    %v5394 = vmul.f32 1.0, %v5393
    %v5395 = vrcp.pop %v5303
    %v5396 = vmul.f32 %v5303, %v5395
    %v5397 = vsub.f32 1.0, %v5396
    %v5398 = vmul.f32 %v5395, %v5397
    %v5399 = vadd.f32 %v5395, %v5398
    %vm5400 = vweird.f32 %v5303
    %vm5401 = vweird.f32 %v5395
    %vm5402 = vmor %vm5400, %vm5401
    %v5403 = vsel %vm5402, %v5395, %v5399
    %v5404 = vand.u32 2147483647, %v5303
    %vm5405 = vcmp.eq.f32.partialorder %v5404, 8.507059e+37
    %v5406 = vand.u32 %v5303, 2147483648
    %v5407 = vor.u32 1.1754944e-38, %v5406
    %v5408 = vsel %vm5405, %v5407, %v5403
    %v5409 = vmul.f32 1.0, %v5408
    %v5410 = vrcp.pop %v5304
    %v5411 = vmul.f32 %v5304, %v5410
    %v5412 = vsub.f32 1.0, %v5411
    %v5413 = vmul.f32 %v5410, %v5412
    %v5414 = vadd.f32 %v5410, %v5413
    %vm5415 = vweird.f32 %v5304
    %vm5416 = vweird.f32 %v5410
    %vm5417 = vmor %vm5415, %vm5416
    %v5418 = vsel %vm5417, %v5410, %v5414
    %v5419 = vand.u32 2147483647, %v5304
    %vm5420 = vcmp.eq.f32.partialorder %v5419, 8.507059e+37
    %v5421 = vand.u32 %v5304, 2147483648
    %v5422 = vor.u32 1.1754944e-38, %v5421
    %v5423 = vsel %vm5420, %v5422, %v5418
    %v5424 = vmul.f32 1.0, %v5423
    %v5425 = vmul.f32 %v5250, %v5319
    %v5426 = vmul.f32 %v5253, %v5334
    %v5427 = vmul.f32 %v5256, %v5349
    %v5428 = vmul.f32 %v5259, %v5364
    %v5429 = vmul.f32 %v5262, %v5379
    %v5430 = vmul.f32 %v5265, %v5394
    %v5431 = vmul.f32 %v5268, %v5409
    %v5432 = vmul.f32 %v5271, %v5424
    %v5433 = vld [vmem:[#allocation2] sm:$0xff]
    %v5434 = vld [vmem:[#allocation2 + $0x8] sm:$0xff]
    %v5435 = vld [vmem:[#allocation2 + $0x10] sm:$0xff]
    %v5436 = vld [vmem:[#allocation2 + $0x18] sm:$0xff]
    %v5437 = vld [vmem:[#allocation2 + $0x20] sm:$0xff]
    %v5438 = vld [vmem:[#allocation2 + $0x28] sm:$0xff]
    %v5439 = vld [vmem:[#allocation2 + $0x30] sm:$0xff]
    %v5440 = vld [vmem:[#allocation2 + $0x38] sm:$0xff]
    %v5441 = vld [vmem:[#allocation2 + $0x40] sm:$0xff]
    %v5442 = vld [vmem:[#allocation2 + $0x48] sm:$0xff]
    %v5443 = vld [vmem:[#allocation2 + $0x50] sm:$0xff]
    %v5444 = vld [vmem:[#allocation2 + $0x58] sm:$0xff]
    %v5445 = vld [vmem:[#allocation2 + $0x60] sm:$0xff]
    %v5446 = vld [vmem:[#allocation2 + $0x68] sm:$0xff]
    %v5447 = vld [vmem:[#allocation2 + $0x70] sm:$0xff]
    %v5448 = vld [vmem:[#allocation2 + $0x78] sm:$0xff]
    %v5449 = vld [vmem:[%s8] sm:$0x1]
    %v5451 = vperm.slane %v5449, 0
    %5453 = vmatpush.msra.mxu0 %v5448
    %5454 = vmatpush.msra.mxu0 %v5447
    %5455 = vmatpush.msra.mxu0 %v5446
    %5456 = vmatpush.msra.mxu0 %v5445
    %5457 = vmatpush.msra.mxu0 %v5444
    %5458 = vmatpush.msra.mxu0 %v5443
    %5459 = vmatpush.msra.mxu0 %v5442
    %5460 = vmatpush.msra.mxu0 %v5441
    %5461 = vmatpush.msra.mxu0 %v5440
    %5462 = vmatpush.msra.mxu0 %v5439
    %5463 = vmatpush.msra.mxu0 %v5438
    %5464 = vmatpush.msra.mxu0 %v5437
    %5465 = vmatpush.msra.mxu0 %v5436
    %5466 = vmatpush.msra.mxu0 %v5435
    %5467 = vmatpush.msra.mxu0 %v5434
    %5468 = vmatpush.msra.mxu0 %v5433
    %5469 = vmatmul.f32.gmra.mxu0 %v5425
    %v5470 = vpop.f32.mrf.mxu0
    %v5471 = vadd.f32 %v5451, %v5470
    %5472 = vmatmul.f32.gmra.mxu0 %v5426
    %v5473 = vpop.f32.mrf.mxu0
    %v5474 = vadd.f32 %v5451, %v5473
    %5475 = vmatmul.f32.gmra.mxu0 %v5427
    %v5476 = vpop.f32.mrf.mxu0
    %v5477 = vadd.f32 %v5451, %v5476
    %5478 = vmatmul.f32.gmra.mxu0 %v5428
    %v5479 = vpop.f32.mrf.mxu0
    %v5480 = vadd.f32 %v5451, %v5479
    %5481 = vmatmul.f32.gmra.mxu0 %v5429
    %v5482 = vpop.f32.mrf.mxu0
    %v5483 = vadd.f32 %v5451, %v5482
    %5484 = vmatmul.f32.gmra.mxu0 %v5430
    %v5485 = vpop.f32.mrf.mxu0
    %v5486 = vadd.f32 %v5451, %v5485
    %5487 = vmatmul.f32.gmra.mxu0 %v5431
    %v5488 = vpop.f32.mrf.mxu0
    %v5489 = vadd.f32 %v5451, %v5488
    %5490 = vmatmul.f32.gmra.mxu0 %v5432
    %v5491 = vpop.f32.mrf.mxu0
    %v5492 = vadd.f32 %v5451, %v5491
    %5493 = vdwg.mxu0
    %v5494 = vadd.f32 %v5471, %v5474
    %v5495 = vadd.f32 %v5494, %v5477
    %v5496 = vadd.f32 %v5495, %v5480
    %v5497 = vadd.f32 %v5496, %v5483
    %v5498 = vadd.f32 %v5497, %v5486
    %v5499 = vadd.f32 %v5498, %v5489
    %v5500 = vadd.f32 %v5499, %v5492
    %v5501 = vrot.slane %v5500, 4
    %v5502 = vadd.f32 %v5500, %v5501
    %v5503 = vrot.slane %v5502, 2
    %v5504 = vadd.f32 %v5502, %v5503
    %v5505 = vrot.slane %v5504, 1
    %v5506 = vadd.f32 %v5504, %v5505
    %v5507 = vmul.f32 %v5506, 0.25
    %5508 = vst [vmem:[#allocation5] sm:$0x1] %v5507
    // Predicated region
    $region42: #{tpu_custom_call.1} parent=1 // pred_check
      _
    $region43: #{tpu_custom_call.1} parent=1 // pred_check_branch
      %5510 = sbr.rel (0) target = $region45
    $region44: #{tpu_custom_call.1} parent=1 // pred_region
      %5512 = vsyncadd [#allocation4], 0
      %s5514 = sshll.u32 [#allocation5], 4
      %s5515 = int_to_ptr.vmem [resolvable:$true] %s5514
      %s5516 = sshll.u32 %s9, 4
      %s5517 = int_to_ptr.hbm [resolvable:$true] %s5516
      %5519 = dma.vmem_to_hbm [thread:$0]  %s5515, 16, %s5517, [#allocation4]
    $region45: #{tpu_custom_call.1} parent=1 // pred_fallthru
      _
    // Predicated region
    $region46: #{tpu_custom_call.1} parent=1 // pred_check
      _
    $region47: #{tpu_custom_call.1} parent=1 // pred_check_branch
      %5521 = sbr.rel (0) target = $region49
    $region48: #{tpu_custom_call.1} parent=1 // pred_region
      %5523 = dma.done [#allocation4], 16
    $region49: #{tpu_custom_call.1} parent=1 // pred_fallthru
      _
    %5524 = vsyncpa [#allocation3], 1
    %5525 = vsyncpa [#allocation4], 1

</llo_original>
